<compile_context>
chip_gen: v7x
topology: tpu7x:2x2x1
jax: 0.10.0
libtpu: 0.0.40
codegen_flags: <defaults>
</compile_context>

<pallas_src>
import functools

import jax
import jax.numpy as jnp
from jax.experimental import pallas as pl
from jax.experimental.pallas import tpu as pltpu

NUM_LAYERS = 2
LN_EPS = 1e-5          # nn.LayerNorm / TransformerEncoderLayer default
L2_EPS = 1e-12         # F.normalize default


def _round_up(x, m):
    return ((x + m - 1) // m) * m


def _layernorm(x, w, b, eps=LN_EPS):
    m = jnp.mean(x, axis=-1, keepdims=True)
    d = x - m
    var = jnp.mean(d * d, axis=-1, keepdims=True)
    return d * jax.lax.rsqrt(var + eps) * w + b


def siamese_encoder_kernel(x_ref, w_in_ref, w_attn_ref, w_ff1_ref, w_ff2_ref,
                           w_out_ref, b256_ref, b1024_ref, b128_ref, o_ref,
                           *, num_layers, hidden, ff_chunk):
    """Whole TransformerEncoder forward for one tile of batch rows.

    Packed parameter layout:
      w_in   (in_size, H) bf16            w_attn (L, H, 2H) bf16 = [V_w | out_w]
      w_ff1  (L, H, 4H) bf16              w_ff2  (L, 4H, H) bf16
      w_out  (H, H//2) bf16
      b256   (1+7L, H) f32 rows: in_b, then per layer v_b,out_b,l2_b,n1w,n1b,n2w,n2b
      b1024  (L, 4H) f32 rows: per-layer linear1 bias
      b128   (3, H//2) f32 rows: out_proj bias, final LN weight, final LN bias
    """
    bf16 = jnp.bfloat16
    f32 = jnp.float32

    # In-kernel cast (wrapper ships raw f32, no standalone XLA pad/convert op).
    x = x_ref[...].astype(bf16)                                      # (tb, in)
    h = jnp.dot(x, w_in_ref[...], preferred_element_type=f32) + b256_ref[0:1, :]

    for l in range(num_layers):
        r0 = 1 + 7 * l
        v_b   = b256_ref[r0 + 0:r0 + 1, :]
        out_b = b256_ref[r0 + 1:r0 + 2, :]
        l2_b  = b256_ref[r0 + 2:r0 + 3, :]
        n1w   = b256_ref[r0 + 3:r0 + 4, :]
        n1b   = b256_ref[r0 + 4:r0 + 5, :]
        n2w   = b256_ref[r0 + 5:r0 + 6, :]
        n2b   = b256_ref[r0 + 6:r0 + 7, :]
        l1_b  = b1024_ref[l:l + 1, :]

        # --- self-attention block (post-norm; seq_len == 1 => softmax == 1) ---
        v = jnp.dot(h.astype(bf16), w_attn_ref[l, :, :hidden],
                    preferred_element_type=f32) + v_b
        attn = jnp.dot(v.astype(bf16), w_attn_ref[l, :, hidden:],
                       preferred_element_type=f32) + out_b
        h = _layernorm(h + attn, n1w, n1b)

        # --- feed-forward block (ReLU), optionally chunked over dim_ff so the
        #     (tb, dim_ff) f32 intermediate stays small (spill control). ---
        dim_ff = w_ff1_ref.shape[-1]
        cw = ff_chunk if (ff_chunk and ff_chunk < dim_ff) else dim_ff
        hb = h.astype(bf16)
        ff = None
        for lo in range(0, dim_ff, cw):
            z = jnp.dot(hb, w_ff1_ref[l, :, lo:lo + cw],
                        preferred_element_type=f32) + l1_b[:, lo:lo + cw]
            z = jnp.maximum(z, 0.0).astype(bf16)
            part = jnp.dot(z, w_ff2_ref[l, lo:lo + cw, :],
                           preferred_element_type=f32)
            ff = part if ff is None else ff + part
        h = _layernorm(h + ff + l2_b, n2w, n2b)

    out = jnp.dot(h.astype(bf16), w_out_ref[...],
                  preferred_element_type=f32) + b128_ref[0:1, :]
    out = _layernorm(out, b128_ref[1:2, :], b128_ref[2:3, :])

    # F.normalize(p=2, dim=1) via rsqrt (EUP) instead of sqrt + divide.
    ss = jnp.sum(out * out, axis=-1, keepdims=True)
    out = out * jax.lax.rsqrt(jnp.maximum(ss, L2_EPS * L2_EPS))
    o_ref[...] = out.astype(o_ref.dtype)


def init_params(key, in_size, hidden, num_layers=NUM_LAYERS):
    """Deterministic synthetic parameters (shapes match the nn.Module), f32,
    stored pre-transposed to (in, out)."""
    def nrm(k, shape, scale=0.05):
        return scale * jax.random.normal(k, shape, jnp.float32)

    keys = iter(jax.random.split(key, 8 + 8 * num_layers))
    params = []
    params.append(nrm(next(keys), (in_size, hidden)))            # input_proj W^T
    params.append(nrm(next(keys), (1, hidden)))                   # input_proj b
    for _ in range(num_layers):
        params.append(nrm(next(keys), (hidden, hidden)))          # V slice of in_proj^T
        params.append(nrm(next(keys), (1, hidden)))               # V bias
        params.append(nrm(next(keys), (hidden, hidden)))          # attn out_proj^T
        params.append(nrm(next(keys), (1, hidden)))
        params.append(nrm(next(keys), (hidden, 4 * hidden)))      # linear1^T
        params.append(nrm(next(keys), (1, 4 * hidden)))
        params.append(nrm(next(keys), (4 * hidden, hidden)))      # linear2^T
        params.append(nrm(next(keys), (1, hidden)))
        params.append(jnp.ones((1, hidden), jnp.float32))         # norm1 w
        params.append(jnp.zeros((1, hidden), jnp.float32))        # norm1 b
        params.append(jnp.ones((1, hidden), jnp.float32))         # norm2 w
        params.append(jnp.zeros((1, hidden), jnp.float32))        # norm2 b
    params.append(nrm(next(keys), (hidden, hidden // 2)))          # output_proj^T
    params.append(nrm(next(keys), (1, hidden // 2)))
    params.append(jnp.ones((1, hidden // 2), jnp.float32))         # final LN w
    params.append(jnp.zeros((1, hidden // 2), jnp.float32))        # final LN b
    return tuple(params)


def pack_params(params, num_layers=NUM_LAYERS):
    """Pack the flat param tuple into 8 arrays: 5 bf16 weight blocks + 3 f32
    bias/LayerNorm row-stacks (cuts ~40 BlockSpecs / sub-KiB DMAs down to 8)."""
    p = list(params)
    w_in = p[0].astype(jnp.bfloat16)
    b256_rows = [p[1]]
    w_attn, w_ff1, w_ff2, b1024_rows = [], [], [], []
    idx = 2
    for _ in range(num_layers):
        vw, vb, ow, ob, l1w, l1b, l2w, l2b, n1w, n1b, n2w, n2b = p[idx:idx + 12]
        idx += 12
        w_attn.append(jnp.concatenate([vw, ow], axis=1))          # (H, 2H)
        w_ff1.append(l1w)
        w_ff2.append(l2w)
        b1024_rows.append(l1b)
        b256_rows += [vb, ob, l2b, n1w, n1b, n2w, n2b]
    w_out = p[idx].astype(jnp.bfloat16)
    b128 = jnp.concatenate([p[idx + 1], p[idx + 2], p[idx + 3]], axis=0)
    return (w_in,
            jnp.stack(w_attn).astype(jnp.bfloat16),               # (L, H, 2H)
            jnp.stack(w_ff1).astype(jnp.bfloat16),                # (L, H, 4H)
            jnp.stack(w_ff2).astype(jnp.bfloat16),                # (L, 4H, H)
            w_out,
            jnp.concatenate(b256_rows, axis=0),                   # (1+7L, H)
            jnp.concatenate(b1024_rows, axis=0),                  # (L, 4H)
            b128)                                                 # (3, H//2)


def _default_max_tile():
    """v5e: M=128 saturates its 4x128x128 MXU and it has one vst slot; keep
    M=256 on v6e/v7x (fills the 2x256x256 MXU)."""
    try:
        kind = jax.devices()[0].device_kind.lower()
    except Exception:
        return 256
    if "v5 lite" in kind or "v5e" in kind or "v5lite" in kind:
        return 128
    return 256


def encode(packed, x, *, num_layers=NUM_LAYERS, max_tile=None):
    w_in, w_attn, w_ff1, w_ff2, w_out, b256, b1024, b128 = packed
    n, in_size = x.shape
    hidden = w_in.shape[1]
    out_dim = w_out.shape[1]
    dim_ff = w_ff1.shape[-1]
    if max_tile is None:
        max_tile = _default_max_tile()

    # Single grid step when the whole batch fits one tile; otherwise max_tile.
    tile_b = max(8, _round_up(n, 8)) if n <= max_tile else max_tile
    n_pad = _round_up(n, tile_b)
    if n_pad != n:
        x = jnp.pad(x, ((0, n_pad - n), (0, 0)))
    grid = n_pad // tile_b

    # Chunk the FFN when the (tile_b, dim_ff) f32 intermediate exceeds 512 KiB.
    ff_chunk = 512 if tile_b * dim_ff * 4 > (512 * 1024) else 0

    def const_spec(p):
        nd = p.ndim
        # Constant block index: weights are DMA'd once and stay VMEM-resident.
        return pl.BlockSpec(p.shape, lambda i: (0,) * nd)

    x_spec = pl.BlockSpec((tile_b, in_size), lambda i: (i, 0))
    param_specs = [const_spec(p) for p in packed]
    out_spec = pl.BlockSpec((tile_b, out_dim), lambda i: (i, 0))

    # Split across TensorCores only when the grid is long enough to amortize
    # the per-core duplicated weight DMA (small batches are weight-DMA-bound).
    semantics = ("parallel",) if grid >= 8 else ("arbitrary",)

    kernel = functools.partial(siamese_encoder_kernel, num_layers=num_layers,
                               hidden=hidden, ff_chunk=ff_chunk)
    out = pl.pallas_call(
        kernel,
        out_shape=jax.ShapeDtypeStruct((n_pad, out_dim), jnp.float32),
        grid_spec=pltpu.PrefetchScalarGridSpec(
            num_scalar_prefetch=0,
            grid=(grid,),
            in_specs=[x_spec] + param_specs,
            out_specs=out_spec,
        ),
        compiler_params=pltpu.CompilerParams(dimension_semantics=semantics),
    )(x, *packed)
    return out[:n]


@functools.partial(jax.jit, static_argnames=("num_layers",))
def siamese_forward(packed, anchor, positive, negative, num_layers=NUM_LAYERS):
    """SiameseTransformerNetwork.forward: one fused launch for all three inputs."""
    b = anchor.shape[0]
    x = jnp.concatenate([anchor, positive, negative], axis=0)
    out = encode(packed, x, num_layers=num_layers)
    return out[:b], out[b:2 * b], out[2 * b:3 * b]


# ----- pure-JAX reference (same math, same bf16 matmul operands, unpacked) -----
def encode_ref(params, x, num_layers=NUM_LAYERS):
    bf = jnp.bfloat16

    def mdot(a, b):
        return jnp.dot(a.astype(bf), b.astype(bf), preferred_element_type=jnp.float32)

    p = params
    h = mdot(x, p[0]) + p[1]
    idx = 2
    for _ in range(num_layers):
        vw, vb, ow, ob, l1w, l1b, l2w, l2b, n1w, n1b, n2w, n2b = p[idx:idx + 12]
        idx += 12
        attn = mdot(mdot(h, vw) + vb, ow) + ob
        h = _layernorm(h + attn, n1w, n1b)
        ff = mdot(jnp.maximum(mdot(h, l1w) + l1b, 0.0), l2w) + l2b
        h = _layernorm(h + ff, n2w, n2b)
    out = mdot(h, p[idx]) + p[idx + 1]
    out = _layernorm(out, p[idx + 2], p[idx + 3])
    ss = jnp.sum(out * out, axis=-1, keepdims=True)
    return out * jax.lax.rsqrt(jnp.maximum(ss, L2_EPS * L2_EPS))


if __name__ == "__main__":
    # Module's real feature sizes (input=112, hidden=256 -> out=128), small batch.
    B, INPUT_SIZE, HIDDEN = 8, 112, 256

    key = jax.random.PRNGKey(0)
    ka, kp, kn, kw = jax.random.split(key, 4)
    anchor = jax.random.normal(ka, (B, INPUT_SIZE), jnp.float32)
    positive = jax.random.normal(kp, (B, INPUT_SIZE), jnp.float32)
    negative = jax.random.normal(kn, (B, INPUT_SIZE), jnp.float32)

    params = init_params(kw, INPUT_SIZE, HIDDEN)
    packed = pack_params(params)

    a_out, p_out, n_out = siamese_forward(packed, anchor, positive, negative)
    jax.block_until_ready((a_out, p_out, n_out))

    # sanity-check against the plain-JAX reference (bf16 matmul operands, f32 acc)
    for got, x in ((a_out, anchor), (p_out, positive), (n_out, negative)):
        want = encode_ref(params, x)
        assert jnp.allclose(got, want, atol=5e-3, rtol=5e-3), "mismatch vs reference"

    print("KERNEL_OK")
</pallas_src>

<mosaic_0001>
module attributes {stable_mosaic.version = 11 : i64} {
  func.func @siamese_encoder_kernel(%arg0: i32, %arg1: memref<24x112xf32, #tpu.memory_space<vmem>>, %arg2: memref<112x256xbf16, #tpu.memory_space<vmem>>, %arg3: memref<2x256x512xbf16, #tpu.memory_space<vmem>>, %arg4: memref<2x256x1024xbf16, #tpu.memory_space<vmem>>, %arg5: memref<2x1024x256xbf16, #tpu.memory_space<vmem>>, %arg6: memref<256x128xbf16, #tpu.memory_space<vmem>>, %arg7: memref<15x256xf32, #tpu.memory_space<vmem>>, %arg8: memref<2x1024xf32, #tpu.memory_space<vmem>>, %arg9: memref<3x128xf32, #tpu.memory_space<vmem>>, %arg10: memref<24x128xf32, #tpu.memory_space<vmem>>) attributes {dimension_semantics = [#tpu.dimension_semantics<arbitrary>], iteration_bounds = array<i64: 1>, scalar_prefetch = 0 : i64, scratch_operands = 0 : i64, tpu.core_type = #tpu.core_type<tc>, window_params = [{transform_indices = @transform_0, window_bounds = array<i64: 24, 112>}, {pipeline_mode = #tpu.pipeline_mode<synchronous>, transform_indices = @transform_1, window_bounds = array<i64: 112, 256>}, {pipeline_mode = #tpu.pipeline_mode<synchronous>, transform_indices = @transform_2, window_bounds = array<i64: 2, 256, 512>}, {pipeline_mode = #tpu.pipeline_mode<synchronous>, transform_indices = @transform_3, window_bounds = array<i64: 2, 256, 1024>}, {pipeline_mode = #tpu.pipeline_mode<synchronous>, transform_indices = @transform_4, window_bounds = array<i64: 2, 1024, 256>}, {pipeline_mode = #tpu.pipeline_mode<synchronous>, transform_indices = @transform_5, window_bounds = array<i64: 256, 128>}, {pipeline_mode = #tpu.pipeline_mode<synchronous>, transform_indices = @transform_6, window_bounds = array<i64: 15, 256>}, {pipeline_mode = #tpu.pipeline_mode<synchronous>, transform_indices = @transform_7, window_bounds = array<i64: 2, 1024>}, {pipeline_mode = #tpu.pipeline_mode<synchronous>, transform_indices = @transform_8, window_bounds = array<i64: 3, 128>}, {transform_indices = @transform_9, window_bounds = array<i64: 24, 128>}]} {
    %c0 = arith.constant 0 : index
    %c0_0 = arith.constant 0 : index
    %0 = vector.load %arg1[%c0, %c0_0] : memref<24x112xf32, #tpu.memory_space<vmem>>, vector<24x112xf32>
    %1 = arith.truncf %0 : vector<24x112xf32> to vector<24x112xbf16>
    %c0_1 = arith.constant 0 : index
    %c0_2 = arith.constant 0 : index
    %2 = vector.load %arg2[%c0_1, %c0_2] : memref<112x256xbf16, #tpu.memory_space<vmem>>, vector<112x256xbf16>
    %cst = arith.constant dense<0.000000e+00> : vector<24x256xf32>
    %3 = tpu.matmul %1, %2, %cst {dimension_numbers = #tpu.dot_dimension_numbers<[1], [0], [0], [1], [0, 0, 1, 1], [], []>} : vector<24x112xbf16>, vector<112x256xbf16>, vector<24x256xf32> -> vector<24x256xf32>
    %c0_3 = arith.constant 0 : index
    %c0_4 = arith.constant 0 : index
    %4 = vector.load %arg7[%c0_3, %c0_4] : memref<15x256xf32, #tpu.memory_space<vmem>>, vector<1x256xf32>
    %5 = vector.broadcast %4 : vector<1x256xf32> to vector<24x256xf32>
    %6 = arith.addf %3, %5 : vector<24x256xf32>
    %c1 = arith.constant 1 : index
    %c0_5 = arith.constant 0 : index
    %7 = vector.load %arg7[%c1, %c0_5] : memref<15x256xf32, #tpu.memory_space<vmem>>, vector<1x256xf32>
    %c2 = arith.constant 2 : index
    %c0_6 = arith.constant 0 : index
    %8 = vector.load %arg7[%c2, %c0_6] : memref<15x256xf32, #tpu.memory_space<vmem>>, vector<1x256xf32>
    %c3 = arith.constant 3 : index
    %c0_7 = arith.constant 0 : index
    %9 = vector.load %arg7[%c3, %c0_7] : memref<15x256xf32, #tpu.memory_space<vmem>>, vector<1x256xf32>
    %c4 = arith.constant 4 : index
    %c0_8 = arith.constant 0 : index
    %10 = vector.load %arg7[%c4, %c0_8] : memref<15x256xf32, #tpu.memory_space<vmem>>, vector<1x256xf32>
    %c5 = arith.constant 5 : index
    %c0_9 = arith.constant 0 : index
    %11 = vector.load %arg7[%c5, %c0_9] : memref<15x256xf32, #tpu.memory_space<vmem>>, vector<1x256xf32>
    %c6 = arith.constant 6 : index
    %c0_10 = arith.constant 0 : index
    %12 = vector.load %arg7[%c6, %c0_10] : memref<15x256xf32, #tpu.memory_space<vmem>>, vector<1x256xf32>
    %c7 = arith.constant 7 : index
    %c0_11 = arith.constant 0 : index
    %13 = vector.load %arg7[%c7, %c0_11] : memref<15x256xf32, #tpu.memory_space<vmem>>, vector<1x256xf32>
    %c0_12 = arith.constant 0 : index
    %c0_13 = arith.constant 0 : index
    %14 = vector.load %arg8[%c0_12, %c0_13] : memref<2x1024xf32, #tpu.memory_space<vmem>>, vector<1x1024xf32>
    %15 = arith.truncf %6 : vector<24x256xf32> to vector<24x256xbf16>
    %c0_14 = arith.constant 0 : index
    %c0_15 = arith.constant 0 : index
    %c0_16 = arith.constant 0 : index
    %16 = vector.load %arg3[%c0_14, %c0_15, %c0_16] : memref<2x256x512xbf16, #tpu.memory_space<vmem>>, vector<1x256x256xbf16>
    %17 = vector.shape_cast %16 : vector<1x256x256xbf16> to vector<256x256xbf16>
    %cst_17 = arith.constant dense<0.000000e+00> : vector<24x256xf32>
    %18 = tpu.matmul %15, %17, %cst_17 {dimension_numbers = #tpu.dot_dimension_numbers<[1], [0], [0], [1], [0, 0, 1, 1], [], []>} : vector<24x256xbf16>, vector<256x256xbf16>, vector<24x256xf32> -> vector<24x256xf32>
    %19 = vector.broadcast %7 : vector<1x256xf32> to vector<24x256xf32>
    %20 = arith.addf %18, %19 : vector<24x256xf32>
    %21 = arith.truncf %20 : vector<24x256xf32> to vector<24x256xbf16>
    %c0_18 = arith.constant 0 : index
    %c0_19 = arith.constant 0 : index
    %c256 = arith.constant 256 : index
    %22 = vector.load %arg3[%c0_18, %c0_19, %c256] : memref<2x256x512xbf16, #tpu.memory_space<vmem>>, vector<1x256x256xbf16>
    %23 = vector.shape_cast %22 : vector<1x256x256xbf16> to vector<256x256xbf16>
    %cst_20 = arith.constant dense<0.000000e+00> : vector<24x256xf32>
    %24 = tpu.matmul %21, %23, %cst_20 {dimension_numbers = #tpu.dot_dimension_numbers<[1], [0], [0], [1], [0, 0, 1, 1], [], []>} : vector<24x256xbf16>, vector<256x256xbf16>, vector<24x256xf32> -> vector<24x256xf32>
    %25 = vector.broadcast %8 : vector<1x256xf32> to vector<24x256xf32>
    %26 = arith.addf %24, %25 : vector<24x256xf32>
    %27 = arith.addf %6, %26 : vector<24x256xf32>
    %cst_21 = arith.constant dense<0.000000e+00> : vector<24xf32>
    %28 = vector.multi_reduction <add>, %27, %cst_21 [1] : vector<24x256xf32> to vector<24xf32>
    %29 = vector.shape_cast %28 : vector<24xf32> to vector<24x1xf32>
    %cst_22 = arith.constant 2.560000e+02 : f32
    %30 = vector.broadcast %cst_22 : f32 to vector<24x1xf32>
    %31 = arith.divf %29, %30 : vector<24x1xf32>
    %32 = vector.broadcast %31 : vector<24x1xf32> to vector<24x256xf32>
    %33 = arith.subf %27, %32 : vector<24x256xf32>
    %34 = arith.mulf %33, %33 : vector<24x256xf32>
    %cst_23 = arith.constant dense<0.000000e+00> : vector<24xf32>
    %35 = vector.multi_reduction <add>, %34, %cst_23 [1] : vector<24x256xf32> to vector<24xf32>
    %36 = vector.shape_cast %35 : vector<24xf32> to vector<24x1xf32>
    %cst_24 = arith.constant 2.560000e+02 : f32
    %37 = vector.broadcast %cst_24 : f32 to vector<24x1xf32>
    %38 = arith.divf %36, %37 : vector<24x1xf32>
    %cst_25 = arith.constant 9.99999974E-6 : f32
    %39 = vector.broadcast %cst_25 : f32 to vector<24x1xf32>
    %40 = arith.addf %38, %39 : vector<24x1xf32>
    %41 = math.rsqrt %40 : vector<24x1xf32>
    %42 = vector.broadcast %41 : vector<24x1xf32> to vector<24x256xf32>
    %43 = arith.mulf %33, %42 : vector<24x256xf32>
    %44 = vector.broadcast %10 : vector<1x256xf32> to vector<24x256xf32>
    %45 = arith.mulf %43, %44 : vector<24x256xf32>
    %46 = vector.broadcast %11 : vector<1x256xf32> to vector<24x256xf32>
    %47 = arith.addf %45, %46 : vector<24x256xf32>
    %48 = arith.truncf %47 : vector<24x256xf32> to vector<24x256xbf16>
    %c0_26 = arith.constant 0 : index
    %c0_27 = arith.constant 0 : index
    %c0_28 = arith.constant 0 : index
    %49 = vector.load %arg4[%c0_26, %c0_27, %c0_28] : memref<2x256x1024xbf16, #tpu.memory_space<vmem>>, vector<1x256x1024xbf16>
    %50 = vector.shape_cast %49 : vector<1x256x1024xbf16> to vector<256x1024xbf16>
    %cst_29 = arith.constant dense<0.000000e+00> : vector<24x1024xf32>
    %51 = tpu.matmul %48, %50, %cst_29 {dimension_numbers = #tpu.dot_dimension_numbers<[1], [0], [0], [1], [0, 0, 1, 1], [], []>} : vector<24x256xbf16>, vector<256x1024xbf16>, vector<24x1024xf32> -> vector<24x1024xf32>
    %52 = vector.broadcast %14 : vector<1x1024xf32> to vector<24x1024xf32>
    %53 = arith.addf %51, %52 : vector<24x1024xf32>
    %cst_30 = arith.constant 0.000000e+00 : f32
    %54 = vector.broadcast %cst_30 : f32 to vector<24x1024xf32>
    %55 = arith.maximumf %53, %54 : vector<24x1024xf32>
    %56 = arith.truncf %55 : vector<24x1024xf32> to vector<24x1024xbf16>
    %c0_31 = arith.constant 0 : index
    %c0_32 = arith.constant 0 : index
    %c0_33 = arith.constant 0 : index
    %57 = vector.load %arg5[%c0_31, %c0_32, %c0_33] : memref<2x1024x256xbf16, #tpu.memory_space<vmem>>, vector<1x1024x256xbf16>
    %58 = vector.shape_cast %57 : vector<1x1024x256xbf16> to vector<1024x256xbf16>
    %cst_34 = arith.constant dense<0.000000e+00> : vector<24x256xf32>
    %59 = tpu.matmul %56, %58, %cst_34 {dimension_numbers = #tpu.dot_dimension_numbers<[1], [0], [0], [1], [0, 0, 1, 1], [], []>} : vector<24x1024xbf16>, vector<1024x256xbf16>, vector<24x256xf32> -> vector<24x256xf32>
    %60 = arith.addf %47, %59 : vector<24x256xf32>
    %61 = vector.broadcast %9 : vector<1x256xf32> to vector<24x256xf32>
    %62 = arith.addf %60, %61 : vector<24x256xf32>
    %cst_35 = arith.constant dense<0.000000e+00> : vector<24xf32>
    %63 = vector.multi_reduction <add>, %62, %cst_35 [1] : vector<24x256xf32> to vector<24xf32>
    %64 = vector.shape_cast %63 : vector<24xf32> to vector<24x1xf32>
    %cst_36 = arith.constant 2.560000e+02 : f32
    %65 = vector.broadcast %cst_36 : f32 to vector<24x1xf32>
    %66 = arith.divf %64, %65 : vector<24x1xf32>
    %67 = vector.broadcast %66 : vector<24x1xf32> to vector<24x256xf32>
    %68 = arith.subf %62, %67 : vector<24x256xf32>
    %69 = arith.mulf %68, %68 : vector<24x256xf32>
    %cst_37 = arith.constant dense<0.000000e+00> : vector<24xf32>
    %70 = vector.multi_reduction <add>, %69, %cst_37 [1] : vector<24x256xf32> to vector<24xf32>
    %71 = vector.shape_cast %70 : vector<24xf32> to vector<24x1xf32>
    %cst_38 = arith.constant 2.560000e+02 : f32
    %72 = vector.broadcast %cst_38 : f32 to vector<24x1xf32>
    %73 = arith.divf %71, %72 : vector<24x1xf32>
    %cst_39 = arith.constant 9.99999974E-6 : f32
    %74 = vector.broadcast %cst_39 : f32 to vector<24x1xf32>
    %75 = arith.addf %73, %74 : vector<24x1xf32>
    %76 = math.rsqrt %75 : vector<24x1xf32>
    %77 = vector.broadcast %76 : vector<24x1xf32> to vector<24x256xf32>
    %78 = arith.mulf %68, %77 : vector<24x256xf32>
    %79 = vector.broadcast %12 : vector<1x256xf32> to vector<24x256xf32>
    %80 = arith.mulf %78, %79 : vector<24x256xf32>
    %81 = vector.broadcast %13 : vector<1x256xf32> to vector<24x256xf32>
    %82 = arith.addf %80, %81 : vector<24x256xf32>
    %c8 = arith.constant 8 : index
    %c0_40 = arith.constant 0 : index
    %83 = vector.load %arg7[%c8, %c0_40] : memref<15x256xf32, #tpu.memory_space<vmem>>, vector<1x256xf32>
    %c9 = arith.constant 9 : index
    %c0_41 = arith.constant 0 : index
    %84 = vector.load %arg7[%c9, %c0_41] : memref<15x256xf32, #tpu.memory_space<vmem>>, vector<1x256xf32>
    %c10 = arith.constant 10 : index
    %c0_42 = arith.constant 0 : index
    %85 = vector.load %arg7[%c10, %c0_42] : memref<15x256xf32, #tpu.memory_space<vmem>>, vector<1x256xf32>
    %c11 = arith.constant 11 : index
    %c0_43 = arith.constant 0 : index
    %86 = vector.load %arg7[%c11, %c0_43] : memref<15x256xf32, #tpu.memory_space<vmem>>, vector<1x256xf32>
    %c12 = arith.constant 12 : index
    %c0_44 = arith.constant 0 : index
    %87 = vector.load %arg7[%c12, %c0_44] : memref<15x256xf32, #tpu.memory_space<vmem>>, vector<1x256xf32>
    %c13 = arith.constant 13 : index
    %c0_45 = arith.constant 0 : index
    %88 = vector.load %arg7[%c13, %c0_45] : memref<15x256xf32, #tpu.memory_space<vmem>>, vector<1x256xf32>
    %c14 = arith.constant 14 : index
    %c0_46 = arith.constant 0 : index
    %89 = vector.load %arg7[%c14, %c0_46] : memref<15x256xf32, #tpu.memory_space<vmem>>, vector<1x256xf32>
    %c1_47 = arith.constant 1 : index
    %c0_48 = arith.constant 0 : index
    %90 = vector.load %arg8[%c1_47, %c0_48] : memref<2x1024xf32, #tpu.memory_space<vmem>>, vector<1x1024xf32>
    %91 = arith.truncf %82 : vector<24x256xf32> to vector<24x256xbf16>
    %c1_49 = arith.constant 1 : index
    %c0_50 = arith.constant 0 : index
    %c0_51 = arith.constant 0 : index
    %92 = vector.load %arg3[%c1_49, %c0_50, %c0_51] : memref<2x256x512xbf16, #tpu.memory_space<vmem>>, vector<1x256x256xbf16>
    %93 = vector.shape_cast %92 : vector<1x256x256xbf16> to vector<256x256xbf16>
    %cst_52 = arith.constant dense<0.000000e+00> : vector<24x256xf32>
    %94 = tpu.matmul %91, %93, %cst_52 {dimension_numbers = #tpu.dot_dimension_numbers<[1], [0], [0], [1], [0, 0, 1, 1], [], []>} : vector<24x256xbf16>, vector<256x256xbf16>, vector<24x256xf32> -> vector<24x256xf32>
    %95 = vector.broadcast %83 : vector<1x256xf32> to vector<24x256xf32>
    %96 = arith.addf %94, %95 : vector<24x256xf32>
    %97 = arith.truncf %96 : vector<24x256xf32> to vector<24x256xbf16>
    %c1_53 = arith.constant 1 : index
    %c0_54 = arith.constant 0 : index
    %c256_55 = arith.constant 256 : index
    %98 = vector.load %arg3[%c1_53, %c0_54, %c256_55] : memref<2x256x512xbf16, #tpu.memory_space<vmem>>, vector<1x256x256xbf16>
    %99 = vector.shape_cast %98 : vector<1x256x256xbf16> to vector<256x256xbf16>
    %cst_56 = arith.constant dense<0.000000e+00> : vector<24x256xf32>
    %100 = tpu.matmul %97, %99, %cst_56 {dimension_numbers = #tpu.dot_dimension_numbers<[1], [0], [0], [1], [0, 0, 1, 1], [], []>} : vector<24x256xbf16>, vector<256x256xbf16>, vector<24x256xf32> -> vector<24x256xf32>
    %101 = vector.broadcast %84 : vector<1x256xf32> to vector<24x256xf32>
    %102 = arith.addf %100, %101 : vector<24x256xf32>
    %103 = arith.addf %82, %102 : vector<24x256xf32>
    %cst_57 = arith.constant dense<0.000000e+00> : vector<24xf32>
    %104 = vector.multi_reduction <add>, %103, %cst_57 [1] : vector<24x256xf32> to vector<24xf32>
    %105 = vector.shape_cast %104 : vector<24xf32> to vector<24x1xf32>
    %cst_58 = arith.constant 2.560000e+02 : f32
    %106 = vector.broadcast %cst_58 : f32 to vector<24x1xf32>
    %107 = arith.divf %105, %106 : vector<24x1xf32>
    %108 = vector.broadcast %107 : vector<24x1xf32> to vector<24x256xf32>
    %109 = arith.subf %103, %108 : vector<24x256xf32>
    %110 = arith.mulf %109, %109 : vector<24x256xf32>
    %cst_59 = arith.constant dense<0.000000e+00> : vector<24xf32>
    %111 = vector.multi_reduction <add>, %110, %cst_59 [1] : vector<24x256xf32> to vector<24xf32>
    %112 = vector.shape_cast %111 : vector<24xf32> to vector<24x1xf32>
    %cst_60 = arith.constant 2.560000e+02 : f32
    %113 = vector.broadcast %cst_60 : f32 to vector<24x1xf32>
    %114 = arith.divf %112, %113 : vector<24x1xf32>
    %cst_61 = arith.constant 9.99999974E-6 : f32
    %115 = vector.broadcast %cst_61 : f32 to vector<24x1xf32>
    %116 = arith.addf %114, %115 : vector<24x1xf32>
    %117 = math.rsqrt %116 : vector<24x1xf32>
    %118 = vector.broadcast %117 : vector<24x1xf32> to vector<24x256xf32>
    %119 = arith.mulf %109, %118 : vector<24x256xf32>
    %120 = vector.broadcast %86 : vector<1x256xf32> to vector<24x256xf32>
    %121 = arith.mulf %119, %120 : vector<24x256xf32>
    %122 = vector.broadcast %87 : vector<1x256xf32> to vector<24x256xf32>
    %123 = arith.addf %121, %122 : vector<24x256xf32>
    %124 = arith.truncf %123 : vector<24x256xf32> to vector<24x256xbf16>
    %c1_62 = arith.constant 1 : index
    %c0_63 = arith.constant 0 : index
    %c0_64 = arith.constant 0 : index
    %125 = vector.load %arg4[%c1_62, %c0_63, %c0_64] : memref<2x256x1024xbf16, #tpu.memory_space<vmem>>, vector<1x256x1024xbf16>
    %126 = vector.shape_cast %125 : vector<1x256x1024xbf16> to vector<256x1024xbf16>
    %cst_65 = arith.constant dense<0.000000e+00> : vector<24x1024xf32>
    %127 = tpu.matmul %124, %126, %cst_65 {dimension_numbers = #tpu.dot_dimension_numbers<[1], [0], [0], [1], [0, 0, 1, 1], [], []>} : vector<24x256xbf16>, vector<256x1024xbf16>, vector<24x1024xf32> -> vector<24x1024xf32>
    %128 = vector.broadcast %90 : vector<1x1024xf32> to vector<24x1024xf32>
    %129 = arith.addf %127, %128 : vector<24x1024xf32>
    %cst_66 = arith.constant 0.000000e+00 : f32
    %130 = vector.broadcast %cst_66 : f32 to vector<24x1024xf32>
    %131 = arith.maximumf %129, %130 : vector<24x1024xf32>
    %132 = arith.truncf %131 : vector<24x1024xf32> to vector<24x1024xbf16>
    %c1_67 = arith.constant 1 : index
    %c0_68 = arith.constant 0 : index
    %c0_69 = arith.constant 0 : index
    %133 = vector.load %arg5[%c1_67, %c0_68, %c0_69] : memref<2x1024x256xbf16, #tpu.memory_space<vmem>>, vector<1x1024x256xbf16>
    %134 = vector.shape_cast %133 : vector<1x1024x256xbf16> to vector<1024x256xbf16>
    %cst_70 = arith.constant dense<0.000000e+00> : vector<24x256xf32>
    %135 = tpu.matmul %132, %134, %cst_70 {dimension_numbers = #tpu.dot_dimension_numbers<[1], [0], [0], [1], [0, 0, 1, 1], [], []>} : vector<24x1024xbf16>, vector<1024x256xbf16>, vector<24x256xf32> -> vector<24x256xf32>
    %136 = arith.addf %123, %135 : vector<24x256xf32>
    %137 = vector.broadcast %85 : vector<1x256xf32> to vector<24x256xf32>
    %138 = arith.addf %136, %137 : vector<24x256xf32>
    %cst_71 = arith.constant dense<0.000000e+00> : vector<24xf32>
    %139 = vector.multi_reduction <add>, %138, %cst_71 [1] : vector<24x256xf32> to vector<24xf32>
    %140 = vector.shape_cast %139 : vector<24xf32> to vector<24x1xf32>
    %cst_72 = arith.constant 2.560000e+02 : f32
    %141 = vector.broadcast %cst_72 : f32 to vector<24x1xf32>
    %142 = arith.divf %140, %141 : vector<24x1xf32>
    %143 = vector.broadcast %142 : vector<24x1xf32> to vector<24x256xf32>
    %144 = arith.subf %138, %143 : vector<24x256xf32>
    %145 = arith.mulf %144, %144 : vector<24x256xf32>
    %cst_73 = arith.constant dense<0.000000e+00> : vector<24xf32>
    %146 = vector.multi_reduction <add>, %145, %cst_73 [1] : vector<24x256xf32> to vector<24xf32>
    %147 = vector.shape_cast %146 : vector<24xf32> to vector<24x1xf32>
    %cst_74 = arith.constant 2.560000e+02 : f32
    %148 = vector.broadcast %cst_74 : f32 to vector<24x1xf32>
    %149 = arith.divf %147, %148 : vector<24x1xf32>
    %cst_75 = arith.constant 9.99999974E-6 : f32
    %150 = vector.broadcast %cst_75 : f32 to vector<24x1xf32>
    %151 = arith.addf %149, %150 : vector<24x1xf32>
    %152 = math.rsqrt %151 : vector<24x1xf32>
    %153 = vector.broadcast %152 : vector<24x1xf32> to vector<24x256xf32>
    %154 = arith.mulf %144, %153 : vector<24x256xf32>
    %155 = vector.broadcast %88 : vector<1x256xf32> to vector<24x256xf32>
    %156 = arith.mulf %154, %155 : vector<24x256xf32>
    %157 = vector.broadcast %89 : vector<1x256xf32> to vector<24x256xf32>
    %158 = arith.addf %156, %157 : vector<24x256xf32>
    %159 = arith.truncf %158 : vector<24x256xf32> to vector<24x256xbf16>
    %c0_76 = arith.constant 0 : index
    %c0_77 = arith.constant 0 : index
    %160 = vector.load %arg6[%c0_76, %c0_77] : memref<256x128xbf16, #tpu.memory_space<vmem>>, vector<256x128xbf16>
    %cst_78 = arith.constant dense<0.000000e+00> : vector<24x128xf32>
    %161 = tpu.matmul %159, %160, %cst_78 {dimension_numbers = #tpu.dot_dimension_numbers<[1], [0], [0], [1], [0, 0, 1, 1], [], []>} : vector<24x256xbf16>, vector<256x128xbf16>, vector<24x128xf32> -> vector<24x128xf32>
    %c0_79 = arith.constant 0 : index
    %c0_80 = arith.constant 0 : index
    %162 = vector.load %arg9[%c0_79, %c0_80] : memref<3x128xf32, #tpu.memory_space<vmem>>, vector<1x128xf32>
    %163 = vector.broadcast %162 : vector<1x128xf32> to vector<24x128xf32>
    %164 = arith.addf %161, %163 : vector<24x128xf32>
    %c1_81 = arith.constant 1 : index
    %c0_82 = arith.constant 0 : index
    %165 = vector.load %arg9[%c1_81, %c0_82] : memref<3x128xf32, #tpu.memory_space<vmem>>, vector<1x128xf32>
    %c2_83 = arith.constant 2 : index
    %c0_84 = arith.constant 0 : index
    %166 = vector.load %arg9[%c2_83, %c0_84] : memref<3x128xf32, #tpu.memory_space<vmem>>, vector<1x128xf32>
    %cst_85 = arith.constant dense<0.000000e+00> : vector<24xf32>
    %167 = vector.multi_reduction <add>, %164, %cst_85 [1] : vector<24x128xf32> to vector<24xf32>
    %168 = vector.shape_cast %167 : vector<24xf32> to vector<24x1xf32>
    %cst_86 = arith.constant 1.280000e+02 : f32
    %169 = vector.broadcast %cst_86 : f32 to vector<24x1xf32>
    %170 = arith.divf %168, %169 : vector<24x1xf32>
    %171 = vector.broadcast %170 : vector<24x1xf32> to vector<24x128xf32>
    %172 = arith.subf %164, %171 : vector<24x128xf32>
    %173 = arith.mulf %172, %172 : vector<24x128xf32>
    %cst_87 = arith.constant dense<0.000000e+00> : vector<24xf32>
    %174 = vector.multi_reduction <add>, %173, %cst_87 [1] : vector<24x128xf32> to vector<24xf32>
    %175 = vector.shape_cast %174 : vector<24xf32> to vector<24x1xf32>
    %cst_88 = arith.constant 1.280000e+02 : f32
    %176 = vector.broadcast %cst_88 : f32 to vector<24x1xf32>
    %177 = arith.divf %175, %176 : vector<24x1xf32>
    %cst_89 = arith.constant 9.99999974E-6 : f32
    %178 = vector.broadcast %cst_89 : f32 to vector<24x1xf32>
    %179 = arith.addf %177, %178 : vector<24x1xf32>
    %180 = math.rsqrt %179 : vector<24x1xf32>
    %181 = vector.broadcast %180 : vector<24x1xf32> to vector<24x128xf32>
    %182 = arith.mulf %172, %181 : vector<24x128xf32>
    %183 = vector.broadcast %165 : vector<1x128xf32> to vector<24x128xf32>
    %184 = arith.mulf %182, %183 : vector<24x128xf32>
    %185 = vector.broadcast %166 : vector<1x128xf32> to vector<24x128xf32>
    %186 = arith.addf %184, %185 : vector<24x128xf32>
    %187 = arith.mulf %186, %186 : vector<24x128xf32>
    %cst_90 = arith.constant dense<0.000000e+00> : vector<24xf32>
    %188 = vector.multi_reduction <add>, %187, %cst_90 [1] : vector<24x128xf32> to vector<24xf32>
    %189 = vector.shape_cast %188 : vector<24xf32> to vector<24x1xf32>
    %cst_91 = arith.constant 1.000000e-24 : f32
    %190 = vector.broadcast %cst_91 : f32 to vector<24x1xf32>
    %191 = arith.maximumf %189, %190 : vector<24x1xf32>
    %192 = math.rsqrt %191 : vector<24x1xf32>
    %193 = vector.broadcast %192 : vector<24x1xf32> to vector<24x128xf32>
    %194 = arith.mulf %186, %193 : vector<24x128xf32>
    %c0_92 = arith.constant 0 : index
    %c0_93 = arith.constant 0 : index
    %195 = vector.load %arg10[%c0_92, %c0_93] : memref<24x128xf32, #tpu.memory_space<vmem>>, vector<24x128xf32>
    tpu.vector_store %arg10[%c0_92, %c0_93], %194 {strides = array<i32>} : memref<24x128xf32, #tpu.memory_space<vmem>>, vector<24x128xf32>,
    return
  }
  func.func @transform_0(%arg0: i32) -> (i32, i32) {
    %c0_i32 = arith.constant 0 : i32
    %c0_i32_0 = arith.constant 0 : i32
    return %arg0, %c0_i32 : i32, i32
  }
  func.func @transform_1(%arg0: i32) -> (i32, i32) {
    %c0_i32 = arith.constant 0 : i32
    %c0_i32_0 = arith.constant 0 : i32
    %c0_i32_1 = arith.constant 0 : i32
    return %c0_i32, %c0_i32_0 : i32, i32
  }
  func.func @transform_2(%arg0: i32) -> (i32, i32, i32) {
    %c0_i32 = arith.constant 0 : i32
    %c0_i32_0 = arith.constant 0 : i32
    %c0_i32_1 = arith.constant 0 : i32
    %c0_i32_2 = arith.constant 0 : i32
    return %c0_i32, %c0_i32_0, %c0_i32_1 : i32, i32, i32
  }
  func.func @transform_3(%arg0: i32) -> (i32, i32, i32) {
    %c0_i32 = arith.constant 0 : i32
    %c0_i32_0 = arith.constant 0 : i32
    %c0_i32_1 = arith.constant 0 : i32
    %c0_i32_2 = arith.constant 0 : i32
    return %c0_i32, %c0_i32_0, %c0_i32_1 : i32, i32, i32
  }
  func.func @transform_4(%arg0: i32) -> (i32, i32, i32) {
    %c0_i32 = arith.constant 0 : i32
    %c0_i32_0 = arith.constant 0 : i32
    %c0_i32_1 = arith.constant 0 : i32
    %c0_i32_2 = arith.constant 0 : i32
    return %c0_i32, %c0_i32_0, %c0_i32_1 : i32, i32, i32
  }
  func.func @transform_5(%arg0: i32) -> (i32, i32) {
    %c0_i32 = arith.constant 0 : i32
    %c0_i32_0 = arith.constant 0 : i32
    %c0_i32_1 = arith.constant 0 : i32
    return %c0_i32, %c0_i32_0 : i32, i32
  }
  func.func @transform_6(%arg0: i32) -> (i32, i32) {
    %c0_i32 = arith.constant 0 : i32
    %c0_i32_0 = arith.constant 0 : i32
    %c0_i32_1 = arith.constant 0 : i32
    return %c0_i32, %c0_i32_0 : i32, i32
  }
  func.func @transform_7(%arg0: i32) -> (i32, i32) {
    %c0_i32 = arith.constant 0 : i32
    %c0_i32_0 = arith.constant 0 : i32
    %c0_i32_1 = arith.constant 0 : i32
    return %c0_i32, %c0_i32_0 : i32, i32
  }
  func.func @transform_8(%arg0: i32) -> (i32, i32) {
    %c0_i32 = arith.constant 0 : i32
    %c0_i32_0 = arith.constant 0 : i32
    %c0_i32_1 = arith.constant 0 : i32
    return %c0_i32, %c0_i32_0 : i32, i32
  }
  func.func @transform_9(%arg0: i32) -> (i32, i32) {
    %c0_i32 = arith.constant 0 : i32
    %c0_i32_0 = arith.constant 0 : i32
    return %arg0, %c0_i32 : i32, i32
  }
}

</mosaic_0001>

<llo_original>
// kernel: siamese_forward.1
$region0: #{siamese_forward.1}
  #allocation0 [shape = 'u32[]', space=smem, size = 0x4, offset = 0x4, fixed_abs, tag = 'smem constant byte address 0x4 - core index']
  #allocation1 [shape = 'u32[144,128]{1,0:T(1,128)}', space=vmem, size = 0x12000, scoped, tag = 'internal scratch']
  %s0 = inlined_call_operand.vmem [shape: f32[24,112], index: 0, kind: input, shape index: {}]
  %s1 = inlined_call_operand.hbm [shape: bf16[112,256], index: 1, kind: input, shape index: {}]
  %s2 = inlined_call_operand.hbm [shape: bf16[2,256,512], index: 2, kind: input, shape index: {}]
  %s3 = inlined_call_operand.hbm [shape: bf16[2,256,1024], index: 3, kind: input, shape index: {}]
  %s4 = inlined_call_operand.hbm [shape: bf16[2,1024,256], index: 4, kind: input, shape index: {}]
  %s5 = inlined_call_operand.hbm [shape: bf16[256,128], index: 5, kind: input, shape index: {}]
  %s6 = inlined_call_operand.vmem [shape: f32[15,256], index: 6, kind: input, shape index: {}]
  %s7 = inlined_call_operand.vmem [shape: f32[2,1024], index: 7, kind: input, shape index: {}]
  %s8 = inlined_call_operand.hbm [shape: f32[3,128], index: 8, kind: input, shape index: {}]
  %s9 = inlined_call_operand.vmem [shape: f32[24,128], index: 9, kind: output, shape index: {}]
  %s10 = sld [smem:[#allocation0]]
  $region70: #{siamese_forward.1} parent=0
    _
  %s12 = ssub.s32 1, %s10
  %s13 = scalar_select 0, %s12, %s10
  $region1: #{siamese_forward.1} parent=0
    #allocation2 [shape = 'u8[57344]{0}', space=vmem, size = 0xe000, scoped, tag = 'input window, operand 1, single buffered']
    #allocation3 [shape = 's32[1]{0}', space=sflag, size = 0x4, scoped, tag = 'scoped memory for siamese_forward.1']
    #allocation4 [shape = 'u8[524288]{0}', space=vmem, size = 0x80000, scoped, tag = 'input window, operand 2, single buffered']
    #allocation5 [shape = 's32[1]{0}', space=sflag, size = 0x4, scoped, tag = 'scoped memory for siamese_forward.1']
    #allocation6 [shape = 'u8[1048576]{0}', space=vmem, size = 0x100000, scoped, tag = 'input window, operand 3, single buffered']
    #allocation7 [shape = 'u8[1048576]{0}', space=vmem, size = 0x100000, scoped, tag = 'input window, operand 4, single buffered']
    #allocation8 [shape = 's32[1]{0}', space=sflag, size = 0x4, scoped, tag = 'scoped memory for siamese_forward.1']
    #allocation9 [shape = 'u8[65536]{0}', space=vmem, size = 0x10000, scoped, tag = 'input window, operand 5, single buffered']
    #allocation10 [shape = 'u8[2048]{0}', space=vmem, size = 0x800, scoped, tag = 'input window, operand 8, single buffered']
    #allocation11 [shape = 's32[1]{0}', space=sflag, size = 0x4, scoped, tag = 'scoped memory for siamese_forward.1']
    %14 = vsyncpa [#allocation3], 0
    %15 = vsyncpa [#allocation5], 0
    %16 = vsyncpa [#allocation8], 0
    %17 = vsyncpa [#allocation11], 0
    // Predicated region
    $region2: #{siamese_forward.1} parent=1 // pred_check
      _
    $region3: #{siamese_forward.1} parent=1 // pred_check_branch
      %19 = sbr.rel (0) target = $region5
    $region4: #{siamese_forward.1} parent=1 // pred_region
      _
    $region5: #{siamese_forward.1} parent=1 // pred_fallthru
      _
    // Predicated region
    $region6: #{siamese_forward.1} parent=1 // pred_check
      _
    $region7: #{siamese_forward.1} parent=1 // pred_check_branch
      %21 = sbr.rel (0) target = $region9
    $region8: #{siamese_forward.1} parent=1 // pred_region
      %s23 = ssub.s32 1792, 1792
      %24 = vsyncadd [#allocation3], %s23
      %s25 = sshll.u32 [#allocation2], 4
      %s26 = int_to_ptr.vmem [resolvable:$true] %s25
      %31 = dma.hbm_to_vmem [thread:$0]  %s1, 1792, %s26, [#allocation3], 128, 128, 8
    $region9: #{siamese_forward.1} parent=1 // pred_fallthru
      _
    // Predicated region
    $region10: #{siamese_forward.1} parent=1 // pred_check
      _
    $region11: #{siamese_forward.1} parent=1 // pred_check_branch
      %33 = sbr.rel (0) target = $region13
    $region12: #{siamese_forward.1} parent=1 // pred_region
      %s35 = ssub.s32 16384, 16384
      %36 = vsyncadd [#allocation5], %s35
      %s37 = sshll.u32 [#allocation4], 4
      %s38 = int_to_ptr.vmem [resolvable:$true] %s37
      %43 = dma.hbm_to_vmem [thread:$0]  %s2, 16384, %s38, [#allocation5], 256, 256, 16
    $region13: #{siamese_forward.1} parent=1 // pred_fallthru
      _
    // Predicated region
    $region14: #{siamese_forward.1} parent=1 // pred_check
      _
    $region15: #{siamese_forward.1} parent=1 // pred_check_branch
      %45 = sbr.rel (0) target = $region17
    $region16: #{siamese_forward.1} parent=1 // pred_region
      %s47 = ssub.s32 32768, 32768
      %48 = vsyncadd [#allocation5], %s47
      %s49 = sshll.u32 [#allocation6], 4
      %s50 = int_to_ptr.vmem [resolvable:$true] %s49
      %55 = dma.hbm_to_vmem [thread:$0]  %s3, 32768, %s50, [#allocation5], 512, 512, 32
    $region17: #{siamese_forward.1} parent=1 // pred_fallthru
      _
    // Predicated region
    $region18: #{siamese_forward.1} parent=1 // pred_check
      _
    $region19: #{siamese_forward.1} parent=1 // pred_check_branch
      %57 = sbr.rel (0) target = $region21
    $region20: #{siamese_forward.1} parent=1 // pred_region
      %s59 = ssub.s32 32768, 32768
      %60 = vsyncadd [#allocation8], %s59
      %s61 = sshll.u32 [#allocation7], 4
      %s62 = int_to_ptr.vmem [resolvable:$true] %s61
      %67 = dma.hbm_to_vmem [thread:$0]  %s4, 32768, %s62, [#allocation8], 128, 128, 8
    $region21: #{siamese_forward.1} parent=1 // pred_fallthru
      _
    // Predicated region
    $region22: #{siamese_forward.1} parent=1 // pred_check
      _
    $region23: #{siamese_forward.1} parent=1 // pred_check_branch
      %69 = sbr.rel (0) target = $region25
    $region24: #{siamese_forward.1} parent=1 // pred_region
      %s71 = ssub.s32 2048, 2048
      %72 = vsyncadd [#allocation8], %s71
      %s73 = sshll.u32 [#allocation9], 4
      %s74 = int_to_ptr.vmem [resolvable:$true] %s73
      %79 = dma.hbm_to_vmem [thread:$0]  %s5, 2048, %s74, [#allocation8], 64, 64, 4
    $region25: #{siamese_forward.1} parent=1 // pred_fallthru
      _
    // Predicated region
    $region26: #{siamese_forward.1} parent=1 // pred_check
      _
    $region27: #{siamese_forward.1} parent=1 // pred_check_branch
      %81 = sbr.rel (0) target = $region29
    $region28: #{siamese_forward.1} parent=1 // pred_region
      _
    $region29: #{siamese_forward.1} parent=1 // pred_fallthru
      _
    // Predicated region
    $region30: #{siamese_forward.1} parent=1 // pred_check
      _
    $region31: #{siamese_forward.1} parent=1 // pred_check_branch
      %83 = sbr.rel (0) target = $region33
    $region32: #{siamese_forward.1} parent=1 // pred_region
      _
    $region33: #{siamese_forward.1} parent=1 // pred_fallthru
      _
    // Predicated region
    $region34: #{siamese_forward.1} parent=1 // pred_check
      _
    $region35: #{siamese_forward.1} parent=1 // pred_check_branch
      %85 = sbr.rel (0) target = $region37
    $region36: #{siamese_forward.1} parent=1 // pred_region
      %s87 = ssub.s32 64, 64
      %88 = vsyncadd [#allocation11], %s87
      %s90 = sshll.u32 [#allocation10], 4
      %s91 = int_to_ptr.vmem [resolvable:$true] %s90
      %93 = dma.hbm_to_vmem [thread:$0]  %s8, 64, %s91, [#allocation11]
    $region37: #{siamese_forward.1} parent=1 // pred_fallthru
      _
    // Predicated region
    $region38: #{siamese_forward.1} parent=1 // pred_check
      _
    $region39: #{siamese_forward.1} parent=1 // pred_check_branch
      %95 = sbr.rel (0) target = $region41
    $region40: #{siamese_forward.1} parent=1 // pred_region
      %96 = dma.done [#allocation3], 1792
    $region41: #{siamese_forward.1} parent=1 // pred_fallthru
      _
    // Predicated region
    $region42: #{siamese_forward.1} parent=1 // pred_check
      _
    $region43: #{siamese_forward.1} parent=1 // pred_check_branch
      %98 = sbr.rel (0) target = $region45
    $region44: #{siamese_forward.1} parent=1 // pred_region
      %99 = dma.done [#allocation5], 16384
    $region45: #{siamese_forward.1} parent=1 // pred_fallthru
      _
    // Predicated region
    $region46: #{siamese_forward.1} parent=1 // pred_check
      _
    $region47: #{siamese_forward.1} parent=1 // pred_check_branch
      %101 = sbr.rel (0) target = $region49
    $region48: #{siamese_forward.1} parent=1 // pred_region
      %102 = dma.done [#allocation5], 32768
    $region49: #{siamese_forward.1} parent=1 // pred_fallthru
      _
    // Predicated region
    $region50: #{siamese_forward.1} parent=1 // pred_check
      _
    $region51: #{siamese_forward.1} parent=1 // pred_check_branch
      %104 = sbr.rel (0) target = $region53
    $region52: #{siamese_forward.1} parent=1 // pred_region
      %105 = dma.done [#allocation8], 32768
    $region53: #{siamese_forward.1} parent=1 // pred_fallthru
      _
    // Predicated region
    $region54: #{siamese_forward.1} parent=1 // pred_check
      _
    $region55: #{siamese_forward.1} parent=1 // pred_check_branch
      %107 = sbr.rel (0) target = $region57
    $region56: #{siamese_forward.1} parent=1 // pred_region
      %108 = dma.done [#allocation8], 2048
    $region57: #{siamese_forward.1} parent=1 // pred_fallthru
      _
    // Predicated region
    $region58: #{siamese_forward.1} parent=1 // pred_check
      _
    $region59: #{siamese_forward.1} parent=1 // pred_check_branch
      %110 = sbr.rel (0) target = $region61
    $region60: #{siamese_forward.1} parent=1 // pred_region
      %111 = dma.done [#allocation11], 64
    $region61: #{siamese_forward.1} parent=1 // pred_fallthru
      _
    %v113 = vld [vmem:[%s0] sm:$0xff]
    %v114 = vld [vmem:[%s0 + $0x8] sm:$0xff]
    %v115 = vld [vmem:[%s0 + $0x10] sm:$0xff]
    %v116 = vpack.c.bf16 %v114, %v113
    %v117 = vpack.c.bf16 %v115, %v115
    %v118 = vld [vmem:[#allocation2] sm:$0xff]
    %v119 = vld [vmem:[#allocation2 + $0x8] sm:$0xff]
    %v120 = vld [vmem:[#allocation2 + $0x10] sm:$0xff]
    %v121 = vld [vmem:[#allocation2 + $0x18] sm:$0xff]
    %v122 = vld [vmem:[#allocation2 + $0x20] sm:$0xff]
    %v123 = vld [vmem:[#allocation2 + $0x28] sm:$0xff]
    %v124 = vld [vmem:[#allocation2 + $0x30] sm:$0xff]
    %v125 = vld [vmem:[#allocation2 + $0x38] sm:$0xff]
    %v126 = vld [vmem:[#allocation2 + $0x40] sm:$0xff]
    %v127 = vld [vmem:[#allocation2 + $0x48] sm:$0xff]
    %v128 = vld [vmem:[#allocation2 + $0x50] sm:$0xff]
    %v129 = vld [vmem:[#allocation2 + $0x58] sm:$0xff]
    %v130 = vld [vmem:[#allocation2 + $0x60] sm:$0xff]
    %v131 = vld [vmem:[#allocation2 + $0x68] sm:$0xff]
    %v132 = vld [vmem:[%s6] ss:$8 sm:$0x3]
    %v134 = vlaneseq
    %v135 = vshrl.u32 %v134, 7
    %v136 = vsub.s32 0, %v135
    %v137 = vrot.slane %v132, %v136
    %v138 = vlaneseq
    %v139 = vshrl.u32 %v138, 7
    %v140 = vsub.s32 1, %v139
    %v141 = vrot.slane %v132, %v140
    %v158 = vunpack.c.l.b16 %v118
    %v159 = vunpack.c.h.b16 %v118
    %v160 = vunpack.c.l.b16 %v119
    %v161 = vunpack.c.h.b16 %v119
    %v162 = vunpack.c.l.b16 %v120
    %v163 = vunpack.c.h.b16 %v120
    %v164 = vunpack.c.l.b16 %v121
    %v165 = vunpack.c.h.b16 %v121
    %v166 = vunpack.c.l.b16 %v122
    %v167 = vunpack.c.h.b16 %v122
    %v168 = vunpack.c.l.b16 %v123
    %v169 = vunpack.c.h.b16 %v123
    %v170 = vunpack.c.l.b16 %v124
    %v171 = vunpack.c.h.b16 %v124
    %v172 = vunpack.c.l.b16 %v125
    %v173 = vunpack.c.h.b16 %v125
    %v174 = vunpack.c.l.b16 %v126
    %v175 = vunpack.c.h.b16 %v126
    %v176 = vunpack.c.l.b16 %v127
    %v177 = vunpack.c.h.b16 %v127
    %v178 = vunpack.c.l.b16 %v128
    %v179 = vunpack.c.h.b16 %v128
    %v180 = vunpack.c.l.b16 %v129
    %v181 = vunpack.c.h.b16 %v129
    %v182 = vunpack.c.l.b16 %v130
    %v183 = vunpack.c.h.b16 %v130
    %v184 = vunpack.c.l.b16 %v131
    %v185 = vunpack.c.h.b16 %v131
    %v186 = vpack.c.b16 %v160, %v158
    %v187 = vpack.c.b16 %v161, %v159
    %v188 = vpack.c.b16 %v164, %v162
    %v189 = vpack.c.b16 %v165, %v163
    %v190 = vpack.c.b16 %v168, %v166
    %v191 = vpack.c.b16 %v169, %v167
    %v192 = vpack.c.b16 %v172, %v170
    %v193 = vpack.c.b16 %v173, %v171
    %v194 = vpack.c.b16 %v176, %v174
    %v195 = vpack.c.b16 %v177, %v175
    %v196 = vpack.c.b16 %v180, %v178
    %v197 = vpack.c.b16 %v181, %v179
    %v198 = vpack.c.b16 %v184, %v182
    %v199 = vpack.c.b16 %v185, %v183
    %vm214 = vcmask 916480
    %v216 = vsel %vm214, %v116, 0
    %v219 = vsel %vm214, %v117, 0
    %221 = vmatprep.subr.bf16.mxu0 %v187
    %222 = vmatpush1.bf16.msra.mxu0 %v186
    %223 = vmatprep.subr.bf16.mxu0 %v189
    %224 = vmatpush1.bf16.msra.mxu0 %v188
    %225 = vmatprep.subr.bf16.mxu0 %v191
    %226 = vmatpush1.bf16.msra.mxu0 %v190
    %227 = vmatprep.subr.bf16.mxu0 %v193
    %228 = vmatpush1.bf16.msra.mxu0 %v192
    %229 = vmatprep.subr.bf16.mxu0 %v195
    %230 = vmatpush1.bf16.msra.mxu0 %v194
    %231 = vmatprep.subr.bf16.mxu0 %v197
    %232 = vmatpush1.bf16.msra.mxu0 %v196
    %233 = vmatprep.subr.bf16.mxu0 %v199
    %234 = vmatpush1.bf16.msra.mxu0 %v198
    %235 = vmatprep.subr.bf16.mxu0 0
    %236 = vmatpush1.bf16.msra.mxu0 0
    %237 = vmatprep.subr.bf16.mxu0 0
    %238 = vmatpush1.bf16.msra.mxu0 0
    %239 = vmatprep.subr.bf16.mxu0 0
    %240 = vmatpush1.bf16.msra.mxu0 0
    %241 = vmatprep.subr.bf16.mxu0 0
    %242 = vmatpush1.bf16.msra.mxu0 0
    %243 = vmatprep.subr.bf16.mxu0 0
    %244 = vmatpush1.bf16.msra.mxu0 0
    %245 = vmatprep.subr.bf16.mxu0 0
    %246 = vmatpush1.bf16.msra.mxu0 0
    %247 = vmatprep.subr.bf16.mxu0 0
    %248 = vmatpush1.bf16.msra.mxu0 0
    %249 = vmatprep.subr.bf16.mxu0 0
    %250 = vmatpush1.bf16.msra.mxu0 0
    %251 = vmatprep.subr.bf16.mxu0 0
    %252 = vmatpush1.bf16.msra.mxu0 0
    %253 = vmatprep.mubr.bf16.mxu0 0
    %254 = vmatmul.mubr.bf16.gmra.mrb[0].mxu0 %v216
    %v255 = vpop.f32.mrb[0].mxu0
    %v256 = vadd.f32 %v137, %v255
    %v257 = vpop.f32.mrb[0].mxu0
    %v258 = vadd.f32 %v141, %v257
    %v259 = vpop.f32.mrb[0].mxu0
    %v260 = vadd.f32 %v137, %v259
    %v261 = vpop.f32.mrb[0].mxu0
    %v262 = vadd.f32 %v141, %v261
    %263 = vmatprep.mubr.bf16.mxu0 0
    %264 = vmatmul.mubr.bf16.gmra.mrb[0].mxu0 %v219
    %v265 = vpop.f32.mrb[0].mxu0
    %v266 = vadd.f32 %v137, %v265
    %v267 = vpop.f32.mrb[0].mxu0
    %v268 = vadd.f32 %v141, %v267
    %v269 = vpop.f32.mrb[0].mxu0
    %v270 = vpop.f32.mrb[0].mxu0
    %271 = vdwg.mxu0
    %s272 = scalar_lea.vmem %s6, 1
    %v273 = vld [vmem:[%s272] ss:$8 sm:$0x3]
    %s274 = scalar_lea.vmem %s6, 2
    %v275 = vld [vmem:[%s274] ss:$8 sm:$0x3]
    %s276 = scalar_lea.vmem %s6, 3
    %v277 = vld [vmem:[%s276] ss:$8 sm:$0x3]
    %s278 = scalar_lea.vmem %s6, 4
    %v279 = vld [vmem:[%s278] ss:$8 sm:$0x3]
    %s280 = scalar_lea.vmem %s6, 5
    %v281 = vld [vmem:[%s280] ss:$8 sm:$0x3]
    %s282 = scalar_lea.vmem %s6, 6
    %v283 = vld [vmem:[%s282] ss:$8 sm:$0x3]
    %s284 = scalar_lea.vmem %s6, 7
    %v285 = vld [vmem:[%s284] ss:$8 sm:$0x3]
    %v286 = vld [vmem:[%s7] ss:$2 sm:$0xff]
    %v287 = vpack.c.bf16 %v260, %v256
    %v288 = vpack.c.bf16 %v262, %v258
    %v289 = vpack.c.bf16 %v266, %v266
    %v290 = vpack.c.bf16 %v268, %v268
    %v291 = vld [vmem:[#allocation4] sm:$0xff]
    %v292 = vld [vmem:[#allocation4 + $0x10] sm:$0xff]
    %v293 = vld [vmem:[#allocation4 + $0x20] sm:$0xff]
    %v294 = vld [vmem:[#allocation4 + $0x30] sm:$0xff]
    %v295 = vld [vmem:[#allocation4 + $0x40] sm:$0xff]
    %v296 = vld [vmem:[#allocation4 + $0x50] sm:$0xff]
    %v297 = vld [vmem:[#allocation4 + $0x60] sm:$0xff]
    %v298 = vld [vmem:[#allocation4 + $0x70] sm:$0xff]
    %v299 = vld [vmem:[#allocation4 + $0x80] sm:$0xff]
    %v300 = vld [vmem:[#allocation4 + $0x90] sm:$0xff]
    %v301 = vld [vmem:[#allocation4 + $0xa0] sm:$0xff]
    %v302 = vld [vmem:[#allocation4 + $0xb0] sm:$0xff]
    %v303 = vld [vmem:[#allocation4 + $0xc0] sm:$0xff]
    %v304 = vld [vmem:[#allocation4 + $0xd0] sm:$0xff]
    %v305 = vld [vmem:[#allocation4 + $0xe0] sm:$0xff]
    %v306 = vld [vmem:[#allocation4 + $0xf0] sm:$0xff]
    %v307 = vld [vmem:[#allocation4 + $0x100] sm:$0xff]
    %v308 = vld [vmem:[#allocation4 + $0x110] sm:$0xff]
    %v309 = vld [vmem:[#allocation4 + $0x120] sm:$0xff]
    %v310 = vld [vmem:[#allocation4 + $0x130] sm:$0xff]
    %v311 = vld [vmem:[#allocation4 + $0x140] sm:$0xff]
    %v312 = vld [vmem:[#allocation4 + $0x150] sm:$0xff]
    %v313 = vld [vmem:[#allocation4 + $0x160] sm:$0xff]
    %v314 = vld [vmem:[#allocation4 + $0x170] sm:$0xff]
    %v315 = vld [vmem:[#allocation4 + $0x180] sm:$0xff]
    %v316 = vld [vmem:[#allocation4 + $0x190] sm:$0xff]
    %v317 = vld [vmem:[#allocation4 + $0x1a0] sm:$0xff]
    %v318 = vld [vmem:[#allocation4 + $0x1b0] sm:$0xff]
    %v319 = vld [vmem:[#allocation4 + $0x1c0] sm:$0xff]
    %v320 = vld [vmem:[#allocation4 + $0x1d0] sm:$0xff]
    %v321 = vld [vmem:[#allocation4 + $0x1e0] sm:$0xff]
    %v322 = vld [vmem:[#allocation4 + $0x1f0] sm:$0xff]
    %v324 = vlaneseq
    %v325 = vshrl.u32 %v324, 7
    %v326 = vsub.s32 0, %v325
    %v327 = vrot.slane %v273, %v326
    %v328 = vlaneseq
    %v329 = vshrl.u32 %v328, 7
    %v330 = vsub.s32 1, %v329
    %v331 = vrot.slane %v273, %v330
    %v366 = vunpack.c.l.b16 %v291
    %v367 = vunpack.c.h.b16 %v291
    %v368 = vunpack.c.l.b16 %v292
    %v369 = vunpack.c.h.b16 %v292
    %v370 = vunpack.c.l.b16 %v293
    %v371 = vunpack.c.h.b16 %v293
    %v372 = vunpack.c.l.b16 %v294
    %v373 = vunpack.c.h.b16 %v294
    %v374 = vunpack.c.l.b16 %v295
    %v375 = vunpack.c.h.b16 %v295
    %v376 = vunpack.c.l.b16 %v296
    %v377 = vunpack.c.h.b16 %v296
    %v378 = vunpack.c.l.b16 %v297
    %v379 = vunpack.c.h.b16 %v297
    %v380 = vunpack.c.l.b16 %v298
    %v381 = vunpack.c.h.b16 %v298
    %v382 = vunpack.c.l.b16 %v299
    %v383 = vunpack.c.h.b16 %v299
    %v384 = vunpack.c.l.b16 %v300
    %v385 = vunpack.c.h.b16 %v300
    %v386 = vunpack.c.l.b16 %v301
    %v387 = vunpack.c.h.b16 %v301
    %v388 = vunpack.c.l.b16 %v302
    %v389 = vunpack.c.h.b16 %v302
    %v390 = vunpack.c.l.b16 %v303
    %v391 = vunpack.c.h.b16 %v303
    %v392 = vunpack.c.l.b16 %v304
    %v393 = vunpack.c.h.b16 %v304
    %v394 = vunpack.c.l.b16 %v305
    %v395 = vunpack.c.h.b16 %v305
    %v396 = vunpack.c.l.b16 %v306
    %v397 = vunpack.c.h.b16 %v306
    %v398 = vunpack.c.l.b16 %v307
    %v399 = vunpack.c.h.b16 %v307
    %v400 = vunpack.c.l.b16 %v308
    %v401 = vunpack.c.h.b16 %v308
    %v402 = vunpack.c.l.b16 %v309
    %v403 = vunpack.c.h.b16 %v309
    %v404 = vunpack.c.l.b16 %v310
    %v405 = vunpack.c.h.b16 %v310
    %v406 = vunpack.c.l.b16 %v311
    %v407 = vunpack.c.h.b16 %v311
    %v408 = vunpack.c.l.b16 %v312
    %v409 = vunpack.c.h.b16 %v312
    %v410 = vunpack.c.l.b16 %v313
    %v411 = vunpack.c.h.b16 %v313
    %v412 = vunpack.c.l.b16 %v314
    %v413 = vunpack.c.h.b16 %v314
    %v414 = vunpack.c.l.b16 %v315
    %v415 = vunpack.c.h.b16 %v315
    %v416 = vunpack.c.l.b16 %v316
    %v417 = vunpack.c.h.b16 %v316
    %v418 = vunpack.c.l.b16 %v317
    %v419 = vunpack.c.h.b16 %v317
    %v420 = vunpack.c.l.b16 %v318
    %v421 = vunpack.c.h.b16 %v318
    %v422 = vunpack.c.l.b16 %v319
    %v423 = vunpack.c.h.b16 %v319
    %v424 = vunpack.c.l.b16 %v320
    %v425 = vunpack.c.h.b16 %v320
    %v426 = vunpack.c.l.b16 %v321
    %v427 = vunpack.c.h.b16 %v321
    %v428 = vunpack.c.l.b16 %v322
    %v429 = vunpack.c.h.b16 %v322
    %v430 = vpack.c.b16 %v368, %v366
    %v431 = vpack.c.b16 %v369, %v367
    %v432 = vpack.c.b16 %v372, %v370
    %v433 = vpack.c.b16 %v373, %v371
    %v434 = vpack.c.b16 %v376, %v374
    %v435 = vpack.c.b16 %v377, %v375
    %v436 = vpack.c.b16 %v380, %v378
    %v437 = vpack.c.b16 %v381, %v379
    %v438 = vpack.c.b16 %v384, %v382
    %v439 = vpack.c.b16 %v385, %v383
    %v440 = vpack.c.b16 %v388, %v386
    %v441 = vpack.c.b16 %v389, %v387
    %v442 = vpack.c.b16 %v392, %v390
    %v443 = vpack.c.b16 %v393, %v391
    %v444 = vpack.c.b16 %v396, %v394
    %v445 = vpack.c.b16 %v397, %v395
    %v446 = vpack.c.b16 %v400, %v398
    %v447 = vpack.c.b16 %v401, %v399
    %v448 = vpack.c.b16 %v404, %v402
    %v449 = vpack.c.b16 %v405, %v403
    %v450 = vpack.c.b16 %v408, %v406
    %v451 = vpack.c.b16 %v409, %v407
    %v452 = vpack.c.b16 %v412, %v410
    %v453 = vpack.c.b16 %v413, %v411
    %v454 = vpack.c.b16 %v416, %v414
    %v455 = vpack.c.b16 %v417, %v415
    %v456 = vpack.c.b16 %v420, %v418
    %v457 = vpack.c.b16 %v421, %v419
    %v458 = vpack.c.b16 %v424, %v422
    %v459 = vpack.c.b16 %v425, %v423
    %v460 = vpack.c.b16 %v428, %v426
    %v461 = vpack.c.b16 %v429, %v427
    %494 = vmatprep.subr.bf16.mxu0 %v431
    %495 = vmatpush1.bf16.msra.mxu0 %v430
    %496 = vmatprep.subr.bf16.mxu0 %v433
    %497 = vmatpush1.bf16.msra.mxu0 %v432
    %498 = vmatprep.subr.bf16.mxu0 %v435
    %499 = vmatpush1.bf16.msra.mxu0 %v434
    %500 = vmatprep.subr.bf16.mxu0 %v437
    %501 = vmatpush1.bf16.msra.mxu0 %v436
    %502 = vmatprep.subr.bf16.mxu0 %v439
    %503 = vmatpush1.bf16.msra.mxu0 %v438
    %504 = vmatprep.subr.bf16.mxu0 %v441
    %505 = vmatpush1.bf16.msra.mxu0 %v440
    %506 = vmatprep.subr.bf16.mxu0 %v443
    %507 = vmatpush1.bf16.msra.mxu0 %v442
    %508 = vmatprep.subr.bf16.mxu0 %v445
    %509 = vmatpush1.bf16.msra.mxu0 %v444
    %510 = vmatprep.subr.bf16.mxu0 %v447
    %511 = vmatpush1.bf16.msra.mxu0 %v446
    %512 = vmatprep.subr.bf16.mxu0 %v449
    %513 = vmatpush1.bf16.msra.mxu0 %v448
    %514 = vmatprep.subr.bf16.mxu0 %v451
    %515 = vmatpush1.bf16.msra.mxu0 %v450
    %516 = vmatprep.subr.bf16.mxu0 %v453
    %517 = vmatpush1.bf16.msra.mxu0 %v452
    %518 = vmatprep.subr.bf16.mxu0 %v455
    %519 = vmatpush1.bf16.msra.mxu0 %v454
    %520 = vmatprep.subr.bf16.mxu0 %v457
    %521 = vmatpush1.bf16.msra.mxu0 %v456
    %522 = vmatprep.subr.bf16.mxu0 %v459
    %523 = vmatpush1.bf16.msra.mxu0 %v458
    %524 = vmatprep.subr.bf16.mxu0 %v461
    %525 = vmatpush1.bf16.msra.mxu0 %v460
    %526 = vmatprep.mubr.bf16.mxu0 %v288
    %527 = vmatmul.mubr.bf16.gmra.mrb[0].mxu0 %v287
    %v528 = vpop.f32.mrb[0].mxu0
    %v529 = vadd.f32 %v327, %v528
    %v530 = vpop.f32.mrb[0].mxu0
    %v531 = vadd.f32 %v331, %v530
    %v532 = vpop.f32.mrb[0].mxu0
    %v533 = vadd.f32 %v327, %v532
    %v534 = vpop.f32.mrb[0].mxu0
    %v535 = vadd.f32 %v331, %v534
    %536 = vmatprep.mubr.bf16.mxu0 %v290
    %537 = vmatmul.mubr.bf16.gmra.mrb[0].mxu0 %v289
    %v538 = vpop.f32.mrb[0].mxu0
    %v539 = vadd.f32 %v327, %v538
    %v540 = vpop.f32.mrb[0].mxu0
    %v541 = vadd.f32 %v331, %v540
    %v542 = vpop.f32.mrb[0].mxu0
    %v543 = vpop.f32.mrb[0].mxu0
    %544 = vdwg.mxu0
    %v545 = vpack.c.bf16 %v533, %v529
    %v546 = vpack.c.bf16 %v535, %v531
    %v547 = vpack.c.bf16 %v539, %v539
    %v548 = vpack.c.bf16 %v541, %v541
    %v549 = vld [vmem:[#allocation4 + $0x8] sm:$0xff]
    %v550 = vld [vmem:[#allocation4 + $0x18] sm:$0xff]
    %v551 = vld [vmem:[#allocation4 + $0x28] sm:$0xff]
    %v552 = vld [vmem:[#allocation4 + $0x38] sm:$0xff]
    %v553 = vld [vmem:[#allocation4 + $0x48] sm:$0xff]
    %v554 = vld [vmem:[#allocation4 + $0x58] sm:$0xff]
    %v555 = vld [vmem:[#allocation4 + $0x68] sm:$0xff]
    %v556 = vld [vmem:[#allocation4 + $0x78] sm:$0xff]
    %v557 = vld [vmem:[#allocation4 + $0x88] sm:$0xff]
    %v558 = vld [vmem:[#allocation4 + $0x98] sm:$0xff]
    %v559 = vld [vmem:[#allocation4 + $0xa8] sm:$0xff]
    %v560 = vld [vmem:[#allocation4 + $0xb8] sm:$0xff]
    %v561 = vld [vmem:[#allocation4 + $0xc8] sm:$0xff]
    %v562 = vld [vmem:[#allocation4 + $0xd8] sm:$0xff]
    %v563 = vld [vmem:[#allocation4 + $0xe8] sm:$0xff]
    %v564 = vld [vmem:[#allocation4 + $0xf8] sm:$0xff]
    %v565 = vld [vmem:[#allocation4 + $0x108] sm:$0xff]
    %v566 = vld [vmem:[#allocation4 + $0x118] sm:$0xff]
    %v567 = vld [vmem:[#allocation4 + $0x128] sm:$0xff]
    %v568 = vld [vmem:[#allocation4 + $0x138] sm:$0xff]
    %v569 = vld [vmem:[#allocation4 + $0x148] sm:$0xff]
    %v570 = vld [vmem:[#allocation4 + $0x158] sm:$0xff]
    %v571 = vld [vmem:[#allocation4 + $0x168] sm:$0xff]
    %v572 = vld [vmem:[#allocation4 + $0x178] sm:$0xff]
    %v573 = vld [vmem:[#allocation4 + $0x188] sm:$0xff]
    %v574 = vld [vmem:[#allocation4 + $0x198] sm:$0xff]
    %v575 = vld [vmem:[#allocation4 + $0x1a8] sm:$0xff]
    %v576 = vld [vmem:[#allocation4 + $0x1b8] sm:$0xff]
    %v577 = vld [vmem:[#allocation4 + $0x1c8] sm:$0xff]
    %v578 = vld [vmem:[#allocation4 + $0x1d8] sm:$0xff]
    %v579 = vld [vmem:[#allocation4 + $0x1e8] sm:$0xff]
    %v580 = vld [vmem:[#allocation4 + $0x1f8] sm:$0xff]
    %v582 = vlaneseq
    %v583 = vshrl.u32 %v582, 7
    %v584 = vsub.s32 0, %v583
    %v585 = vrot.slane %v275, %v584
    %v586 = vlaneseq
    %v587 = vshrl.u32 %v586, 7
    %v588 = vsub.s32 1, %v587
    %v589 = vrot.slane %v275, %v588
    %v624 = vunpack.c.l.b16 %v549
    %v625 = vunpack.c.h.b16 %v549
    %v626 = vunpack.c.l.b16 %v550
    %v627 = vunpack.c.h.b16 %v550
    %v628 = vunpack.c.l.b16 %v551
    %v629 = vunpack.c.h.b16 %v551
    %v630 = vunpack.c.l.b16 %v552
    %v631 = vunpack.c.h.b16 %v552
    %v632 = vunpack.c.l.b16 %v553
    %v633 = vunpack.c.h.b16 %v553
    %v634 = vunpack.c.l.b16 %v554
    %v635 = vunpack.c.h.b16 %v554
    %v636 = vunpack.c.l.b16 %v555
    %v637 = vunpack.c.h.b16 %v555
    %v638 = vunpack.c.l.b16 %v556
    %v639 = vunpack.c.h.b16 %v556
    %v640 = vunpack.c.l.b16 %v557
    %v641 = vunpack.c.h.b16 %v557
    %v642 = vunpack.c.l.b16 %v558
    %v643 = vunpack.c.h.b16 %v558
    %v644 = vunpack.c.l.b16 %v559
    %v645 = vunpack.c.h.b16 %v559
    %v646 = vunpack.c.l.b16 %v560
    %v647 = vunpack.c.h.b16 %v560
    %v648 = vunpack.c.l.b16 %v561
    %v649 = vunpack.c.h.b16 %v561
    %v650 = vunpack.c.l.b16 %v562
    %v651 = vunpack.c.h.b16 %v562
    %v652 = vunpack.c.l.b16 %v563
    %v653 = vunpack.c.h.b16 %v563
    %v654 = vunpack.c.l.b16 %v564
    %v655 = vunpack.c.h.b16 %v564
    %v656 = vunpack.c.l.b16 %v565
    %v657 = vunpack.c.h.b16 %v565
    %v658 = vunpack.c.l.b16 %v566
    %v659 = vunpack.c.h.b16 %v566
    %v660 = vunpack.c.l.b16 %v567
    %v661 = vunpack.c.h.b16 %v567
    %v662 = vunpack.c.l.b16 %v568
    %v663 = vunpack.c.h.b16 %v568
    %v664 = vunpack.c.l.b16 %v569
    %v665 = vunpack.c.h.b16 %v569
    %v666 = vunpack.c.l.b16 %v570
    %v667 = vunpack.c.h.b16 %v570
    %v668 = vunpack.c.l.b16 %v571
    %v669 = vunpack.c.h.b16 %v571
    %v670 = vunpack.c.l.b16 %v572
    %v671 = vunpack.c.h.b16 %v572
    %v672 = vunpack.c.l.b16 %v573
    %v673 = vunpack.c.h.b16 %v573
    %v674 = vunpack.c.l.b16 %v574
    %v675 = vunpack.c.h.b16 %v574
    %v676 = vunpack.c.l.b16 %v575
    %v677 = vunpack.c.h.b16 %v575
    %v678 = vunpack.c.l.b16 %v576
    %v679 = vunpack.c.h.b16 %v576
    %v680 = vunpack.c.l.b16 %v577
    %v681 = vunpack.c.h.b16 %v577
    %v682 = vunpack.c.l.b16 %v578
    %v683 = vunpack.c.h.b16 %v578
    %v684 = vunpack.c.l.b16 %v579
    %v685 = vunpack.c.h.b16 %v579
    %v686 = vunpack.c.l.b16 %v580
    %v687 = vunpack.c.h.b16 %v580
    %v688 = vpack.c.b16 %v626, %v624
    %v689 = vpack.c.b16 %v627, %v625
    %v690 = vpack.c.b16 %v630, %v628
    %v691 = vpack.c.b16 %v631, %v629
    %v692 = vpack.c.b16 %v634, %v632
    %v693 = vpack.c.b16 %v635, %v633
    %v694 = vpack.c.b16 %v638, %v636
    %v695 = vpack.c.b16 %v639, %v637
    %v696 = vpack.c.b16 %v642, %v640
    %v697 = vpack.c.b16 %v643, %v641
    %v698 = vpack.c.b16 %v646, %v644
    %v699 = vpack.c.b16 %v647, %v645
    %v700 = vpack.c.b16 %v650, %v648
    %v701 = vpack.c.b16 %v651, %v649
    %v702 = vpack.c.b16 %v654, %v652
    %v703 = vpack.c.b16 %v655, %v653
    %v704 = vpack.c.b16 %v658, %v656
    %v705 = vpack.c.b16 %v659, %v657
    %v706 = vpack.c.b16 %v662, %v660
    %v707 = vpack.c.b16 %v663, %v661
    %v708 = vpack.c.b16 %v666, %v664
    %v709 = vpack.c.b16 %v667, %v665
    %v710 = vpack.c.b16 %v670, %v668
    %v711 = vpack.c.b16 %v671, %v669
    %v712 = vpack.c.b16 %v674, %v672
    %v713 = vpack.c.b16 %v675, %v673
    %v714 = vpack.c.b16 %v678, %v676
    %v715 = vpack.c.b16 %v679, %v677
    %v716 = vpack.c.b16 %v682, %v680
    %v717 = vpack.c.b16 %v683, %v681
    %v718 = vpack.c.b16 %v686, %v684
    %v719 = vpack.c.b16 %v687, %v685
    %752 = vmatprep.subr.bf16.mxu0 %v689
    %753 = vmatpush1.bf16.msra.mxu0 %v688
    %754 = vmatprep.subr.bf16.mxu0 %v691
    %755 = vmatpush1.bf16.msra.mxu0 %v690
    %756 = vmatprep.subr.bf16.mxu0 %v693
    %757 = vmatpush1.bf16.msra.mxu0 %v692
    %758 = vmatprep.subr.bf16.mxu0 %v695
    %759 = vmatpush1.bf16.msra.mxu0 %v694
    %760 = vmatprep.subr.bf16.mxu0 %v697
    %761 = vmatpush1.bf16.msra.mxu0 %v696
    %762 = vmatprep.subr.bf16.mxu0 %v699
    %763 = vmatpush1.bf16.msra.mxu0 %v698
    %764 = vmatprep.subr.bf16.mxu0 %v701
    %765 = vmatpush1.bf16.msra.mxu0 %v700
    %766 = vmatprep.subr.bf16.mxu0 %v703
    %767 = vmatpush1.bf16.msra.mxu0 %v702
    %768 = vmatprep.subr.bf16.mxu0 %v705
    %769 = vmatpush1.bf16.msra.mxu0 %v704
    %770 = vmatprep.subr.bf16.mxu0 %v707
    %771 = vmatpush1.bf16.msra.mxu0 %v706
    %772 = vmatprep.subr.bf16.mxu0 %v709
    %773 = vmatpush1.bf16.msra.mxu0 %v708
    %774 = vmatprep.subr.bf16.mxu0 %v711
    %775 = vmatpush1.bf16.msra.mxu0 %v710
    %776 = vmatprep.subr.bf16.mxu0 %v713
    %777 = vmatpush1.bf16.msra.mxu0 %v712
    %778 = vmatprep.subr.bf16.mxu0 %v715
    %779 = vmatpush1.bf16.msra.mxu0 %v714
    %780 = vmatprep.subr.bf16.mxu0 %v717
    %781 = vmatpush1.bf16.msra.mxu0 %v716
    %782 = vmatprep.subr.bf16.mxu0 %v719
    %783 = vmatpush1.bf16.msra.mxu0 %v718
    %784 = vmatprep.mubr.bf16.mxu0 %v546
    %785 = vmatmul.mubr.bf16.gmra.mrb[0].mxu0 %v545
    %v786 = vpop.f32.mrb[0].mxu0
    %v787 = vadd.f32 %v585, %v786
    %v788 = vpop.f32.mrb[0].mxu0
    %v789 = vadd.f32 %v589, %v788
    %v790 = vpop.f32.mrb[0].mxu0
    %v791 = vadd.f32 %v585, %v790
    %v792 = vpop.f32.mrb[0].mxu0
    %v793 = vadd.f32 %v589, %v792
    %794 = vmatprep.mubr.bf16.mxu0 %v548
    %795 = vmatmul.mubr.bf16.gmra.mrb[0].mxu0 %v547
    %v796 = vpop.f32.mrb[0].mxu0
    %v797 = vadd.f32 %v585, %v796
    %v798 = vpop.f32.mrb[0].mxu0
    %v799 = vadd.f32 %v589, %v798
    %v800 = vpop.f32.mrb[0].mxu0
    %v801 = vpop.f32.mrb[0].mxu0
    %802 = vdwg.mxu0
    %v803 = vadd.f32 %v256, %v787
    %v804 = vadd.f32 %v258, %v789
    %v805 = vadd.f32 %v260, %v791
    %v806 = vadd.f32 %v262, %v793
    %v807 = vadd.f32 %v266, %v797
    %v808 = vadd.f32 %v268, %v799
    %v809 = vadd.f32 %v803, %v804
    %810 = vadd.xlane.f32.xlu0 %v809
    %v811 = vpop.xlane.xlu0 %810
    %v812 = vadd.f32 %v805, %v806
    %813 = vadd.xlane.f32.xlu0 %v812
    %v814 = vpop.xlane.xlu0 %813
    %v815 = vadd.f32 %v807, %v808
    %816 = vadd.xlane.f32.xlu0 %v815
    %v817 = vpop.xlane.xlu0 %816
    %v818 = vrcp.pop 256.0
    %v819 = vmul.f32 %v811, %v818
    %v820 = vmul.f32 %v814, %v818
    %v821 = vmul.f32 %v817, %v818
    %v822 = vsub.f32 %v803, %v819
    %v823 = vsub.f32 %v804, %v819
    %v824 = vsub.f32 %v805, %v820
    %v825 = vsub.f32 %v806, %v820
    %v826 = vsub.f32 %v807, %v821
    %v827 = vsub.f32 %v808, %v821
    %v828 = vmul.f32 %v822, %v822
    %v829 = vmul.f32 %v823, %v823
    %v830 = vmul.f32 %v824, %v824
    %v831 = vmul.f32 %v825, %v825
    %v832 = vmul.f32 %v826, %v826
    %v833 = vmul.f32 %v827, %v827
    %v834 = vadd.f32 %v828, %v829
    %835 = vadd.xlane.f32.xlu0 %v834
    %v836 = vpop.xlane.xlu0 %835
    %v837 = vadd.f32 %v830, %v831
    %838 = vadd.xlane.f32.xlu0 %v837
    %v839 = vpop.xlane.xlu0 %838
    %v840 = vadd.f32 %v832, %v833
    %841 = vadd.xlane.f32.xlu0 %v840
    %v842 = vpop.xlane.xlu0 %841
    %v843 = vmul.f32 %v836, %v818
    %v844 = vmul.f32 %v839, %v818
    %v845 = vmul.f32 %v842, %v818
    %v846 = vadd.f32 %v843, 1e-05
    %v847 = vadd.f32 %v844, 1e-05
    %v848 = vadd.f32 %v845, 1e-05
    %v849 = vrsqrt.pop %v846
    %v850 = vrsqrt.pop %v847
    %v851 = vrsqrt.pop %v848
    %v852 = vmul.f32 %v822, %v849
    %v853 = vmul.f32 %v823, %v849
    %v854 = vmul.f32 %v824, %v850
    %v855 = vmul.f32 %v825, %v850
    %v856 = vmul.f32 %v826, %v851
    %v857 = vmul.f32 %v827, %v851
    %v859 = vlaneseq
    %v860 = vshrl.u32 %v859, 7
    %v861 = vsub.s32 0, %v860
    %v862 = vrot.slane %v279, %v861
    %v863 = vlaneseq
    %v864 = vshrl.u32 %v863, 7
    %v865 = vsub.s32 1, %v864
    %v866 = vrot.slane %v279, %v865
    %v869 = vmul.f32 %v852, %v862
    %v870 = vmul.f32 %v853, %v866
    %v871 = vmul.f32 %v854, %v862
    %v872 = vmul.f32 %v855, %v866
    %v873 = vmul.f32 %v856, %v862
    %v874 = vmul.f32 %v857, %v866
    %v876 = vlaneseq
    %v877 = vshrl.u32 %v876, 7
    %v878 = vsub.s32 0, %v877
    %v879 = vrot.slane %v281, %v878
    %v880 = vlaneseq
    %v881 = vshrl.u32 %v880, 7
    %v882 = vsub.s32 1, %v881
    %v883 = vrot.slane %v281, %v882
    %v886 = vadd.f32 %v869, %v879
    %v887 = vadd.f32 %v870, %v883
    %v888 = vadd.f32 %v871, %v879
    %v889 = vadd.f32 %v872, %v883
    %v890 = vadd.f32 %v873, %v879
    %v891 = vadd.f32 %v874, %v883
    %v892 = vpack.c.bf16 %v888, %v886
    %v893 = vpack.c.bf16 %v889, %v887
    %v894 = vpack.c.bf16 %v890, %v890
    %v895 = vpack.c.bf16 %v891, %v891
    %v896 = vld [vmem:[#allocation6] sm:$0xff]
    %v897 = vld [vmem:[#allocation6 + $0x8] sm:$0xff]
    %v898 = vld [vmem:[#allocation6 + $0x10] sm:$0xff]
    %v899 = vld [vmem:[#allocation6 + $0x18] sm:$0xff]
    %v900 = vld [vmem:[#allocation6 + $0x20] sm:$0xff]
    %v901 = vld [vmem:[#allocation6 + $0x28] sm:$0xff]
    %v902 = vld [vmem:[#allocation6 + $0x30] sm:$0xff]
    %v903 = vld [vmem:[#allocation6 + $0x38] sm:$0xff]
    %v904 = vld [vmem:[#allocation6 + $0x40] sm:$0xff]
    %v905 = vld [vmem:[#allocation6 + $0x48] sm:$0xff]
    %v906 = vld [vmem:[#allocation6 + $0x50] sm:$0xff]
    %v907 = vld [vmem:[#allocation6 + $0x58] sm:$0xff]
    %v908 = vld [vmem:[#allocation6 + $0x60] sm:$0xff]
    %v909 = vld [vmem:[#allocation6 + $0x68] sm:$0xff]
    %v910 = vld [vmem:[#allocation6 + $0x70] sm:$0xff]
    %v911 = vld [vmem:[#allocation6 + $0x78] sm:$0xff]
    %v912 = vld [vmem:[#allocation6 + $0x80] sm:$0xff]
    %v913 = vld [vmem:[#allocation6 + $0x88] sm:$0xff]
    %v914 = vld [vmem:[#allocation6 + $0x90] sm:$0xff]
    %v915 = vld [vmem:[#allocation6 + $0x98] sm:$0xff]
    %v916 = vld [vmem:[#allocation6 + $0xa0] sm:$0xff]
    %v917 = vld [vmem:[#allocation6 + $0xa8] sm:$0xff]
    %v918 = vld [vmem:[#allocation6 + $0xb0] sm:$0xff]
    %v919 = vld [vmem:[#allocation6 + $0xb8] sm:$0xff]
    %v920 = vld [vmem:[#allocation6 + $0xc0] sm:$0xff]
    %v921 = vld [vmem:[#allocation6 + $0xc8] sm:$0xff]
    %v922 = vld [vmem:[#allocation6 + $0xd0] sm:$0xff]
    %v923 = vld [vmem:[#allocation6 + $0xd8] sm:$0xff]
    %v924 = vld [vmem:[#allocation6 + $0xe0] sm:$0xff]
    %v925 = vld [vmem:[#allocation6 + $0xe8] sm:$0xff]
    %v926 = vld [vmem:[#allocation6 + $0xf0] sm:$0xff]
    %v927 = vld [vmem:[#allocation6 + $0xf8] sm:$0xff]
    %v928 = vld [vmem:[#allocation6 + $0x100] sm:$0xff]
    %v929 = vld [vmem:[#allocation6 + $0x108] sm:$0xff]
    %v930 = vld [vmem:[#allocation6 + $0x110] sm:$0xff]
    %v931 = vld [vmem:[#allocation6 + $0x118] sm:$0xff]
    %v932 = vld [vmem:[#allocation6 + $0x120] sm:$0xff]
    %v933 = vld [vmem:[#allocation6 + $0x128] sm:$0xff]
    %v934 = vld [vmem:[#allocation6 + $0x130] sm:$0xff]
    %v935 = vld [vmem:[#allocation6 + $0x138] sm:$0xff]
    %v936 = vld [vmem:[#allocation6 + $0x140] sm:$0xff]
    %v937 = vld [vmem:[#allocation6 + $0x148] sm:$0xff]
    %v938 = vld [vmem:[#allocation6 + $0x150] sm:$0xff]
    %v939 = vld [vmem:[#allocation6 + $0x158] sm:$0xff]
    %v940 = vld [vmem:[#allocation6 + $0x160] sm:$0xff]
    %v941 = vld [vmem:[#allocation6 + $0x168] sm:$0xff]
    %v942 = vld [vmem:[#allocation6 + $0x170] sm:$0xff]
    %v943 = vld [vmem:[#allocation6 + $0x178] sm:$0xff]
    %v944 = vld [vmem:[#allocation6 + $0x180] sm:$0xff]
    %v945 = vld [vmem:[#allocation6 + $0x188] sm:$0xff]
    %v946 = vld [vmem:[#allocation6 + $0x190] sm:$0xff]
    %v947 = vld [vmem:[#allocation6 + $0x198] sm:$0xff]
    %v948 = vld [vmem:[#allocation6 + $0x1a0] sm:$0xff]
    %v949 = vld [vmem:[#allocation6 + $0x1a8] sm:$0xff]
    %v950 = vld [vmem:[#allocation6 + $0x1b0] sm:$0xff]
    %v951 = vld [vmem:[#allocation6 + $0x1b8] sm:$0xff]
    %v952 = vld [vmem:[#allocation6 + $0x1c0] sm:$0xff]
    %v953 = vld [vmem:[#allocation6 + $0x1c8] sm:$0xff]
    %v954 = vld [vmem:[#allocation6 + $0x1d0] sm:$0xff]
    %v955 = vld [vmem:[#allocation6 + $0x1d8] sm:$0xff]
    %v956 = vld [vmem:[#allocation6 + $0x1e0] sm:$0xff]
    %v957 = vld [vmem:[#allocation6 + $0x1e8] sm:$0xff]
    %v958 = vld [vmem:[#allocation6 + $0x1f0] sm:$0xff]
    %v959 = vld [vmem:[#allocation6 + $0x1f8] sm:$0xff]
    %v960 = vld [vmem:[#allocation6 + $0x200] sm:$0xff]
    %v961 = vld [vmem:[#allocation6 + $0x208] sm:$0xff]
    %v962 = vld [vmem:[#allocation6 + $0x210] sm:$0xff]
    %v963 = vld [vmem:[#allocation6 + $0x218] sm:$0xff]
    %v964 = vld [vmem:[#allocation6 + $0x220] sm:$0xff]
    %v965 = vld [vmem:[#allocation6 + $0x228] sm:$0xff]
    %v966 = vld [vmem:[#allocation6 + $0x230] sm:$0xff]
    %v967 = vld [vmem:[#allocation6 + $0x238] sm:$0xff]
    %v968 = vld [vmem:[#allocation6 + $0x240] sm:$0xff]
    %v969 = vld [vmem:[#allocation6 + $0x248] sm:$0xff]
    %v970 = vld [vmem:[#allocation6 + $0x250] sm:$0xff]
    %v971 = vld [vmem:[#allocation6 + $0x258] sm:$0xff]
    %v972 = vld [vmem:[#allocation6 + $0x260] sm:$0xff]
    %v973 = vld [vmem:[#allocation6 + $0x268] sm:$0xff]
    %v974 = vld [vmem:[#allocation6 + $0x270] sm:$0xff]
    %v975 = vld [vmem:[#allocation6 + $0x278] sm:$0xff]
    %v976 = vld [vmem:[#allocation6 + $0x280] sm:$0xff]
    %v977 = vld [vmem:[#allocation6 + $0x288] sm:$0xff]
    %v978 = vld [vmem:[#allocation6 + $0x290] sm:$0xff]
    %v979 = vld [vmem:[#allocation6 + $0x298] sm:$0xff]
    %v980 = vld [vmem:[#allocation6 + $0x2a0] sm:$0xff]
    %v981 = vld [vmem:[#allocation6 + $0x2a8] sm:$0xff]
    %v982 = vld [vmem:[#allocation6 + $0x2b0] sm:$0xff]
    %v983 = vld [vmem:[#allocation6 + $0x2b8] sm:$0xff]
    %v984 = vld [vmem:[#allocation6 + $0x2c0] sm:$0xff]
    %v985 = vld [vmem:[#allocation6 + $0x2c8] sm:$0xff]
    %v986 = vld [vmem:[#allocation6 + $0x2d0] sm:$0xff]
    %v987 = vld [vmem:[#allocation6 + $0x2d8] sm:$0xff]
    %v988 = vld [vmem:[#allocation6 + $0x2e0] sm:$0xff]
    %v989 = vld [vmem:[#allocation6 + $0x2e8] sm:$0xff]
    %v990 = vld [vmem:[#allocation6 + $0x2f0] sm:$0xff]
    %v991 = vld [vmem:[#allocation6 + $0x2f8] sm:$0xff]
    %v992 = vld [vmem:[#allocation6 + $0x300] sm:$0xff]
    %v993 = vld [vmem:[#allocation6 + $0x308] sm:$0xff]
    %v994 = vld [vmem:[#allocation6 + $0x310] sm:$0xff]
    %v995 = vld [vmem:[#allocation6 + $0x318] sm:$0xff]
    %v996 = vld [vmem:[#allocation6 + $0x320] sm:$0xff]
    %v997 = vld [vmem:[#allocation6 + $0x328] sm:$0xff]
    %v998 = vld [vmem:[#allocation6 + $0x330] sm:$0xff]
    %v999 = vld [vmem:[#allocation6 + $0x338] sm:$0xff]
    %v1000 = vld [vmem:[#allocation6 + $0x340] sm:$0xff]
    %v1001 = vld [vmem:[#allocation6 + $0x348] sm:$0xff]
    %v1002 = vld [vmem:[#allocation6 + $0x350] sm:$0xff]
    %v1003 = vld [vmem:[#allocation6 + $0x358] sm:$0xff]
    %v1004 = vld [vmem:[#allocation6 + $0x360] sm:$0xff]
    %v1005 = vld [vmem:[#allocation6 + $0x368] sm:$0xff]
    %v1006 = vld [vmem:[#allocation6 + $0x370] sm:$0xff]
    %v1007 = vld [vmem:[#allocation6 + $0x378] sm:$0xff]
    %v1008 = vld [vmem:[#allocation6 + $0x380] sm:$0xff]
    %v1009 = vld [vmem:[#allocation6 + $0x388] sm:$0xff]
    %v1010 = vld [vmem:[#allocation6 + $0x390] sm:$0xff]
    %v1011 = vld [vmem:[#allocation6 + $0x398] sm:$0xff]
    %v1012 = vld [vmem:[#allocation6 + $0x3a0] sm:$0xff]
    %v1013 = vld [vmem:[#allocation6 + $0x3a8] sm:$0xff]
    %v1014 = vld [vmem:[#allocation6 + $0x3b0] sm:$0xff]
    %v1015 = vld [vmem:[#allocation6 + $0x3b8] sm:$0xff]
    %v1016 = vld [vmem:[#allocation6 + $0x3c0] sm:$0xff]
    %v1017 = vld [vmem:[#allocation6 + $0x3c8] sm:$0xff]
    %v1018 = vld [vmem:[#allocation6 + $0x3d0] sm:$0xff]
    %v1019 = vld [vmem:[#allocation6 + $0x3d8] sm:$0xff]
    %v1020 = vld [vmem:[#allocation6 + $0x3e0] sm:$0xff]
    %v1021 = vld [vmem:[#allocation6 + $0x3e8] sm:$0xff]
    %v1022 = vld [vmem:[#allocation6 + $0x3f0] sm:$0xff]
    %v1023 = vld [vmem:[#allocation6 + $0x3f8] sm:$0xff]
    %v1025 = vlaneseq
    %v1026 = vshrl.u32 %v1025, 7
    %v1027 = vsub.s32 0, %v1026
    %v1028 = vrot.slane %v286, %v1027
    %v1029 = vlaneseq
    %v1030 = vshrl.u32 %v1029, 7
    %v1031 = vsub.s32 1, %v1030
    %v1032 = vrot.slane %v286, %v1031
    %v1033 = vlaneseq
    %v1034 = vshrl.u32 %v1033, 7
    %v1035 = vsub.s32 2, %v1034
    %v1036 = vrot.slane %v286, %v1035
    %v1037 = vlaneseq
    %v1038 = vshrl.u32 %v1037, 7
    %v1039 = vsub.s32 3, %v1038
    %v1040 = vrot.slane %v286, %v1039
    %v1041 = vlaneseq
    %v1042 = vshrl.u32 %v1041, 7
    %v1043 = vsub.s32 4, %v1042
    %v1044 = vrot.slane %v286, %v1043
    %v1045 = vlaneseq
    %v1046 = vshrl.u32 %v1045, 7
    %v1047 = vsub.s32 5, %v1046
    %v1048 = vrot.slane %v286, %v1047
    %v1049 = vlaneseq
    %v1050 = vshrl.u32 %v1049, 7
    %v1051 = vsub.s32 6, %v1050
    %v1052 = vrot.slane %v286, %v1051
    %v1053 = vlaneseq
    %v1054 = vshrl.u32 %v1053, 7
    %v1055 = vsub.s32 7, %v1054
    %v1056 = vrot.slane %v286, %v1055
    %v1193 = vunpack.c.l.b16 %v896
    %v1194 = vunpack.c.h.b16 %v896
    %v1195 = vunpack.c.l.b16 %v897
    %v1196 = vunpack.c.h.b16 %v897
    %v1197 = vunpack.c.l.b16 %v898
    %v1198 = vunpack.c.h.b16 %v898
    %v1199 = vunpack.c.l.b16 %v899
    %v1200 = vunpack.c.h.b16 %v899
    %v1201 = vunpack.c.l.b16 %v900
    %v1202 = vunpack.c.h.b16 %v900
    %v1203 = vunpack.c.l.b16 %v901
    %v1204 = vunpack.c.h.b16 %v901
    %v1205 = vunpack.c.l.b16 %v902
    %v1206 = vunpack.c.h.b16 %v902
    %v1207 = vunpack.c.l.b16 %v903
    %v1208 = vunpack.c.h.b16 %v903
    %v1209 = vunpack.c.l.b16 %v904
    %v1210 = vunpack.c.h.b16 %v904
    %v1211 = vunpack.c.l.b16 %v905
    %v1212 = vunpack.c.h.b16 %v905
    %v1213 = vunpack.c.l.b16 %v906
    %v1214 = vunpack.c.h.b16 %v906
    %v1215 = vunpack.c.l.b16 %v907
    %v1216 = vunpack.c.h.b16 %v907
    %v1217 = vunpack.c.l.b16 %v908
    %v1218 = vunpack.c.h.b16 %v908
    %v1219 = vunpack.c.l.b16 %v909
    %v1220 = vunpack.c.h.b16 %v909
    %v1221 = vunpack.c.l.b16 %v910
    %v1222 = vunpack.c.h.b16 %v910
    %v1223 = vunpack.c.l.b16 %v911
    %v1224 = vunpack.c.h.b16 %v911
    %v1225 = vunpack.c.l.b16 %v912
    %v1226 = vunpack.c.h.b16 %v912
    %v1227 = vunpack.c.l.b16 %v913
    %v1228 = vunpack.c.h.b16 %v913
    %v1229 = vunpack.c.l.b16 %v914
    %v1230 = vunpack.c.h.b16 %v914
    %v1231 = vunpack.c.l.b16 %v915
    %v1232 = vunpack.c.h.b16 %v915
    %v1233 = vunpack.c.l.b16 %v916
    %v1234 = vunpack.c.h.b16 %v916
    %v1235 = vunpack.c.l.b16 %v917
    %v1236 = vunpack.c.h.b16 %v917
    %v1237 = vunpack.c.l.b16 %v918
    %v1238 = vunpack.c.h.b16 %v918
    %v1239 = vunpack.c.l.b16 %v919
    %v1240 = vunpack.c.h.b16 %v919
    %v1241 = vunpack.c.l.b16 %v920
    %v1242 = vunpack.c.h.b16 %v920
    %v1243 = vunpack.c.l.b16 %v921
    %v1244 = vunpack.c.h.b16 %v921
    %v1245 = vunpack.c.l.b16 %v922
    %v1246 = vunpack.c.h.b16 %v922
    %v1247 = vunpack.c.l.b16 %v923
    %v1248 = vunpack.c.h.b16 %v923
    %v1249 = vunpack.c.l.b16 %v924
    %v1250 = vunpack.c.h.b16 %v924
    %v1251 = vunpack.c.l.b16 %v925
    %v1252 = vunpack.c.h.b16 %v925
    %v1253 = vunpack.c.l.b16 %v926
    %v1254 = vunpack.c.h.b16 %v926
    %v1255 = vunpack.c.l.b16 %v927
    %v1256 = vunpack.c.h.b16 %v927
    %v1257 = vunpack.c.l.b16 %v928
    %v1258 = vunpack.c.h.b16 %v928
    %v1259 = vunpack.c.l.b16 %v929
    %v1260 = vunpack.c.h.b16 %v929
    %v1261 = vunpack.c.l.b16 %v930
    %v1262 = vunpack.c.h.b16 %v930
    %v1263 = vunpack.c.l.b16 %v931
    %v1264 = vunpack.c.h.b16 %v931
    %v1265 = vunpack.c.l.b16 %v932
    %v1266 = vunpack.c.h.b16 %v932
    %v1267 = vunpack.c.l.b16 %v933
    %v1268 = vunpack.c.h.b16 %v933
    %v1269 = vunpack.c.l.b16 %v934
    %v1270 = vunpack.c.h.b16 %v934
    %v1271 = vunpack.c.l.b16 %v935
    %v1272 = vunpack.c.h.b16 %v935
    %v1273 = vunpack.c.l.b16 %v936
    %v1274 = vunpack.c.h.b16 %v936
    %v1275 = vunpack.c.l.b16 %v937
    %v1276 = vunpack.c.h.b16 %v937
    %v1277 = vunpack.c.l.b16 %v938
    %v1278 = vunpack.c.h.b16 %v938
    %v1279 = vunpack.c.l.b16 %v939
    %v1280 = vunpack.c.h.b16 %v939
    %v1281 = vunpack.c.l.b16 %v940
    %v1282 = vunpack.c.h.b16 %v940
    %v1283 = vunpack.c.l.b16 %v941
    %v1284 = vunpack.c.h.b16 %v941
    %v1285 = vunpack.c.l.b16 %v942
    %v1286 = vunpack.c.h.b16 %v942
    %v1287 = vunpack.c.l.b16 %v943
    %v1288 = vunpack.c.h.b16 %v943
    %v1289 = vunpack.c.l.b16 %v944
    %v1290 = vunpack.c.h.b16 %v944
    %v1291 = vunpack.c.l.b16 %v945
    %v1292 = vunpack.c.h.b16 %v945
    %v1293 = vunpack.c.l.b16 %v946
    %v1294 = vunpack.c.h.b16 %v946
    %v1295 = vunpack.c.l.b16 %v947
    %v1296 = vunpack.c.h.b16 %v947
    %v1297 = vunpack.c.l.b16 %v948
    %v1298 = vunpack.c.h.b16 %v948
    %v1299 = vunpack.c.l.b16 %v949
    %v1300 = vunpack.c.h.b16 %v949
    %v1301 = vunpack.c.l.b16 %v950
    %v1302 = vunpack.c.h.b16 %v950
    %v1303 = vunpack.c.l.b16 %v951
    %v1304 = vunpack.c.h.b16 %v951
    %v1305 = vunpack.c.l.b16 %v952
    %v1306 = vunpack.c.h.b16 %v952
    %v1307 = vunpack.c.l.b16 %v953
    %v1308 = vunpack.c.h.b16 %v953
    %v1309 = vunpack.c.l.b16 %v954
    %v1310 = vunpack.c.h.b16 %v954
    %v1311 = vunpack.c.l.b16 %v955
    %v1312 = vunpack.c.h.b16 %v955
    %v1313 = vunpack.c.l.b16 %v956
    %v1314 = vunpack.c.h.b16 %v956
    %v1315 = vunpack.c.l.b16 %v957
    %v1316 = vunpack.c.h.b16 %v957
    %v1317 = vunpack.c.l.b16 %v958
    %v1318 = vunpack.c.h.b16 %v958
    %v1319 = vunpack.c.l.b16 %v959
    %v1320 = vunpack.c.h.b16 %v959
    %v1321 = vunpack.c.l.b16 %v960
    %v1322 = vunpack.c.h.b16 %v960
    %v1323 = vunpack.c.l.b16 %v961
    %v1324 = vunpack.c.h.b16 %v961
    %v1325 = vunpack.c.l.b16 %v962
    %v1326 = vunpack.c.h.b16 %v962
    %v1327 = vunpack.c.l.b16 %v963
    %v1328 = vunpack.c.h.b16 %v963
    %v1329 = vunpack.c.l.b16 %v964
    %v1330 = vunpack.c.h.b16 %v964
    %v1331 = vunpack.c.l.b16 %v965
    %v1332 = vunpack.c.h.b16 %v965
    %v1333 = vunpack.c.l.b16 %v966
    %v1334 = vunpack.c.h.b16 %v966
    %v1335 = vunpack.c.l.b16 %v967
    %v1336 = vunpack.c.h.b16 %v967
    %v1337 = vunpack.c.l.b16 %v968
    %v1338 = vunpack.c.h.b16 %v968
    %v1339 = vunpack.c.l.b16 %v969
    %v1340 = vunpack.c.h.b16 %v969
    %v1341 = vunpack.c.l.b16 %v970
    %v1342 = vunpack.c.h.b16 %v970
    %v1343 = vunpack.c.l.b16 %v971
    %v1344 = vunpack.c.h.b16 %v971
    %v1345 = vunpack.c.l.b16 %v972
    %v1346 = vunpack.c.h.b16 %v972
    %v1347 = vunpack.c.l.b16 %v973
    %v1348 = vunpack.c.h.b16 %v973
    %v1349 = vunpack.c.l.b16 %v974
    %v1350 = vunpack.c.h.b16 %v974
    %v1351 = vunpack.c.l.b16 %v975
    %v1352 = vunpack.c.h.b16 %v975
    %v1353 = vunpack.c.l.b16 %v976
    %v1354 = vunpack.c.h.b16 %v976
    %v1355 = vunpack.c.l.b16 %v977
    %v1356 = vunpack.c.h.b16 %v977
    %v1357 = vunpack.c.l.b16 %v978
    %v1358 = vunpack.c.h.b16 %v978
    %v1359 = vunpack.c.l.b16 %v979
    %v1360 = vunpack.c.h.b16 %v979
    %v1361 = vunpack.c.l.b16 %v980
    %v1362 = vunpack.c.h.b16 %v980
    %v1363 = vunpack.c.l.b16 %v981
    %v1364 = vunpack.c.h.b16 %v981
    %v1365 = vunpack.c.l.b16 %v982
    %v1366 = vunpack.c.h.b16 %v982
    %v1367 = vunpack.c.l.b16 %v983
    %v1368 = vunpack.c.h.b16 %v983
    %v1369 = vunpack.c.l.b16 %v984
    %v1370 = vunpack.c.h.b16 %v984
    %v1371 = vunpack.c.l.b16 %v985
    %v1372 = vunpack.c.h.b16 %v985
    %v1373 = vunpack.c.l.b16 %v986
    %v1374 = vunpack.c.h.b16 %v986
    %v1375 = vunpack.c.l.b16 %v987
    %v1376 = vunpack.c.h.b16 %v987
    %v1377 = vunpack.c.l.b16 %v988
    %v1378 = vunpack.c.h.b16 %v988
    %v1379 = vunpack.c.l.b16 %v989
    %v1380 = vunpack.c.h.b16 %v989
    %v1381 = vunpack.c.l.b16 %v990
    %v1382 = vunpack.c.h.b16 %v990
    %v1383 = vunpack.c.l.b16 %v991
    %v1384 = vunpack.c.h.b16 %v991
    %v1385 = vunpack.c.l.b16 %v992
    %v1386 = vunpack.c.h.b16 %v992
    %v1387 = vunpack.c.l.b16 %v993
    %v1388 = vunpack.c.h.b16 %v993
    %v1389 = vunpack.c.l.b16 %v994
    %v1390 = vunpack.c.h.b16 %v994
    %v1391 = vunpack.c.l.b16 %v995
    %v1392 = vunpack.c.h.b16 %v995
    %v1393 = vunpack.c.l.b16 %v996
    %v1394 = vunpack.c.h.b16 %v996
    %v1395 = vunpack.c.l.b16 %v997
    %v1396 = vunpack.c.h.b16 %v997
    %v1397 = vunpack.c.l.b16 %v998
    %v1398 = vunpack.c.h.b16 %v998
    %v1399 = vunpack.c.l.b16 %v999
    %v1400 = vunpack.c.h.b16 %v999
    %v1401 = vunpack.c.l.b16 %v1000
    %v1402 = vunpack.c.h.b16 %v1000
    %v1403 = vunpack.c.l.b16 %v1001
    %v1404 = vunpack.c.h.b16 %v1001
    %v1405 = vunpack.c.l.b16 %v1002
    %v1406 = vunpack.c.h.b16 %v1002
    %v1407 = vunpack.c.l.b16 %v1003
    %v1408 = vunpack.c.h.b16 %v1003
    %v1409 = vunpack.c.l.b16 %v1004
    %v1410 = vunpack.c.h.b16 %v1004
    %v1411 = vunpack.c.l.b16 %v1005
    %v1412 = vunpack.c.h.b16 %v1005
    %v1413 = vunpack.c.l.b16 %v1006
    %v1414 = vunpack.c.h.b16 %v1006
    %v1415 = vunpack.c.l.b16 %v1007
    %v1416 = vunpack.c.h.b16 %v1007
    %v1417 = vunpack.c.l.b16 %v1008
    %v1418 = vunpack.c.h.b16 %v1008
    %v1419 = vunpack.c.l.b16 %v1009
    %v1420 = vunpack.c.h.b16 %v1009
    %v1421 = vunpack.c.l.b16 %v1010
    %v1422 = vunpack.c.h.b16 %v1010
    %v1423 = vunpack.c.l.b16 %v1011
    %v1424 = vunpack.c.h.b16 %v1011
    %v1425 = vunpack.c.l.b16 %v1012
    %v1426 = vunpack.c.h.b16 %v1012
    %v1427 = vunpack.c.l.b16 %v1013
    %v1428 = vunpack.c.h.b16 %v1013
    %v1429 = vunpack.c.l.b16 %v1014
    %v1430 = vunpack.c.h.b16 %v1014
    %v1431 = vunpack.c.l.b16 %v1015
    %v1432 = vunpack.c.h.b16 %v1015
    %v1433 = vunpack.c.l.b16 %v1016
    %v1434 = vunpack.c.h.b16 %v1016
    %v1435 = vunpack.c.l.b16 %v1017
    %v1436 = vunpack.c.h.b16 %v1017
    %v1437 = vunpack.c.l.b16 %v1018
    %v1438 = vunpack.c.h.b16 %v1018
    %v1439 = vunpack.c.l.b16 %v1019
    %v1440 = vunpack.c.h.b16 %v1019
    %v1441 = vunpack.c.l.b16 %v1020
    %v1442 = vunpack.c.h.b16 %v1020
    %v1443 = vunpack.c.l.b16 %v1021
    %v1444 = vunpack.c.h.b16 %v1021
    %v1445 = vunpack.c.l.b16 %v1022
    %v1446 = vunpack.c.h.b16 %v1022
    %v1447 = vunpack.c.l.b16 %v1023
    %v1448 = vunpack.c.h.b16 %v1023
    %v1449 = vpack.c.b16 %v1201, %v1193
    %v1450 = vpack.c.b16 %v1202, %v1194
    %v1451 = vpack.c.b16 %v1203, %v1195
    %v1452 = vpack.c.b16 %v1204, %v1196
    %v1453 = vpack.c.b16 %v1205, %v1197
    %v1454 = vpack.c.b16 %v1206, %v1198
    %v1455 = vpack.c.b16 %v1207, %v1199
    %v1456 = vpack.c.b16 %v1208, %v1200
    %v1457 = vpack.c.b16 %v1217, %v1209
    %v1458 = vpack.c.b16 %v1218, %v1210
    %v1459 = vpack.c.b16 %v1219, %v1211
    %v1460 = vpack.c.b16 %v1220, %v1212
    %v1461 = vpack.c.b16 %v1221, %v1213
    %v1462 = vpack.c.b16 %v1222, %v1214
    %v1463 = vpack.c.b16 %v1223, %v1215
    %v1464 = vpack.c.b16 %v1224, %v1216
    %v1465 = vpack.c.b16 %v1233, %v1225
    %v1466 = vpack.c.b16 %v1234, %v1226
    %v1467 = vpack.c.b16 %v1235, %v1227
    %v1468 = vpack.c.b16 %v1236, %v1228
    %v1469 = vpack.c.b16 %v1237, %v1229
    %v1470 = vpack.c.b16 %v1238, %v1230
    %v1471 = vpack.c.b16 %v1239, %v1231
    %v1472 = vpack.c.b16 %v1240, %v1232
    %v1473 = vpack.c.b16 %v1249, %v1241
    %v1474 = vpack.c.b16 %v1250, %v1242
    %v1475 = vpack.c.b16 %v1251, %v1243
    %v1476 = vpack.c.b16 %v1252, %v1244
    %v1477 = vpack.c.b16 %v1253, %v1245
    %v1478 = vpack.c.b16 %v1254, %v1246
    %v1479 = vpack.c.b16 %v1255, %v1247
    %v1480 = vpack.c.b16 %v1256, %v1248
    %v1481 = vpack.c.b16 %v1265, %v1257
    %v1482 = vpack.c.b16 %v1266, %v1258
    %v1483 = vpack.c.b16 %v1267, %v1259
    %v1484 = vpack.c.b16 %v1268, %v1260
    %v1485 = vpack.c.b16 %v1269, %v1261
    %v1486 = vpack.c.b16 %v1270, %v1262
    %v1487 = vpack.c.b16 %v1271, %v1263
    %v1488 = vpack.c.b16 %v1272, %v1264
    %v1489 = vpack.c.b16 %v1281, %v1273
    %v1490 = vpack.c.b16 %v1282, %v1274
    %v1491 = vpack.c.b16 %v1283, %v1275
    %v1492 = vpack.c.b16 %v1284, %v1276
    %v1493 = vpack.c.b16 %v1285, %v1277
    %v1494 = vpack.c.b16 %v1286, %v1278
    %v1495 = vpack.c.b16 %v1287, %v1279
    %v1496 = vpack.c.b16 %v1288, %v1280
    %v1497 = vpack.c.b16 %v1297, %v1289
    %v1498 = vpack.c.b16 %v1298, %v1290
    %v1499 = vpack.c.b16 %v1299, %v1291
    %v1500 = vpack.c.b16 %v1300, %v1292
    %v1501 = vpack.c.b16 %v1301, %v1293
    %v1502 = vpack.c.b16 %v1302, %v1294
    %v1503 = vpack.c.b16 %v1303, %v1295
    %v1504 = vpack.c.b16 %v1304, %v1296
    %v1505 = vpack.c.b16 %v1313, %v1305
    %v1506 = vpack.c.b16 %v1314, %v1306
    %v1507 = vpack.c.b16 %v1315, %v1307
    %v1508 = vpack.c.b16 %v1316, %v1308
    %v1509 = vpack.c.b16 %v1317, %v1309
    %v1510 = vpack.c.b16 %v1318, %v1310
    %v1511 = vpack.c.b16 %v1319, %v1311
    %v1512 = vpack.c.b16 %v1320, %v1312
    %v1513 = vpack.c.b16 %v1329, %v1321
    %v1514 = vpack.c.b16 %v1330, %v1322
    %v1515 = vpack.c.b16 %v1331, %v1323
    %v1516 = vpack.c.b16 %v1332, %v1324
    %v1517 = vpack.c.b16 %v1333, %v1325
    %v1518 = vpack.c.b16 %v1334, %v1326
    %v1519 = vpack.c.b16 %v1335, %v1327
    %v1520 = vpack.c.b16 %v1336, %v1328
    %v1521 = vpack.c.b16 %v1345, %v1337
    %v1522 = vpack.c.b16 %v1346, %v1338
    %v1523 = vpack.c.b16 %v1347, %v1339
    %v1524 = vpack.c.b16 %v1348, %v1340
    %v1525 = vpack.c.b16 %v1349, %v1341
    %v1526 = vpack.c.b16 %v1350, %v1342
    %v1527 = vpack.c.b16 %v1351, %v1343
    %v1528 = vpack.c.b16 %v1352, %v1344
    %v1529 = vpack.c.b16 %v1361, %v1353
    %v1530 = vpack.c.b16 %v1362, %v1354
    %v1531 = vpack.c.b16 %v1363, %v1355
    %v1532 = vpack.c.b16 %v1364, %v1356
    %v1533 = vpack.c.b16 %v1365, %v1357
    %v1534 = vpack.c.b16 %v1366, %v1358
    %v1535 = vpack.c.b16 %v1367, %v1359
    %v1536 = vpack.c.b16 %v1368, %v1360
    %v1537 = vpack.c.b16 %v1377, %v1369
    %v1538 = vpack.c.b16 %v1378, %v1370
    %v1539 = vpack.c.b16 %v1379, %v1371
    %v1540 = vpack.c.b16 %v1380, %v1372
    %v1541 = vpack.c.b16 %v1381, %v1373
    %v1542 = vpack.c.b16 %v1382, %v1374
    %v1543 = vpack.c.b16 %v1383, %v1375
    %v1544 = vpack.c.b16 %v1384, %v1376
    %v1545 = vpack.c.b16 %v1393, %v1385
    %v1546 = vpack.c.b16 %v1394, %v1386
    %v1547 = vpack.c.b16 %v1395, %v1387
    %v1548 = vpack.c.b16 %v1396, %v1388
    %v1549 = vpack.c.b16 %v1397, %v1389
    %v1550 = vpack.c.b16 %v1398, %v1390
    %v1551 = vpack.c.b16 %v1399, %v1391
    %v1552 = vpack.c.b16 %v1400, %v1392
    %v1553 = vpack.c.b16 %v1409, %v1401
    %v1554 = vpack.c.b16 %v1410, %v1402
    %v1555 = vpack.c.b16 %v1411, %v1403
    %v1556 = vpack.c.b16 %v1412, %v1404
    %v1557 = vpack.c.b16 %v1413, %v1405
    %v1558 = vpack.c.b16 %v1414, %v1406
    %v1559 = vpack.c.b16 %v1415, %v1407
    %v1560 = vpack.c.b16 %v1416, %v1408
    %v1561 = vpack.c.b16 %v1425, %v1417
    %v1562 = vpack.c.b16 %v1426, %v1418
    %v1563 = vpack.c.b16 %v1427, %v1419
    %v1564 = vpack.c.b16 %v1428, %v1420
    %v1565 = vpack.c.b16 %v1429, %v1421
    %v1566 = vpack.c.b16 %v1430, %v1422
    %v1567 = vpack.c.b16 %v1431, %v1423
    %v1568 = vpack.c.b16 %v1432, %v1424
    %v1569 = vpack.c.b16 %v1441, %v1433
    %v1570 = vpack.c.b16 %v1442, %v1434
    %v1571 = vpack.c.b16 %v1443, %v1435
    %v1572 = vpack.c.b16 %v1444, %v1436
    %v1573 = vpack.c.b16 %v1445, %v1437
    %v1574 = vpack.c.b16 %v1446, %v1438
    %v1575 = vpack.c.b16 %v1447, %v1439
    %v1576 = vpack.c.b16 %v1448, %v1440
    %1705 = vmatprep.subr.bf16.mxu0 %v1450
    %1706 = vmatpush1.bf16.msra.mxu0 %v1449
    %1707 = vmatprep.subr.bf16.mxu0 %v1458
    %1708 = vmatpush1.bf16.msra.mxu0 %v1457
    %1709 = vmatprep.subr.bf16.mxu0 %v1466
    %1710 = vmatpush1.bf16.msra.mxu0 %v1465
    %1711 = vmatprep.subr.bf16.mxu0 %v1474
    %1712 = vmatpush1.bf16.msra.mxu0 %v1473
    %1713 = vmatprep.subr.bf16.mxu0 %v1482
    %1714 = vmatpush1.bf16.msra.mxu0 %v1481
    %1715 = vmatprep.subr.bf16.mxu0 %v1490
    %1716 = vmatpush1.bf16.msra.mxu0 %v1489
    %1717 = vmatprep.subr.bf16.mxu0 %v1498
    %1718 = vmatpush1.bf16.msra.mxu0 %v1497
    %1719 = vmatprep.subr.bf16.mxu0 %v1506
    %1720 = vmatpush1.bf16.msra.mxu0 %v1505
    %1721 = vmatprep.subr.bf16.mxu0 %v1514
    %1722 = vmatpush1.bf16.msra.mxu0 %v1513
    %1723 = vmatprep.subr.bf16.mxu0 %v1522
    %1724 = vmatpush1.bf16.msra.mxu0 %v1521
    %1725 = vmatprep.subr.bf16.mxu0 %v1530
    %1726 = vmatpush1.bf16.msra.mxu0 %v1529
    %1727 = vmatprep.subr.bf16.mxu0 %v1538
    %1728 = vmatpush1.bf16.msra.mxu0 %v1537
    %1729 = vmatprep.subr.bf16.mxu0 %v1546
    %1730 = vmatpush1.bf16.msra.mxu0 %v1545
    %1731 = vmatprep.subr.bf16.mxu0 %v1554
    %1732 = vmatpush1.bf16.msra.mxu0 %v1553
    %1733 = vmatprep.subr.bf16.mxu0 %v1562
    %1734 = vmatpush1.bf16.msra.mxu0 %v1561
    %1735 = vmatprep.subr.bf16.mxu0 %v1570
    %1736 = vmatpush1.bf16.msra.mxu0 %v1569
    %1737 = vmatprep.mubr.bf16.mxu0 %v893
    %1738 = vmatmul.mubr.bf16.gmra.mrb[0].mxu0 %v892
    %v1739 = vpop.f32.mrb[0].mxu0
    %v1740 = vadd.f32 %v1028, %v1739
    %v1741 = vpop.f32.mrb[0].mxu0
    %v1742 = vadd.f32 %v1032, %v1741
    %v1743 = vpop.f32.mrb[0].mxu0
    %v1744 = vadd.f32 %v1028, %v1743
    %v1745 = vpop.f32.mrb[0].mxu0
    %v1746 = vadd.f32 %v1032, %v1745
    %1747 = vmatprep.mubr.bf16.mxu0 %v895
    %1748 = vmatmul.mubr.bf16.gmra.mrb[0].mxu0 %v894
    %v1749 = vpop.f32.mrb[0].mxu0
    %v1750 = vadd.f32 %v1028, %v1749
    %v1751 = vpop.f32.mrb[0].mxu0
    %v1752 = vadd.f32 %v1032, %v1751
    %v1753 = vpop.f32.mrb[0].mxu0
    %v1754 = vpop.f32.mrb[0].mxu0
    %1755 = vdwg.mxu0
    %1756 = vmatprep.subr.bf16.mxu0 %v1452
    %1757 = vmatpush1.bf16.msra.mxu0 %v1451
    %1758 = vmatprep.subr.bf16.mxu0 %v1460
    %1759 = vmatpush1.bf16.msra.mxu0 %v1459
    %1760 = vmatprep.subr.bf16.mxu0 %v1468
    %1761 = vmatpush1.bf16.msra.mxu0 %v1467
    %1762 = vmatprep.subr.bf16.mxu0 %v1476
    %1763 = vmatpush1.bf16.msra.mxu0 %v1475
    %1764 = vmatprep.subr.bf16.mxu0 %v1484
    %1765 = vmatpush1.bf16.msra.mxu0 %v1483
    %1766 = vmatprep.subr.bf16.mxu0 %v1492
    %1767 = vmatpush1.bf16.msra.mxu0 %v1491
    %1768 = vmatprep.subr.bf16.mxu0 %v1500
    %1769 = vmatpush1.bf16.msra.mxu0 %v1499
    %1770 = vmatprep.subr.bf16.mxu0 %v1508
    %1771 = vmatpush1.bf16.msra.mxu0 %v1507
    %1772 = vmatprep.subr.bf16.mxu0 %v1516
    %1773 = vmatpush1.bf16.msra.mxu0 %v1515
    %1774 = vmatprep.subr.bf16.mxu0 %v1524
    %1775 = vmatpush1.bf16.msra.mxu0 %v1523
    %1776 = vmatprep.subr.bf16.mxu0 %v1532
    %1777 = vmatpush1.bf16.msra.mxu0 %v1531
    %1778 = vmatprep.subr.bf16.mxu0 %v1540
    %1779 = vmatpush1.bf16.msra.mxu0 %v1539
    %1780 = vmatprep.subr.bf16.mxu0 %v1548
    %1781 = vmatpush1.bf16.msra.mxu0 %v1547
    %1782 = vmatprep.subr.bf16.mxu0 %v1556
    %1783 = vmatpush1.bf16.msra.mxu0 %v1555
    %1784 = vmatprep.subr.bf16.mxu0 %v1564
    %1785 = vmatpush1.bf16.msra.mxu0 %v1563
    %1786 = vmatprep.subr.bf16.mxu0 %v1572
    %1787 = vmatpush1.bf16.msra.mxu0 %v1571
    %1788 = vmatprep.mubr.bf16.mxu0 %v893
    %1789 = vmatmul.mubr.bf16.gmra.mrb[0].mxu0 %v892
    %v1790 = vpop.f32.mrb[0].mxu0
    %v1791 = vadd.f32 %v1036, %v1790
    %v1792 = vpop.f32.mrb[0].mxu0
    %v1793 = vadd.f32 %v1040, %v1792
    %v1794 = vpop.f32.mrb[0].mxu0
    %v1795 = vadd.f32 %v1036, %v1794
    %v1796 = vpop.f32.mrb[0].mxu0
    %v1797 = vadd.f32 %v1040, %v1796
    %1798 = vmatprep.mubr.bf16.mxu0 %v895
    %1799 = vmatmul.mubr.bf16.gmra.mrb[0].mxu0 %v894
    %v1800 = vpop.f32.mrb[0].mxu0
    %v1801 = vadd.f32 %v1036, %v1800
    %v1802 = vpop.f32.mrb[0].mxu0
    %v1803 = vadd.f32 %v1040, %v1802
    %v1804 = vpop.f32.mrb[0].mxu0
    %v1805 = vpop.f32.mrb[0].mxu0
    %1806 = vdwg.mxu0
    %1807 = vmatprep.subr.bf16.mxu0 %v1454
    %1808 = vmatpush1.bf16.msra.mxu0 %v1453
    %1809 = vmatprep.subr.bf16.mxu0 %v1462
    %1810 = vmatpush1.bf16.msra.mxu0 %v1461
    %1811 = vmatprep.subr.bf16.mxu0 %v1470
    %1812 = vmatpush1.bf16.msra.mxu0 %v1469
    %1813 = vmatprep.subr.bf16.mxu0 %v1478
    %1814 = vmatpush1.bf16.msra.mxu0 %v1477
    %1815 = vmatprep.subr.bf16.mxu0 %v1486
    %1816 = vmatpush1.bf16.msra.mxu0 %v1485
    %1817 = vmatprep.subr.bf16.mxu0 %v1494
    %1818 = vmatpush1.bf16.msra.mxu0 %v1493
    %1819 = vmatprep.subr.bf16.mxu0 %v1502
    %1820 = vmatpush1.bf16.msra.mxu0 %v1501
    %1821 = vmatprep.subr.bf16.mxu0 %v1510
    %1822 = vmatpush1.bf16.msra.mxu0 %v1509
    %1823 = vmatprep.subr.bf16.mxu0 %v1518
    %1824 = vmatpush1.bf16.msra.mxu0 %v1517
    %1825 = vmatprep.subr.bf16.mxu0 %v1526
    %1826 = vmatpush1.bf16.msra.mxu0 %v1525
    %1827 = vmatprep.subr.bf16.mxu0 %v1534
    %1828 = vmatpush1.bf16.msra.mxu0 %v1533
    %1829 = vmatprep.subr.bf16.mxu0 %v1542
    %1830 = vmatpush1.bf16.msra.mxu0 %v1541
    %1831 = vmatprep.subr.bf16.mxu0 %v1550
    %1832 = vmatpush1.bf16.msra.mxu0 %v1549
    %1833 = vmatprep.subr.bf16.mxu0 %v1558
    %1834 = vmatpush1.bf16.msra.mxu0 %v1557
    %1835 = vmatprep.subr.bf16.mxu0 %v1566
    %1836 = vmatpush1.bf16.msra.mxu0 %v1565
    %1837 = vmatprep.subr.bf16.mxu0 %v1574
    %1838 = vmatpush1.bf16.msra.mxu0 %v1573
    %1839 = vmatprep.mubr.bf16.mxu0 %v893
    %1840 = vmatmul.mubr.bf16.gmra.mrb[0].mxu0 %v892
    %v1841 = vpop.f32.mrb[0].mxu0
    %v1842 = vadd.f32 %v1044, %v1841
    %v1843 = vpop.f32.mrb[0].mxu0
    %v1844 = vadd.f32 %v1048, %v1843
    %v1845 = vpop.f32.mrb[0].mxu0
    %v1846 = vadd.f32 %v1044, %v1845
    %v1847 = vpop.f32.mrb[0].mxu0
    %v1848 = vadd.f32 %v1048, %v1847
    %1849 = vmatprep.mubr.bf16.mxu0 %v895
    %1850 = vmatmul.mubr.bf16.gmra.mrb[0].mxu0 %v894
    %v1851 = vpop.f32.mrb[0].mxu0
    %v1852 = vadd.f32 %v1044, %v1851
    %v1853 = vpop.f32.mrb[0].mxu0
    %v1854 = vadd.f32 %v1048, %v1853
    %v1855 = vpop.f32.mrb[0].mxu0
    %v1856 = vpop.f32.mrb[0].mxu0
    %1857 = vdwg.mxu0
    %1858 = vmatprep.subr.bf16.mxu0 %v1456
    %1859 = vmatpush1.bf16.msra.mxu0 %v1455
    %1860 = vmatprep.subr.bf16.mxu0 %v1464
    %1861 = vmatpush1.bf16.msra.mxu0 %v1463
    %1862 = vmatprep.subr.bf16.mxu0 %v1472
    %1863 = vmatpush1.bf16.msra.mxu0 %v1471
    %1864 = vmatprep.subr.bf16.mxu0 %v1480
    %1865 = vmatpush1.bf16.msra.mxu0 %v1479
    %1866 = vmatprep.subr.bf16.mxu0 %v1488
    %1867 = vmatpush1.bf16.msra.mxu0 %v1487
    %1868 = vmatprep.subr.bf16.mxu0 %v1496
    %1869 = vmatpush1.bf16.msra.mxu0 %v1495
    %1870 = vmatprep.subr.bf16.mxu0 %v1504
    %1871 = vmatpush1.bf16.msra.mxu0 %v1503
    %1872 = vmatprep.subr.bf16.mxu0 %v1512
    %1873 = vmatpush1.bf16.msra.mxu0 %v1511
    %1874 = vmatprep.subr.bf16.mxu0 %v1520
    %1875 = vmatpush1.bf16.msra.mxu0 %v1519
    %1876 = vmatprep.subr.bf16.mxu0 %v1528
    %1877 = vmatpush1.bf16.msra.mxu0 %v1527
    %1878 = vmatprep.subr.bf16.mxu0 %v1536
    %1879 = vmatpush1.bf16.msra.mxu0 %v1535
    %1880 = vmatprep.subr.bf16.mxu0 %v1544
    %1881 = vmatpush1.bf16.msra.mxu0 %v1543
    %1882 = vmatprep.subr.bf16.mxu0 %v1552
    %1883 = vmatpush1.bf16.msra.mxu0 %v1551
    %1884 = vmatprep.subr.bf16.mxu0 %v1560
    %1885 = vmatpush1.bf16.msra.mxu0 %v1559
    %1886 = vmatprep.subr.bf16.mxu0 %v1568
    %1887 = vmatpush1.bf16.msra.mxu0 %v1567
    %1888 = vmatprep.subr.bf16.mxu0 %v1576
    %1889 = vmatpush1.bf16.msra.mxu0 %v1575
    %1890 = vmatprep.mubr.bf16.mxu0 %v893
    %1891 = vmatmul.mubr.bf16.gmra.mrb[0].mxu0 %v892
    %v1892 = vpop.f32.mrb[0].mxu0
    %v1893 = vadd.f32 %v1052, %v1892
    %v1894 = vpop.f32.mrb[0].mxu0
    %v1895 = vadd.f32 %v1056, %v1894
    %v1896 = vpop.f32.mrb[0].mxu0
    %v1897 = vadd.f32 %v1052, %v1896
    %v1898 = vpop.f32.mrb[0].mxu0
    %v1899 = vadd.f32 %v1056, %v1898
    %1900 = vmatprep.mubr.bf16.mxu0 %v895
    %1901 = vmatmul.mubr.bf16.gmra.mrb[0].mxu0 %v894
    %v1902 = vpop.f32.mrb[0].mxu0
    %v1903 = vadd.f32 %v1052, %v1902
    %v1904 = vpop.f32.mrb[0].mxu0
    %v1905 = vadd.f32 %v1056, %v1904
    %v1906 = vpop.f32.mrb[0].mxu0
    %v1907 = vpop.f32.mrb[0].mxu0
    %1908 = vdwg.mxu0
    %v1909 = vmax.f32 %v1740, 0.0
    %v1910 = vmax.f32 %v1742, 0.0
    %v1911 = vmax.f32 %v1791, 0.0
    %v1912 = vmax.f32 %v1793, 0.0
    %v1913 = vmax.f32 %v1842, 0.0
    %v1914 = vmax.f32 %v1844, 0.0
    %v1915 = vmax.f32 %v1893, 0.0
    %v1916 = vmax.f32 %v1895, 0.0
    %v1917 = vmax.f32 %v1744, 0.0
    %v1918 = vmax.f32 %v1746, 0.0
    %v1919 = vmax.f32 %v1795, 0.0
    %v1920 = vmax.f32 %v1797, 0.0
    %v1921 = vmax.f32 %v1846, 0.0
    %v1922 = vmax.f32 %v1848, 0.0
    %v1923 = vmax.f32 %v1897, 0.0
    %v1924 = vmax.f32 %v1899, 0.0
    %v1925 = vmax.f32 %v1750, 0.0
    %v1926 = vmax.f32 %v1752, 0.0
    %v1927 = vmax.f32 %v1801, 0.0
    %v1928 = vmax.f32 %v1803, 0.0
    %v1929 = vmax.f32 %v1852, 0.0
    %v1930 = vmax.f32 %v1854, 0.0
    %v1931 = vmax.f32 %v1903, 0.0
    %v1932 = vmax.f32 %v1905, 0.0
    %v1933 = vpack.c.bf16 %v1917, %v1909
    %v1934 = vpack.c.bf16 %v1918, %v1910
    %v1935 = vpack.c.bf16 %v1919, %v1911
    %v1936 = vpack.c.bf16 %v1920, %v1912
    %v1937 = vpack.c.bf16 %v1921, %v1913
    %v1938 = vpack.c.bf16 %v1922, %v1914
    %v1939 = vpack.c.bf16 %v1923, %v1915
    %v1940 = vpack.c.bf16 %v1924, %v1916
    %v1941 = vpack.c.bf16 %v1925, %v1925
    %v1942 = vpack.c.bf16 %v1926, %v1926
    %v1943 = vpack.c.bf16 %v1927, %v1927
    %v1944 = vpack.c.bf16 %v1928, %v1928
    %v1945 = vpack.c.bf16 %v1929, %v1929
    %v1946 = vpack.c.bf16 %v1930, %v1930
    %v1947 = vpack.c.bf16 %v1931, %v1931
    %v1948 = vpack.c.bf16 %v1932, %v1932
    %v1949 = vld [vmem:[#allocation7] sm:$0xff]
    %v1950 = vld [vmem:[#allocation7 + $0x8] sm:$0xff]
    %v1951 = vld [vmem:[#allocation7 + $0x10] sm:$0xff]
    %v1952 = vld [vmem:[#allocation7 + $0x18] sm:$0xff]
    %v1953 = vld [vmem:[#allocation7 + $0x20] sm:$0xff]
    %v1954 = vld [vmem:[#allocation7 + $0x28] sm:$0xff]
    %v1955 = vld [vmem:[#allocation7 + $0x30] sm:$0xff]
    %v1956 = vld [vmem:[#allocation7 + $0x38] sm:$0xff]
    %v1957 = vld [vmem:[#allocation7 + $0x40] sm:$0xff]
    %v1958 = vld [vmem:[#allocation7 + $0x48] sm:$0xff]
    %v1959 = vld [vmem:[#allocation7 + $0x50] sm:$0xff]
    %v1960 = vld [vmem:[#allocation7 + $0x58] sm:$0xff]
    %v1961 = vld [vmem:[#allocation7 + $0x60] sm:$0xff]
    %v1962 = vld [vmem:[#allocation7 + $0x68] sm:$0xff]
    %v1963 = vld [vmem:[#allocation7 + $0x70] sm:$0xff]
    %v1964 = vld [vmem:[#allocation7 + $0x78] sm:$0xff]
    %v1965 = vld [vmem:[#allocation7 + $0x80] sm:$0xff]
    %v1966 = vld [vmem:[#allocation7 + $0x88] sm:$0xff]
    %v1967 = vld [vmem:[#allocation7 + $0x90] sm:$0xff]
    %v1968 = vld [vmem:[#allocation7 + $0x98] sm:$0xff]
    %v1969 = vld [vmem:[#allocation7 + $0xa0] sm:$0xff]
    %v1970 = vld [vmem:[#allocation7 + $0xa8] sm:$0xff]
    %v1971 = vld [vmem:[#allocation7 + $0xb0] sm:$0xff]
    %v1972 = vld [vmem:[#allocation7 + $0xb8] sm:$0xff]
    %v1973 = vld [vmem:[#allocation7 + $0xc0] sm:$0xff]
    %v1974 = vld [vmem:[#allocation7 + $0xc8] sm:$0xff]
    %v1975 = vld [vmem:[#allocation7 + $0xd0] sm:$0xff]
    %v1976 = vld [vmem:[#allocation7 + $0xd8] sm:$0xff]
    %v1977 = vld [vmem:[#allocation7 + $0xe0] sm:$0xff]
    %v1978 = vld [vmem:[#allocation7 + $0xe8] sm:$0xff]
    %v1979 = vld [vmem:[#allocation7 + $0xf0] sm:$0xff]
    %v1980 = vld [vmem:[#allocation7 + $0xf8] sm:$0xff]
    %v1981 = vld [vmem:[#allocation7 + $0x100] sm:$0xff]
    %v1982 = vld [vmem:[#allocation7 + $0x108] sm:$0xff]
    %v1983 = vld [vmem:[#allocation7 + $0x110] sm:$0xff]
    %v1984 = vld [vmem:[#allocation7 + $0x118] sm:$0xff]
    %v1985 = vld [vmem:[#allocation7 + $0x120] sm:$0xff]
    %v1986 = vld [vmem:[#allocation7 + $0x128] sm:$0xff]
    %v1987 = vld [vmem:[#allocation7 + $0x130] sm:$0xff]
    %v1988 = vld [vmem:[#allocation7 + $0x138] sm:$0xff]
    %v1989 = vld [vmem:[#allocation7 + $0x140] sm:$0xff]
    %v1990 = vld [vmem:[#allocation7 + $0x148] sm:$0xff]
    %v1991 = vld [vmem:[#allocation7 + $0x150] sm:$0xff]
    %v1992 = vld [vmem:[#allocation7 + $0x158] sm:$0xff]
    %v1993 = vld [vmem:[#allocation7 + $0x160] sm:$0xff]
    %v1994 = vld [vmem:[#allocation7 + $0x168] sm:$0xff]
    %v1995 = vld [vmem:[#allocation7 + $0x170] sm:$0xff]
    %v1996 = vld [vmem:[#allocation7 + $0x178] sm:$0xff]
    %v1997 = vld [vmem:[#allocation7 + $0x180] sm:$0xff]
    %v1998 = vld [vmem:[#allocation7 + $0x188] sm:$0xff]
    %v1999 = vld [vmem:[#allocation7 + $0x190] sm:$0xff]
    %v2000 = vld [vmem:[#allocation7 + $0x198] sm:$0xff]
    %v2001 = vld [vmem:[#allocation7 + $0x1a0] sm:$0xff]
    %v2002 = vld [vmem:[#allocation7 + $0x1a8] sm:$0xff]
    %v2003 = vld [vmem:[#allocation7 + $0x1b0] sm:$0xff]
    %v2004 = vld [vmem:[#allocation7 + $0x1b8] sm:$0xff]
    %v2005 = vld [vmem:[#allocation7 + $0x1c0] sm:$0xff]
    %v2006 = vld [vmem:[#allocation7 + $0x1c8] sm:$0xff]
    %v2007 = vld [vmem:[#allocation7 + $0x1d0] sm:$0xff]
    %v2008 = vld [vmem:[#allocation7 + $0x1d8] sm:$0xff]
    %v2009 = vld [vmem:[#allocation7 + $0x1e0] sm:$0xff]
    %v2010 = vld [vmem:[#allocation7 + $0x1e8] sm:$0xff]
    %v2011 = vld [vmem:[#allocation7 + $0x1f0] sm:$0xff]
    %v2012 = vld [vmem:[#allocation7 + $0x1f8] sm:$0xff]
    %v2013 = vld [vmem:[#allocation7 + $0x200] sm:$0xff]
    %v2014 = vld [vmem:[#allocation7 + $0x208] sm:$0xff]
    %v2015 = vld [vmem:[#allocation7 + $0x210] sm:$0xff]
    %v2016 = vld [vmem:[#allocation7 + $0x218] sm:$0xff]
    %v2017 = vld [vmem:[#allocation7 + $0x220] sm:$0xff]
    %v2018 = vld [vmem:[#allocation7 + $0x228] sm:$0xff]
    %v2019 = vld [vmem:[#allocation7 + $0x230] sm:$0xff]
    %v2020 = vld [vmem:[#allocation7 + $0x238] sm:$0xff]
    %v2021 = vld [vmem:[#allocation7 + $0x240] sm:$0xff]
    %v2022 = vld [vmem:[#allocation7 + $0x248] sm:$0xff]
    %v2023 = vld [vmem:[#allocation7 + $0x250] sm:$0xff]
    %v2024 = vld [vmem:[#allocation7 + $0x258] sm:$0xff]
    %v2025 = vld [vmem:[#allocation7 + $0x260] sm:$0xff]
    %v2026 = vld [vmem:[#allocation7 + $0x268] sm:$0xff]
    %v2027 = vld [vmem:[#allocation7 + $0x270] sm:$0xff]
    %v2028 = vld [vmem:[#allocation7 + $0x278] sm:$0xff]
    %v2029 = vld [vmem:[#allocation7 + $0x280] sm:$0xff]
    %v2030 = vld [vmem:[#allocation7 + $0x288] sm:$0xff]
    %v2031 = vld [vmem:[#allocation7 + $0x290] sm:$0xff]
    %v2032 = vld [vmem:[#allocation7 + $0x298] sm:$0xff]
    %v2033 = vld [vmem:[#allocation7 + $0x2a0] sm:$0xff]
    %v2034 = vld [vmem:[#allocation7 + $0x2a8] sm:$0xff]
    %v2035 = vld [vmem:[#allocation7 + $0x2b0] sm:$0xff]
    %v2036 = vld [vmem:[#allocation7 + $0x2b8] sm:$0xff]
    %v2037 = vld [vmem:[#allocation7 + $0x2c0] sm:$0xff]
    %v2038 = vld [vmem:[#allocation7 + $0x2c8] sm:$0xff]
    %v2039 = vld [vmem:[#allocation7 + $0x2d0] sm:$0xff]
    %v2040 = vld [vmem:[#allocation7 + $0x2d8] sm:$0xff]
    %v2041 = vld [vmem:[#allocation7 + $0x2e0] sm:$0xff]
    %v2042 = vld [vmem:[#allocation7 + $0x2e8] sm:$0xff]
    %v2043 = vld [vmem:[#allocation7 + $0x2f0] sm:$0xff]
    %v2044 = vld [vmem:[#allocation7 + $0x2f8] sm:$0xff]
    %v2045 = vld [vmem:[#allocation7 + $0x300] sm:$0xff]
    %v2046 = vld [vmem:[#allocation7 + $0x308] sm:$0xff]
    %v2047 = vld [vmem:[#allocation7 + $0x310] sm:$0xff]
    %v2048 = vld [vmem:[#allocation7 + $0x318] sm:$0xff]
    %v2049 = vld [vmem:[#allocation7 + $0x320] sm:$0xff]
    %v2050 = vld [vmem:[#allocation7 + $0x328] sm:$0xff]
    %v2051 = vld [vmem:[#allocation7 + $0x330] sm:$0xff]
    %v2052 = vld [vmem:[#allocation7 + $0x338] sm:$0xff]
    %v2053 = vld [vmem:[#allocation7 + $0x340] sm:$0xff]
    %v2054 = vld [vmem:[#allocation7 + $0x348] sm:$0xff]
    %v2055 = vld [vmem:[#allocation7 + $0x350] sm:$0xff]
    %v2056 = vld [vmem:[#allocation7 + $0x358] sm:$0xff]
    %v2057 = vld [vmem:[#allocation7 + $0x360] sm:$0xff]
    %v2058 = vld [vmem:[#allocation7 + $0x368] sm:$0xff]
    %v2059 = vld [vmem:[#allocation7 + $0x370] sm:$0xff]
    %v2060 = vld [vmem:[#allocation7 + $0x378] sm:$0xff]
    %v2061 = vld [vmem:[#allocation7 + $0x380] sm:$0xff]
    %v2062 = vld [vmem:[#allocation7 + $0x388] sm:$0xff]
    %v2063 = vld [vmem:[#allocation7 + $0x390] sm:$0xff]
    %v2064 = vld [vmem:[#allocation7 + $0x398] sm:$0xff]
    %v2065 = vld [vmem:[#allocation7 + $0x3a0] sm:$0xff]
    %v2066 = vld [vmem:[#allocation7 + $0x3a8] sm:$0xff]
    %v2067 = vld [vmem:[#allocation7 + $0x3b0] sm:$0xff]
    %v2068 = vld [vmem:[#allocation7 + $0x3b8] sm:$0xff]
    %v2069 = vld [vmem:[#allocation7 + $0x3c0] sm:$0xff]
    %v2070 = vld [vmem:[#allocation7 + $0x3c8] sm:$0xff]
    %v2071 = vld [vmem:[#allocation7 + $0x3d0] sm:$0xff]
    %v2072 = vld [vmem:[#allocation7 + $0x3d8] sm:$0xff]
    %v2073 = vld [vmem:[#allocation7 + $0x3e0] sm:$0xff]
    %v2074 = vld [vmem:[#allocation7 + $0x3e8] sm:$0xff]
    %v2075 = vld [vmem:[#allocation7 + $0x3f0] sm:$0xff]
    %v2076 = vld [vmem:[#allocation7 + $0x3f8] sm:$0xff]
    %v2205 = vunpack.c.l.b16 %v1949
    %v2206 = vunpack.c.h.b16 %v1949
    %v2207 = vunpack.c.l.b16 %v1950
    %v2208 = vunpack.c.h.b16 %v1950
    %v2209 = vunpack.c.l.b16 %v1951
    %v2210 = vunpack.c.h.b16 %v1951
    %v2211 = vunpack.c.l.b16 %v1952
    %v2212 = vunpack.c.h.b16 %v1952
    %v2213 = vunpack.c.l.b16 %v1953
    %v2214 = vunpack.c.h.b16 %v1953
    %v2215 = vunpack.c.l.b16 %v1954
    %v2216 = vunpack.c.h.b16 %v1954
    %v2217 = vunpack.c.l.b16 %v1955
    %v2218 = vunpack.c.h.b16 %v1955
    %v2219 = vunpack.c.l.b16 %v1956
    %v2220 = vunpack.c.h.b16 %v1956
    %v2221 = vunpack.c.l.b16 %v1957
    %v2222 = vunpack.c.h.b16 %v1957
    %v2223 = vunpack.c.l.b16 %v1958
    %v2224 = vunpack.c.h.b16 %v1958
    %v2225 = vunpack.c.l.b16 %v1959
    %v2226 = vunpack.c.h.b16 %v1959
    %v2227 = vunpack.c.l.b16 %v1960
    %v2228 = vunpack.c.h.b16 %v1960
    %v2229 = vunpack.c.l.b16 %v1961
    %v2230 = vunpack.c.h.b16 %v1961
    %v2231 = vunpack.c.l.b16 %v1962
    %v2232 = vunpack.c.h.b16 %v1962
    %v2233 = vunpack.c.l.b16 %v1963
    %v2234 = vunpack.c.h.b16 %v1963
    %v2235 = vunpack.c.l.b16 %v1964
    %v2236 = vunpack.c.h.b16 %v1964
    %v2237 = vunpack.c.l.b16 %v1965
    %v2238 = vunpack.c.h.b16 %v1965
    %v2239 = vunpack.c.l.b16 %v1966
    %v2240 = vunpack.c.h.b16 %v1966
    %v2241 = vunpack.c.l.b16 %v1967
    %v2242 = vunpack.c.h.b16 %v1967
    %v2243 = vunpack.c.l.b16 %v1968
    %v2244 = vunpack.c.h.b16 %v1968
    %v2245 = vunpack.c.l.b16 %v1969
    %v2246 = vunpack.c.h.b16 %v1969
    %v2247 = vunpack.c.l.b16 %v1970
    %v2248 = vunpack.c.h.b16 %v1970
    %v2249 = vunpack.c.l.b16 %v1971
    %v2250 = vunpack.c.h.b16 %v1971
    %v2251 = vunpack.c.l.b16 %v1972
    %v2252 = vunpack.c.h.b16 %v1972
    %v2253 = vunpack.c.l.b16 %v1973
    %v2254 = vunpack.c.h.b16 %v1973
    %v2255 = vunpack.c.l.b16 %v1974
    %v2256 = vunpack.c.h.b16 %v1974
    %v2257 = vunpack.c.l.b16 %v1975
    %v2258 = vunpack.c.h.b16 %v1975
    %v2259 = vunpack.c.l.b16 %v1976
    %v2260 = vunpack.c.h.b16 %v1976
    %v2261 = vunpack.c.l.b16 %v1977
    %v2262 = vunpack.c.h.b16 %v1977
    %v2263 = vunpack.c.l.b16 %v1978
    %v2264 = vunpack.c.h.b16 %v1978
    %v2265 = vunpack.c.l.b16 %v1979
    %v2266 = vunpack.c.h.b16 %v1979
    %v2267 = vunpack.c.l.b16 %v1980
    %v2268 = vunpack.c.h.b16 %v1980
    %v2269 = vunpack.c.l.b16 %v1981
    %v2270 = vunpack.c.h.b16 %v1981
    %v2271 = vunpack.c.l.b16 %v1982
    %v2272 = vunpack.c.h.b16 %v1982
    %v2273 = vunpack.c.l.b16 %v1983
    %v2274 = vunpack.c.h.b16 %v1983
    %v2275 = vunpack.c.l.b16 %v1984
    %v2276 = vunpack.c.h.b16 %v1984
    %v2277 = vunpack.c.l.b16 %v1985
    %v2278 = vunpack.c.h.b16 %v1985
    %v2279 = vunpack.c.l.b16 %v1986
    %v2280 = vunpack.c.h.b16 %v1986
    %v2281 = vunpack.c.l.b16 %v1987
    %v2282 = vunpack.c.h.b16 %v1987
    %v2283 = vunpack.c.l.b16 %v1988
    %v2284 = vunpack.c.h.b16 %v1988
    %v2285 = vunpack.c.l.b16 %v1989
    %v2286 = vunpack.c.h.b16 %v1989
    %v2287 = vunpack.c.l.b16 %v1990
    %v2288 = vunpack.c.h.b16 %v1990
    %v2289 = vunpack.c.l.b16 %v1991
    %v2290 = vunpack.c.h.b16 %v1991
    %v2291 = vunpack.c.l.b16 %v1992
    %v2292 = vunpack.c.h.b16 %v1992
    %v2293 = vunpack.c.l.b16 %v1993
    %v2294 = vunpack.c.h.b16 %v1993
    %v2295 = vunpack.c.l.b16 %v1994
    %v2296 = vunpack.c.h.b16 %v1994
    %v2297 = vunpack.c.l.b16 %v1995
    %v2298 = vunpack.c.h.b16 %v1995
    %v2299 = vunpack.c.l.b16 %v1996
    %v2300 = vunpack.c.h.b16 %v1996
    %v2301 = vunpack.c.l.b16 %v1997
    %v2302 = vunpack.c.h.b16 %v1997
    %v2303 = vunpack.c.l.b16 %v1998
    %v2304 = vunpack.c.h.b16 %v1998
    %v2305 = vunpack.c.l.b16 %v1999
    %v2306 = vunpack.c.h.b16 %v1999
    %v2307 = vunpack.c.l.b16 %v2000
    %v2308 = vunpack.c.h.b16 %v2000
    %v2309 = vunpack.c.l.b16 %v2001
    %v2310 = vunpack.c.h.b16 %v2001
    %v2311 = vunpack.c.l.b16 %v2002
    %v2312 = vunpack.c.h.b16 %v2002
    %v2313 = vunpack.c.l.b16 %v2003
    %v2314 = vunpack.c.h.b16 %v2003
    %v2315 = vunpack.c.l.b16 %v2004
    %v2316 = vunpack.c.h.b16 %v2004
    %v2317 = vunpack.c.l.b16 %v2005
    %v2318 = vunpack.c.h.b16 %v2005
    %v2319 = vunpack.c.l.b16 %v2006
    %v2320 = vunpack.c.h.b16 %v2006
    %v2321 = vunpack.c.l.b16 %v2007
    %v2322 = vunpack.c.h.b16 %v2007
    %v2323 = vunpack.c.l.b16 %v2008
    %v2324 = vunpack.c.h.b16 %v2008
    %v2325 = vunpack.c.l.b16 %v2009
    %v2326 = vunpack.c.h.b16 %v2009
    %v2327 = vunpack.c.l.b16 %v2010
    %v2328 = vunpack.c.h.b16 %v2010
    %v2329 = vunpack.c.l.b16 %v2011
    %v2330 = vunpack.c.h.b16 %v2011
    %v2331 = vunpack.c.l.b16 %v2012
    %v2332 = vunpack.c.h.b16 %v2012
    %v2333 = vunpack.c.l.b16 %v2013
    %v2334 = vunpack.c.h.b16 %v2013
    %v2335 = vunpack.c.l.b16 %v2014
    %v2336 = vunpack.c.h.b16 %v2014
    %v2337 = vunpack.c.l.b16 %v2015
    %v2338 = vunpack.c.h.b16 %v2015
    %v2339 = vunpack.c.l.b16 %v2016
    %v2340 = vunpack.c.h.b16 %v2016
    %v2341 = vunpack.c.l.b16 %v2017
    %v2342 = vunpack.c.h.b16 %v2017
    %v2343 = vunpack.c.l.b16 %v2018
    %v2344 = vunpack.c.h.b16 %v2018
    %v2345 = vunpack.c.l.b16 %v2019
    %v2346 = vunpack.c.h.b16 %v2019
    %v2347 = vunpack.c.l.b16 %v2020
    %v2348 = vunpack.c.h.b16 %v2020
    %v2349 = vunpack.c.l.b16 %v2021
    %v2350 = vunpack.c.h.b16 %v2021
    %v2351 = vunpack.c.l.b16 %v2022
    %v2352 = vunpack.c.h.b16 %v2022
    %v2353 = vunpack.c.l.b16 %v2023
    %v2354 = vunpack.c.h.b16 %v2023
    %v2355 = vunpack.c.l.b16 %v2024
    %v2356 = vunpack.c.h.b16 %v2024
    %v2357 = vunpack.c.l.b16 %v2025
    %v2358 = vunpack.c.h.b16 %v2025
    %v2359 = vunpack.c.l.b16 %v2026
    %v2360 = vunpack.c.h.b16 %v2026
    %v2361 = vunpack.c.l.b16 %v2027
    %v2362 = vunpack.c.h.b16 %v2027
    %v2363 = vunpack.c.l.b16 %v2028
    %v2364 = vunpack.c.h.b16 %v2028
    %v2365 = vunpack.c.l.b16 %v2029
    %v2366 = vunpack.c.h.b16 %v2029
    %v2367 = vunpack.c.l.b16 %v2030
    %v2368 = vunpack.c.h.b16 %v2030
    %v2369 = vunpack.c.l.b16 %v2031
    %v2370 = vunpack.c.h.b16 %v2031
    %v2371 = vunpack.c.l.b16 %v2032
    %v2372 = vunpack.c.h.b16 %v2032
    %v2373 = vunpack.c.l.b16 %v2033
    %v2374 = vunpack.c.h.b16 %v2033
    %v2375 = vunpack.c.l.b16 %v2034
    %v2376 = vunpack.c.h.b16 %v2034
    %v2377 = vunpack.c.l.b16 %v2035
    %v2378 = vunpack.c.h.b16 %v2035
    %v2379 = vunpack.c.l.b16 %v2036
    %v2380 = vunpack.c.h.b16 %v2036
    %v2381 = vunpack.c.l.b16 %v2037
    %v2382 = vunpack.c.h.b16 %v2037
    %v2383 = vunpack.c.l.b16 %v2038
    %v2384 = vunpack.c.h.b16 %v2038
    %v2385 = vunpack.c.l.b16 %v2039
    %v2386 = vunpack.c.h.b16 %v2039
    %v2387 = vunpack.c.l.b16 %v2040
    %v2388 = vunpack.c.h.b16 %v2040
    %v2389 = vunpack.c.l.b16 %v2041
    %v2390 = vunpack.c.h.b16 %v2041
    %v2391 = vunpack.c.l.b16 %v2042
    %v2392 = vunpack.c.h.b16 %v2042
    %v2393 = vunpack.c.l.b16 %v2043
    %v2394 = vunpack.c.h.b16 %v2043
    %v2395 = vunpack.c.l.b16 %v2044
    %v2396 = vunpack.c.h.b16 %v2044
    %v2397 = vunpack.c.l.b16 %v2045
    %v2398 = vunpack.c.h.b16 %v2045
    %v2399 = vunpack.c.l.b16 %v2046
    %v2400 = vunpack.c.h.b16 %v2046
    %v2401 = vunpack.c.l.b16 %v2047
    %v2402 = vunpack.c.h.b16 %v2047
    %v2403 = vunpack.c.l.b16 %v2048
    %v2404 = vunpack.c.h.b16 %v2048
    %v2405 = vunpack.c.l.b16 %v2049
    %v2406 = vunpack.c.h.b16 %v2049
    %v2407 = vunpack.c.l.b16 %v2050
    %v2408 = vunpack.c.h.b16 %v2050
    %v2409 = vunpack.c.l.b16 %v2051
    %v2410 = vunpack.c.h.b16 %v2051
    %v2411 = vunpack.c.l.b16 %v2052
    %v2412 = vunpack.c.h.b16 %v2052
    %v2413 = vunpack.c.l.b16 %v2053
    %v2414 = vunpack.c.h.b16 %v2053
    %v2415 = vunpack.c.l.b16 %v2054
    %v2416 = vunpack.c.h.b16 %v2054
    %v2417 = vunpack.c.l.b16 %v2055
    %v2418 = vunpack.c.h.b16 %v2055
    %v2419 = vunpack.c.l.b16 %v2056
    %v2420 = vunpack.c.h.b16 %v2056
    %v2421 = vunpack.c.l.b16 %v2057
    %v2422 = vunpack.c.h.b16 %v2057
    %v2423 = vunpack.c.l.b16 %v2058
    %v2424 = vunpack.c.h.b16 %v2058
    %v2425 = vunpack.c.l.b16 %v2059
    %v2426 = vunpack.c.h.b16 %v2059
    %v2427 = vunpack.c.l.b16 %v2060
    %v2428 = vunpack.c.h.b16 %v2060
    %v2429 = vunpack.c.l.b16 %v2061
    %v2430 = vunpack.c.h.b16 %v2061
    %v2431 = vunpack.c.l.b16 %v2062
    %v2432 = vunpack.c.h.b16 %v2062
    %v2433 = vunpack.c.l.b16 %v2063
    %v2434 = vunpack.c.h.b16 %v2063
    %v2435 = vunpack.c.l.b16 %v2064
    %v2436 = vunpack.c.h.b16 %v2064
    %v2437 = vunpack.c.l.b16 %v2065
    %v2438 = vunpack.c.h.b16 %v2065
    %v2439 = vunpack.c.l.b16 %v2066
    %v2440 = vunpack.c.h.b16 %v2066
    %v2441 = vunpack.c.l.b16 %v2067
    %v2442 = vunpack.c.h.b16 %v2067
    %v2443 = vunpack.c.l.b16 %v2068
    %v2444 = vunpack.c.h.b16 %v2068
    %v2445 = vunpack.c.l.b16 %v2069
    %v2446 = vunpack.c.h.b16 %v2069
    %v2447 = vunpack.c.l.b16 %v2070
    %v2448 = vunpack.c.h.b16 %v2070
    %v2449 = vunpack.c.l.b16 %v2071
    %v2450 = vunpack.c.h.b16 %v2071
    %v2451 = vunpack.c.l.b16 %v2072
    %v2452 = vunpack.c.h.b16 %v2072
    %v2453 = vunpack.c.l.b16 %v2073
    %v2454 = vunpack.c.h.b16 %v2073
    %v2455 = vunpack.c.l.b16 %v2074
    %v2456 = vunpack.c.h.b16 %v2074
    %v2457 = vunpack.c.l.b16 %v2075
    %v2458 = vunpack.c.h.b16 %v2075
    %v2459 = vunpack.c.l.b16 %v2076
    %v2460 = vunpack.c.h.b16 %v2076
    %v2461 = vpack.c.b16 %v2207, %v2205
    %v2462 = vpack.c.b16 %v2208, %v2206
    %v2463 = vpack.c.b16 %v2211, %v2209
    %v2464 = vpack.c.b16 %v2212, %v2210
    %v2465 = vpack.c.b16 %v2215, %v2213
    %v2466 = vpack.c.b16 %v2216, %v2214
    %v2467 = vpack.c.b16 %v2219, %v2217
    %v2468 = vpack.c.b16 %v2220, %v2218
    %v2469 = vpack.c.b16 %v2223, %v2221
    %v2470 = vpack.c.b16 %v2224, %v2222
    %v2471 = vpack.c.b16 %v2227, %v2225
    %v2472 = vpack.c.b16 %v2228, %v2226
    %v2473 = vpack.c.b16 %v2231, %v2229
    %v2474 = vpack.c.b16 %v2232, %v2230
    %v2475 = vpack.c.b16 %v2235, %v2233
    %v2476 = vpack.c.b16 %v2236, %v2234
    %v2477 = vpack.c.b16 %v2239, %v2237
    %v2478 = vpack.c.b16 %v2240, %v2238
    %v2479 = vpack.c.b16 %v2243, %v2241
    %v2480 = vpack.c.b16 %v2244, %v2242
    %v2481 = vpack.c.b16 %v2247, %v2245
    %v2482 = vpack.c.b16 %v2248, %v2246
    %v2483 = vpack.c.b16 %v2251, %v2249
    %v2484 = vpack.c.b16 %v2252, %v2250
    %v2485 = vpack.c.b16 %v2255, %v2253
    %v2486 = vpack.c.b16 %v2256, %v2254
    %v2487 = vpack.c.b16 %v2259, %v2257
    %v2488 = vpack.c.b16 %v2260, %v2258
    %v2489 = vpack.c.b16 %v2263, %v2261
    %v2490 = vpack.c.b16 %v2264, %v2262
    %v2491 = vpack.c.b16 %v2267, %v2265
    %v2492 = vpack.c.b16 %v2268, %v2266
    %v2493 = vpack.c.b16 %v2271, %v2269
    %v2494 = vpack.c.b16 %v2272, %v2270
    %v2495 = vpack.c.b16 %v2275, %v2273
    %v2496 = vpack.c.b16 %v2276, %v2274
    %v2497 = vpack.c.b16 %v2279, %v2277
    %v2498 = vpack.c.b16 %v2280, %v2278
    %v2499 = vpack.c.b16 %v2283, %v2281
    %v2500 = vpack.c.b16 %v2284, %v2282
    %v2501 = vpack.c.b16 %v2287, %v2285
    %v2502 = vpack.c.b16 %v2288, %v2286
    %v2503 = vpack.c.b16 %v2291, %v2289
    %v2504 = vpack.c.b16 %v2292, %v2290
    %v2505 = vpack.c.b16 %v2295, %v2293
    %v2506 = vpack.c.b16 %v2296, %v2294
    %v2507 = vpack.c.b16 %v2299, %v2297
    %v2508 = vpack.c.b16 %v2300, %v2298
    %v2509 = vpack.c.b16 %v2303, %v2301
    %v2510 = vpack.c.b16 %v2304, %v2302
    %v2511 = vpack.c.b16 %v2307, %v2305
    %v2512 = vpack.c.b16 %v2308, %v2306
    %v2513 = vpack.c.b16 %v2311, %v2309
    %v2514 = vpack.c.b16 %v2312, %v2310
    %v2515 = vpack.c.b16 %v2315, %v2313
    %v2516 = vpack.c.b16 %v2316, %v2314
    %v2517 = vpack.c.b16 %v2319, %v2317
    %v2518 = vpack.c.b16 %v2320, %v2318
    %v2519 = vpack.c.b16 %v2323, %v2321
    %v2520 = vpack.c.b16 %v2324, %v2322
    %v2521 = vpack.c.b16 %v2327, %v2325
    %v2522 = vpack.c.b16 %v2328, %v2326
    %v2523 = vpack.c.b16 %v2331, %v2329
    %v2524 = vpack.c.b16 %v2332, %v2330
    %v2525 = vpack.c.b16 %v2335, %v2333
    %v2526 = vpack.c.b16 %v2336, %v2334
    %v2527 = vpack.c.b16 %v2339, %v2337
    %v2528 = vpack.c.b16 %v2340, %v2338
    %v2529 = vpack.c.b16 %v2343, %v2341
    %v2530 = vpack.c.b16 %v2344, %v2342
    %v2531 = vpack.c.b16 %v2347, %v2345
    %v2532 = vpack.c.b16 %v2348, %v2346
    %v2533 = vpack.c.b16 %v2351, %v2349
    %v2534 = vpack.c.b16 %v2352, %v2350
    %v2535 = vpack.c.b16 %v2355, %v2353
    %v2536 = vpack.c.b16 %v2356, %v2354
    %v2537 = vpack.c.b16 %v2359, %v2357
    %v2538 = vpack.c.b16 %v2360, %v2358
    %v2539 = vpack.c.b16 %v2363, %v2361
    %v2540 = vpack.c.b16 %v2364, %v2362
    %v2541 = vpack.c.b16 %v2367, %v2365
    %v2542 = vpack.c.b16 %v2368, %v2366
    %v2543 = vpack.c.b16 %v2371, %v2369
    %v2544 = vpack.c.b16 %v2372, %v2370
    %v2545 = vpack.c.b16 %v2375, %v2373
    %v2546 = vpack.c.b16 %v2376, %v2374
    %v2547 = vpack.c.b16 %v2379, %v2377
    %v2548 = vpack.c.b16 %v2380, %v2378
    %v2549 = vpack.c.b16 %v2383, %v2381
    %v2550 = vpack.c.b16 %v2384, %v2382
    %v2551 = vpack.c.b16 %v2387, %v2385
    %v2552 = vpack.c.b16 %v2388, %v2386
    %v2553 = vpack.c.b16 %v2391, %v2389
    %v2554 = vpack.c.b16 %v2392, %v2390
    %v2555 = vpack.c.b16 %v2395, %v2393
    %v2556 = vpack.c.b16 %v2396, %v2394
    %v2557 = vpack.c.b16 %v2399, %v2397
    %v2558 = vpack.c.b16 %v2400, %v2398
    %v2559 = vpack.c.b16 %v2403, %v2401
    %v2560 = vpack.c.b16 %v2404, %v2402
    %v2561 = vpack.c.b16 %v2407, %v2405
    %v2562 = vpack.c.b16 %v2408, %v2406
    %v2563 = vpack.c.b16 %v2411, %v2409
    %v2564 = vpack.c.b16 %v2412, %v2410
    %v2565 = vpack.c.b16 %v2415, %v2413
    %v2566 = vpack.c.b16 %v2416, %v2414
    %v2567 = vpack.c.b16 %v2419, %v2417
    %v2568 = vpack.c.b16 %v2420, %v2418
    %v2569 = vpack.c.b16 %v2423, %v2421
    %v2570 = vpack.c.b16 %v2424, %v2422
    %v2571 = vpack.c.b16 %v2427, %v2425
    %v2572 = vpack.c.b16 %v2428, %v2426
    %v2573 = vpack.c.b16 %v2431, %v2429
    %v2574 = vpack.c.b16 %v2432, %v2430
    %v2575 = vpack.c.b16 %v2435, %v2433
    %v2576 = vpack.c.b16 %v2436, %v2434
    %v2577 = vpack.c.b16 %v2439, %v2437
    %v2578 = vpack.c.b16 %v2440, %v2438
    %v2579 = vpack.c.b16 %v2443, %v2441
    %v2580 = vpack.c.b16 %v2444, %v2442
    %v2581 = vpack.c.b16 %v2447, %v2445
    %v2582 = vpack.c.b16 %v2448, %v2446
    %v2583 = vpack.c.b16 %v2451, %v2449
    %v2584 = vpack.c.b16 %v2452, %v2450
    %v2585 = vpack.c.b16 %v2455, %v2453
    %v2586 = vpack.c.b16 %v2456, %v2454
    %v2587 = vpack.c.b16 %v2459, %v2457
    %v2588 = vpack.c.b16 %v2460, %v2458
    %2717 = vmatprep.subr.bf16.mxu0 %v2462
    %2718 = vmatpush1.bf16.msra.mxu0 %v2461
    %2719 = vmatprep.subr.bf16.mxu0 %v2464
    %2720 = vmatpush1.bf16.msra.mxu0 %v2463
    %2721 = vmatprep.subr.bf16.mxu0 %v2466
    %2722 = vmatpush1.bf16.msra.mxu0 %v2465
    %2723 = vmatprep.subr.bf16.mxu0 %v2468
    %2724 = vmatpush1.bf16.msra.mxu0 %v2467
    %2725 = vmatprep.subr.bf16.mxu0 %v2470
    %2726 = vmatpush1.bf16.msra.mxu0 %v2469
    %2727 = vmatprep.subr.bf16.mxu0 %v2472
    %2728 = vmatpush1.bf16.msra.mxu0 %v2471
    %2729 = vmatprep.subr.bf16.mxu0 %v2474
    %2730 = vmatpush1.bf16.msra.mxu0 %v2473
    %2731 = vmatprep.subr.bf16.mxu0 %v2476
    %2732 = vmatpush1.bf16.msra.mxu0 %v2475
    %2733 = vmatprep.subr.bf16.mxu0 %v2478
    %2734 = vmatpush1.bf16.msra.mxu0 %v2477
    %2735 = vmatprep.subr.bf16.mxu0 %v2480
    %2736 = vmatpush1.bf16.msra.mxu0 %v2479
    %2737 = vmatprep.subr.bf16.mxu0 %v2482
    %2738 = vmatpush1.bf16.msra.mxu0 %v2481
    %2739 = vmatprep.subr.bf16.mxu0 %v2484
    %2740 = vmatpush1.bf16.msra.mxu0 %v2483
    %2741 = vmatprep.subr.bf16.mxu0 %v2486
    %2742 = vmatpush1.bf16.msra.mxu0 %v2485
    %2743 = vmatprep.subr.bf16.mxu0 %v2488
    %2744 = vmatpush1.bf16.msra.mxu0 %v2487
    %2745 = vmatprep.subr.bf16.mxu0 %v2490
    %2746 = vmatpush1.bf16.msra.mxu0 %v2489
    %2747 = vmatprep.subr.bf16.mxu0 %v2492
    %2748 = vmatpush1.bf16.msra.mxu0 %v2491
    %2749 = vmatprep.mubr.bf16.mxu0 %v1934
    %2750 = vmatmul.mubr.bf16.gmra.mrb[0].mxu0 %v1933
    %v2751 = vpop.f32.mrb[0].mxu0
    %v2752 = vadd.f32 0.0, %v2751
    %v2753 = vpop.f32.mrb[0].mxu0
    %v2754 = vadd.f32 0.0, %v2753
    %v2755 = vpop.f32.mrb[0].mxu0
    %v2756 = vadd.f32 0.0, %v2755
    %v2757 = vpop.f32.mrb[0].mxu0
    %v2758 = vadd.f32 0.0, %v2757
    %2759 = vmatprep.mubr.bf16.mxu0 %v1942
    %2760 = vmatmul.mubr.bf16.gmra.mrb[0].mxu0 %v1941
    %v2761 = vpop.f32.mrb[0].mxu0
    %v2762 = vadd.f32 0.0, %v2761
    %v2763 = vpop.f32.mrb[0].mxu0
    %v2764 = vadd.f32 0.0, %v2763
    %v2765 = vpop.f32.mrb[0].mxu0
    %v2766 = vpop.f32.mrb[0].mxu0
    %2767 = vdwg.mxu0
    %2768 = vmatprep.subr.bf16.mxu0 %v2494
    %2769 = vmatpush1.bf16.msra.mxu0 %v2493
    %2770 = vmatprep.subr.bf16.mxu0 %v2496
    %2771 = vmatpush1.bf16.msra.mxu0 %v2495
    %2772 = vmatprep.subr.bf16.mxu0 %v2498
    %2773 = vmatpush1.bf16.msra.mxu0 %v2497
    %2774 = vmatprep.subr.bf16.mxu0 %v2500
    %2775 = vmatpush1.bf16.msra.mxu0 %v2499
    %2776 = vmatprep.subr.bf16.mxu0 %v2502
    %2777 = vmatpush1.bf16.msra.mxu0 %v2501
    %2778 = vmatprep.subr.bf16.mxu0 %v2504
    %2779 = vmatpush1.bf16.msra.mxu0 %v2503
    %2780 = vmatprep.subr.bf16.mxu0 %v2506
    %2781 = vmatpush1.bf16.msra.mxu0 %v2505
    %2782 = vmatprep.subr.bf16.mxu0 %v2508
    %2783 = vmatpush1.bf16.msra.mxu0 %v2507
    %2784 = vmatprep.subr.bf16.mxu0 %v2510
    %2785 = vmatpush1.bf16.msra.mxu0 %v2509
    %2786 = vmatprep.subr.bf16.mxu0 %v2512
    %2787 = vmatpush1.bf16.msra.mxu0 %v2511
    %2788 = vmatprep.subr.bf16.mxu0 %v2514
    %2789 = vmatpush1.bf16.msra.mxu0 %v2513
    %2790 = vmatprep.subr.bf16.mxu0 %v2516
    %2791 = vmatpush1.bf16.msra.mxu0 %v2515
    %2792 = vmatprep.subr.bf16.mxu0 %v2518
    %2793 = vmatpush1.bf16.msra.mxu0 %v2517
    %2794 = vmatprep.subr.bf16.mxu0 %v2520
    %2795 = vmatpush1.bf16.msra.mxu0 %v2519
    %2796 = vmatprep.subr.bf16.mxu0 %v2522
    %2797 = vmatpush1.bf16.msra.mxu0 %v2521
    %2798 = vmatprep.subr.bf16.mxu0 %v2524
    %2799 = vmatpush1.bf16.msra.mxu0 %v2523
    %2800 = vmatprep.mubr.bf16.mxu0 %v1936
    %2801 = vmatmul.mubr.bf16.gmra.mrb[0].mxu0 %v1935
    %v2802 = vpop.f32.mrb[0].mxu0
    %v2803 = vadd.f32 %v2752, %v2802
    %v2804 = vpop.f32.mrb[0].mxu0
    %v2805 = vadd.f32 %v2754, %v2804
    %v2806 = vpop.f32.mrb[0].mxu0
    %v2807 = vadd.f32 %v2756, %v2806
    %v2808 = vpop.f32.mrb[0].mxu0
    %v2809 = vadd.f32 %v2758, %v2808
    %2810 = vmatprep.mubr.bf16.mxu0 %v1944
    %2811 = vmatmul.mubr.bf16.gmra.mrb[0].mxu0 %v1943
    %v2812 = vpop.f32.mrb[0].mxu0
    %v2813 = vadd.f32 %v2762, %v2812
    %v2814 = vpop.f32.mrb[0].mxu0
    %v2815 = vadd.f32 %v2764, %v2814
    %v2816 = vpop.f32.mrb[0].mxu0
    %v2817 = vpop.f32.mrb[0].mxu0
    %2818 = vdwg.mxu0
    %2819 = vmatprep.subr.bf16.mxu0 %v2526
    %2820 = vmatpush1.bf16.msra.mxu0 %v2525
    %2821 = vmatprep.subr.bf16.mxu0 %v2528
    %2822 = vmatpush1.bf16.msra.mxu0 %v2527
    %2823 = vmatprep.subr.bf16.mxu0 %v2530
    %2824 = vmatpush1.bf16.msra.mxu0 %v2529
    %2825 = vmatprep.subr.bf16.mxu0 %v2532
    %2826 = vmatpush1.bf16.msra.mxu0 %v2531
    %2827 = vmatprep.subr.bf16.mxu0 %v2534
    %2828 = vmatpush1.bf16.msra.mxu0 %v2533
    %2829 = vmatprep.subr.bf16.mxu0 %v2536
    %2830 = vmatpush1.bf16.msra.mxu0 %v2535
    %2831 = vmatprep.subr.bf16.mxu0 %v2538
    %2832 = vmatpush1.bf16.msra.mxu0 %v2537
    %2833 = vmatprep.subr.bf16.mxu0 %v2540
    %2834 = vmatpush1.bf16.msra.mxu0 %v2539
    %2835 = vmatprep.subr.bf16.mxu0 %v2542
    %2836 = vmatpush1.bf16.msra.mxu0 %v2541
    %2837 = vmatprep.subr.bf16.mxu0 %v2544
    %2838 = vmatpush1.bf16.msra.mxu0 %v2543
    %2839 = vmatprep.subr.bf16.mxu0 %v2546
    %2840 = vmatpush1.bf16.msra.mxu0 %v2545
    %2841 = vmatprep.subr.bf16.mxu0 %v2548
    %2842 = vmatpush1.bf16.msra.mxu0 %v2547
    %2843 = vmatprep.subr.bf16.mxu0 %v2550
    %2844 = vmatpush1.bf16.msra.mxu0 %v2549
    %2845 = vmatprep.subr.bf16.mxu0 %v2552
    %2846 = vmatpush1.bf16.msra.mxu0 %v2551
    %2847 = vmatprep.subr.bf16.mxu0 %v2554
    %2848 = vmatpush1.bf16.msra.mxu0 %v2553
    %2849 = vmatprep.subr.bf16.mxu0 %v2556
    %2850 = vmatpush1.bf16.msra.mxu0 %v2555
    %2851 = vmatprep.mubr.bf16.mxu0 %v1938
    %2852 = vmatmul.mubr.bf16.gmra.mrb[0].mxu0 %v1937
    %v2853 = vpop.f32.mrb[0].mxu0
    %v2854 = vadd.f32 %v2803, %v2853
    %v2855 = vpop.f32.mrb[0].mxu0
    %v2856 = vadd.f32 %v2805, %v2855
    %v2857 = vpop.f32.mrb[0].mxu0
    %v2858 = vadd.f32 %v2807, %v2857
    %v2859 = vpop.f32.mrb[0].mxu0
    %v2860 = vadd.f32 %v2809, %v2859
    %2861 = vmatprep.mubr.bf16.mxu0 %v1946
    %2862 = vmatmul.mubr.bf16.gmra.mrb[0].mxu0 %v1945
    %v2863 = vpop.f32.mrb[0].mxu0
    %v2864 = vadd.f32 %v2813, %v2863
    %v2865 = vpop.f32.mrb[0].mxu0
    %v2866 = vadd.f32 %v2815, %v2865
    %v2867 = vpop.f32.mrb[0].mxu0
    %v2868 = vpop.f32.mrb[0].mxu0
    %2869 = vdwg.mxu0
    %2870 = vmatprep.subr.bf16.mxu0 %v2558
    %2871 = vmatpush1.bf16.msra.mxu0 %v2557
    %2872 = vmatprep.subr.bf16.mxu0 %v2560
    %2873 = vmatpush1.bf16.msra.mxu0 %v2559
    %2874 = vmatprep.subr.bf16.mxu0 %v2562
    %2875 = vmatpush1.bf16.msra.mxu0 %v2561
    %2876 = vmatprep.subr.bf16.mxu0 %v2564
    %2877 = vmatpush1.bf16.msra.mxu0 %v2563
    %2878 = vmatprep.subr.bf16.mxu0 %v2566
    %2879 = vmatpush1.bf16.msra.mxu0 %v2565
    %2880 = vmatprep.subr.bf16.mxu0 %v2568
    %2881 = vmatpush1.bf16.msra.mxu0 %v2567
    %2882 = vmatprep.subr.bf16.mxu0 %v2570
    %2883 = vmatpush1.bf16.msra.mxu0 %v2569
    %2884 = vmatprep.subr.bf16.mxu0 %v2572
    %2885 = vmatpush1.bf16.msra.mxu0 %v2571
    %2886 = vmatprep.subr.bf16.mxu0 %v2574
    %2887 = vmatpush1.bf16.msra.mxu0 %v2573
    %2888 = vmatprep.subr.bf16.mxu0 %v2576
    %2889 = vmatpush1.bf16.msra.mxu0 %v2575
    %2890 = vmatprep.subr.bf16.mxu0 %v2578
    %2891 = vmatpush1.bf16.msra.mxu0 %v2577
    %2892 = vmatprep.subr.bf16.mxu0 %v2580
    %2893 = vmatpush1.bf16.msra.mxu0 %v2579
    %2894 = vmatprep.subr.bf16.mxu0 %v2582
    %2895 = vmatpush1.bf16.msra.mxu0 %v2581
    %2896 = vmatprep.subr.bf16.mxu0 %v2584
    %2897 = vmatpush1.bf16.msra.mxu0 %v2583
    %2898 = vmatprep.subr.bf16.mxu0 %v2586
    %2899 = vmatpush1.bf16.msra.mxu0 %v2585
    %2900 = vmatprep.subr.bf16.mxu0 %v2588
    %2901 = vmatpush1.bf16.msra.mxu0 %v2587
    %2902 = vmatprep.mubr.bf16.mxu0 %v1940
    %2903 = vmatmul.mubr.bf16.gmra.mrb[0].mxu0 %v1939
    %v2904 = vpop.f32.mrb[0].mxu0
    %v2905 = vadd.f32 %v2854, %v2904
    %v2906 = vpop.f32.mrb[0].mxu0
    %v2907 = vadd.f32 %v2856, %v2906
    %v2908 = vpop.f32.mrb[0].mxu0
    %v2909 = vadd.f32 %v2858, %v2908
    %v2910 = vpop.f32.mrb[0].mxu0
    %v2911 = vadd.f32 %v2860, %v2910
    %2912 = vmatprep.mubr.bf16.mxu0 %v1948
    %2913 = vmatmul.mubr.bf16.gmra.mrb[0].mxu0 %v1947
    %v2914 = vpop.f32.mrb[0].mxu0
    %v2915 = vadd.f32 %v2864, %v2914
    %v2916 = vpop.f32.mrb[0].mxu0
    %v2917 = vadd.f32 %v2866, %v2916
    %v2918 = vpop.f32.mrb[0].mxu0
    %v2919 = vpop.f32.mrb[0].mxu0
    %2920 = vdwg.mxu0
    %v2921 = vadd.f32 %v886, %v2905
    %v2922 = vadd.f32 %v887, %v2907
    %v2923 = vadd.f32 %v888, %v2909
    %v2924 = vadd.f32 %v889, %v2911
    %v2925 = vadd.f32 %v890, %v2915
    %v2926 = vadd.f32 %v891, %v2917
    %v2928 = vlaneseq
    %v2929 = vshrl.u32 %v2928, 7
    %v2930 = vsub.s32 0, %v2929
    %v2931 = vrot.slane %v277, %v2930
    %v2932 = vlaneseq
    %v2933 = vshrl.u32 %v2932, 7
    %v2934 = vsub.s32 1, %v2933
    %v2935 = vrot.slane %v277, %v2934
    %v2938 = vadd.f32 %v2921, %v2931
    %v2939 = vadd.f32 %v2922, %v2935
    %v2940 = vadd.f32 %v2923, %v2931
    %v2941 = vadd.f32 %v2924, %v2935
    %v2942 = vadd.f32 %v2925, %v2931
    %v2943 = vadd.f32 %v2926, %v2935
    %v2944 = vadd.f32 %v2938, %v2939
    %2945 = vadd.xlane.f32.xlu0 %v2944
    %v2946 = vpop.xlane.xlu0 %2945
    %v2947 = vadd.f32 %v2940, %v2941
    %2948 = vadd.xlane.f32.xlu0 %v2947
    %v2949 = vpop.xlane.xlu0 %2948
    %v2950 = vadd.f32 %v2942, %v2943
    %2951 = vadd.xlane.f32.xlu0 %v2950
    %v2952 = vpop.xlane.xlu0 %2951
    %v2953 = vmul.f32 %v2946, %v818
    %v2954 = vmul.f32 %v2949, %v818
    %v2955 = vmul.f32 %v2952, %v818
    %v2956 = vsub.f32 %v2938, %v2953
    %v2957 = vsub.f32 %v2939, %v2953
    %v2958 = vsub.f32 %v2940, %v2954
    %v2959 = vsub.f32 %v2941, %v2954
    %v2960 = vsub.f32 %v2942, %v2955
    %v2961 = vsub.f32 %v2943, %v2955
    %v2962 = vmul.f32 %v2956, %v2956
    %v2963 = vmul.f32 %v2957, %v2957
    %v2964 = vmul.f32 %v2958, %v2958
    %v2965 = vmul.f32 %v2959, %v2959
    %v2966 = vmul.f32 %v2960, %v2960
    %v2967 = vmul.f32 %v2961, %v2961
    %v2968 = vadd.f32 %v2962, %v2963
    %2969 = vadd.xlane.f32.xlu0 %v2968
    %v2970 = vpop.xlane.xlu0 %2969
    %v2971 = vadd.f32 %v2964, %v2965
    %2972 = vadd.xlane.f32.xlu0 %v2971
    %v2973 = vpop.xlane.xlu0 %2972
    %v2974 = vadd.f32 %v2966, %v2967
    %2975 = vadd.xlane.f32.xlu0 %v2974
    %v2976 = vpop.xlane.xlu0 %2975
    %v2977 = vmul.f32 %v2970, %v818
    %v2978 = vmul.f32 %v2973, %v818
    %v2979 = vmul.f32 %v2976, %v818
    %v2980 = vadd.f32 %v2977, 1e-05
    %v2981 = vadd.f32 %v2978, 1e-05
    %v2982 = vadd.f32 %v2979, 1e-05
    %v2983 = vrsqrt.pop %v2980
    %v2984 = vrsqrt.pop %v2981
    %v2985 = vrsqrt.pop %v2982
    %v2986 = vmul.f32 %v2956, %v2983
    %v2987 = vmul.f32 %v2957, %v2983
    %v2988 = vmul.f32 %v2958, %v2984
    %v2989 = vmul.f32 %v2959, %v2984
    %v2990 = vmul.f32 %v2960, %v2985
    %v2991 = vmul.f32 %v2961, %v2985
    %v2993 = vlaneseq
    %v2994 = vshrl.u32 %v2993, 7
    %v2995 = vsub.s32 0, %v2994
    %v2996 = vrot.slane %v283, %v2995
    %v2997 = vlaneseq
    %v2998 = vshrl.u32 %v2997, 7
    %v2999 = vsub.s32 1, %v2998
    %v3000 = vrot.slane %v283, %v2999
    %v3003 = vmul.f32 %v2986, %v2996
    %v3004 = vmul.f32 %v2987, %v3000
    %v3005 = vmul.f32 %v2988, %v2996
    %v3006 = vmul.f32 %v2989, %v3000
    %v3007 = vmul.f32 %v2990, %v2996
    %v3008 = vmul.f32 %v2991, %v3000
    %v3010 = vlaneseq
    %v3011 = vshrl.u32 %v3010, 7
    %v3012 = vsub.s32 0, %v3011
    %v3013 = vrot.slane %v285, %v3012
    %v3014 = vlaneseq
    %v3015 = vshrl.u32 %v3014, 7
    %v3016 = vsub.s32 1, %v3015
    %v3017 = vrot.slane %v285, %v3016
    %v3020 = vadd.f32 %v3003, %v3013
    %v3021 = vadd.f32 %v3004, %v3017
    %v3022 = vadd.f32 %v3005, %v3013
    %v3023 = vadd.f32 %v3006, %v3017
    %v3024 = vadd.f32 %v3007, %v3013
    %v3025 = vadd.f32 %v3008, %v3017
    %s3026 = scalar_lea.vmem %s6, 16
    %v3027 = vld [vmem:[%s3026] ss:$8 sm:$0x3]
    %s3028 = scalar_lea.vmem %s6, 17
    %v3029 = vld [vmem:[%s3028] ss:$8 sm:$0x3]
    %s3030 = scalar_lea.vmem %s6, 18
    %v3031 = vld [vmem:[%s3030] ss:$8 sm:$0x3]
    %s3032 = scalar_lea.vmem %s6, 19
    %v3033 = vld [vmem:[%s3032] ss:$8 sm:$0x3]
    %s3034 = scalar_lea.vmem %s6, 20
    %v3035 = vld [vmem:[%s3034] ss:$8 sm:$0x3]
    %s3036 = scalar_lea.vmem %s6, 21
    %v3037 = vld [vmem:[%s3036] ss:$8 sm:$0x3]
    %s3038 = scalar_lea.vmem %s6, 22
    %v3039 = vld [vmem:[%s3038] ss:$8 sm:$0x3]
    %s3040 = scalar_lea.vmem %s7, 1
    %v3041 = vld [vmem:[%s3040] ss:$2 sm:$0xff]
    %v3042 = vpack.c.bf16 %v3022, %v3020
    %v3043 = vpack.c.bf16 %v3023, %v3021
    %v3044 = vpack.c.bf16 %v3024, %v3024
    %v3045 = vpack.c.bf16 %v3025, %v3025
    %s3046 = scalar_lea.vmem [#allocation4], 512
    %v3047 = vld [vmem:[%s3046] sm:$0xff]
    %v3048 = vld [vmem:[%s3046 + $0x10] sm:$0xff]
    %v3049 = vld [vmem:[%s3046 + $0x20] sm:$0xff]
    %v3050 = vld [vmem:[%s3046 + $0x30] sm:$0xff]
    %v3051 = vld [vmem:[%s3046 + $0x40] sm:$0xff]
    %v3052 = vld [vmem:[%s3046 + $0x50] sm:$0xff]
    %v3053 = vld [vmem:[%s3046 + $0x60] sm:$0xff]
    %v3054 = vld [vmem:[%s3046 + $0x70] sm:$0xff]
    %v3055 = vld [vmem:[%s3046 + $0x80] sm:$0xff]
    %v3056 = vld [vmem:[%s3046 + $0x90] sm:$0xff]
    %v3057 = vld [vmem:[%s3046 + $0xa0] sm:$0xff]
    %v3058 = vld [vmem:[%s3046 + $0xb0] sm:$0xff]
    %v3059 = vld [vmem:[%s3046 + $0xc0] sm:$0xff]
    %v3060 = vld [vmem:[%s3046 + $0xd0] sm:$0xff]
    %v3061 = vld [vmem:[%s3046 + $0xe0] sm:$0xff]
    %v3062 = vld [vmem:[%s3046 + $0xf0] sm:$0xff]
    %v3063 = vld [vmem:[%s3046 + $0x100] sm:$0xff]
    %v3064 = vld [vmem:[%s3046 + $0x110] sm:$0xff]
    %v3065 = vld [vmem:[%s3046 + $0x120] sm:$0xff]
    %v3066 = vld [vmem:[%s3046 + $0x130] sm:$0xff]
    %v3067 = vld [vmem:[%s3046 + $0x140] sm:$0xff]
    %v3068 = vld [vmem:[%s3046 + $0x150] sm:$0xff]
    %v3069 = vld [vmem:[%s3046 + $0x160] sm:$0xff]
    %v3070 = vld [vmem:[%s3046 + $0x170] sm:$0xff]
    %v3071 = vld [vmem:[%s3046 + $0x180] sm:$0xff]
    %v3072 = vld [vmem:[%s3046 + $0x190] sm:$0xff]
    %v3073 = vld [vmem:[%s3046 + $0x1a0] sm:$0xff]
    %v3074 = vld [vmem:[%s3046 + $0x1b0] sm:$0xff]
    %v3075 = vld [vmem:[%s3046 + $0x1c0] sm:$0xff]
    %v3076 = vld [vmem:[%s3046 + $0x1d0] sm:$0xff]
    %v3077 = vld [vmem:[%s3046 + $0x1e0] sm:$0xff]
    %v3078 = vld [vmem:[%s3046 + $0x1f0] sm:$0xff]
    %v3080 = vlaneseq
    %v3081 = vshrl.u32 %v3080, 7
    %v3082 = vsub.s32 0, %v3081
    %v3083 = vrot.slane %v3027, %v3082
    %v3084 = vlaneseq
    %v3085 = vshrl.u32 %v3084, 7
    %v3086 = vsub.s32 1, %v3085
    %v3087 = vrot.slane %v3027, %v3086
    %v3122 = vunpack.c.l.b16 %v3047
    %v3123 = vunpack.c.h.b16 %v3047
    %v3124 = vunpack.c.l.b16 %v3048
    %v3125 = vunpack.c.h.b16 %v3048
    %v3126 = vunpack.c.l.b16 %v3049
    %v3127 = vunpack.c.h.b16 %v3049
    %v3128 = vunpack.c.l.b16 %v3050
    %v3129 = vunpack.c.h.b16 %v3050
    %v3130 = vunpack.c.l.b16 %v3051
    %v3131 = vunpack.c.h.b16 %v3051
    %v3132 = vunpack.c.l.b16 %v3052
    %v3133 = vunpack.c.h.b16 %v3052
    %v3134 = vunpack.c.l.b16 %v3053
    %v3135 = vunpack.c.h.b16 %v3053
    %v3136 = vunpack.c.l.b16 %v3054
    %v3137 = vunpack.c.h.b16 %v3054
    %v3138 = vunpack.c.l.b16 %v3055
    %v3139 = vunpack.c.h.b16 %v3055
    %v3140 = vunpack.c.l.b16 %v3056
    %v3141 = vunpack.c.h.b16 %v3056
    %v3142 = vunpack.c.l.b16 %v3057
    %v3143 = vunpack.c.h.b16 %v3057
    %v3144 = vunpack.c.l.b16 %v3058
    %v3145 = vunpack.c.h.b16 %v3058
    %v3146 = vunpack.c.l.b16 %v3059
    %v3147 = vunpack.c.h.b16 %v3059
    %v3148 = vunpack.c.l.b16 %v3060
    %v3149 = vunpack.c.h.b16 %v3060
    %v3150 = vunpack.c.l.b16 %v3061
    %v3151 = vunpack.c.h.b16 %v3061
    %v3152 = vunpack.c.l.b16 %v3062
    %v3153 = vunpack.c.h.b16 %v3062
    %v3154 = vunpack.c.l.b16 %v3063
    %v3155 = vunpack.c.h.b16 %v3063
    %v3156 = vunpack.c.l.b16 %v3064
    %v3157 = vunpack.c.h.b16 %v3064
    %v3158 = vunpack.c.l.b16 %v3065
    %v3159 = vunpack.c.h.b16 %v3065
    %v3160 = vunpack.c.l.b16 %v3066
    %v3161 = vunpack.c.h.b16 %v3066
    %v3162 = vunpack.c.l.b16 %v3067
    %v3163 = vunpack.c.h.b16 %v3067
    %v3164 = vunpack.c.l.b16 %v3068
    %v3165 = vunpack.c.h.b16 %v3068
    %v3166 = vunpack.c.l.b16 %v3069
    %v3167 = vunpack.c.h.b16 %v3069
    %v3168 = vunpack.c.l.b16 %v3070
    %v3169 = vunpack.c.h.b16 %v3070
    %v3170 = vunpack.c.l.b16 %v3071
    %v3171 = vunpack.c.h.b16 %v3071
    %v3172 = vunpack.c.l.b16 %v3072
    %v3173 = vunpack.c.h.b16 %v3072
    %v3174 = vunpack.c.l.b16 %v3073
    %v3175 = vunpack.c.h.b16 %v3073
    %v3176 = vunpack.c.l.b16 %v3074
    %v3177 = vunpack.c.h.b16 %v3074
    %v3178 = vunpack.c.l.b16 %v3075
    %v3179 = vunpack.c.h.b16 %v3075
    %v3180 = vunpack.c.l.b16 %v3076
    %v3181 = vunpack.c.h.b16 %v3076
    %v3182 = vunpack.c.l.b16 %v3077
    %v3183 = vunpack.c.h.b16 %v3077
    %v3184 = vunpack.c.l.b16 %v3078
    %v3185 = vunpack.c.h.b16 %v3078
    %v3186 = vpack.c.b16 %v3124, %v3122
    %v3187 = vpack.c.b16 %v3125, %v3123
    %v3188 = vpack.c.b16 %v3128, %v3126
    %v3189 = vpack.c.b16 %v3129, %v3127
    %v3190 = vpack.c.b16 %v3132, %v3130
    %v3191 = vpack.c.b16 %v3133, %v3131
    %v3192 = vpack.c.b16 %v3136, %v3134
    %v3193 = vpack.c.b16 %v3137, %v3135
    %v3194 = vpack.c.b16 %v3140, %v3138
    %v3195 = vpack.c.b16 %v3141, %v3139
    %v3196 = vpack.c.b16 %v3144, %v3142
    %v3197 = vpack.c.b16 %v3145, %v3143
    %v3198 = vpack.c.b16 %v3148, %v3146
    %v3199 = vpack.c.b16 %v3149, %v3147
    %v3200 = vpack.c.b16 %v3152, %v3150
    %v3201 = vpack.c.b16 %v3153, %v3151
    %v3202 = vpack.c.b16 %v3156, %v3154
    %v3203 = vpack.c.b16 %v3157, %v3155
    %v3204 = vpack.c.b16 %v3160, %v3158
    %v3205 = vpack.c.b16 %v3161, %v3159
    %v3206 = vpack.c.b16 %v3164, %v3162
    %v3207 = vpack.c.b16 %v3165, %v3163
    %v3208 = vpack.c.b16 %v3168, %v3166
    %v3209 = vpack.c.b16 %v3169, %v3167
    %v3210 = vpack.c.b16 %v3172, %v3170
    %v3211 = vpack.c.b16 %v3173, %v3171
    %v3212 = vpack.c.b16 %v3176, %v3174
    %v3213 = vpack.c.b16 %v3177, %v3175
    %v3214 = vpack.c.b16 %v3180, %v3178
    %v3215 = vpack.c.b16 %v3181, %v3179
    %v3216 = vpack.c.b16 %v3184, %v3182
    %v3217 = vpack.c.b16 %v3185, %v3183
    %3250 = vmatprep.subr.bf16.mxu0 %v3187
    %3251 = vmatpush1.bf16.msra.mxu0 %v3186
    %3252 = vmatprep.subr.bf16.mxu0 %v3189
    %3253 = vmatpush1.bf16.msra.mxu0 %v3188
    %3254 = vmatprep.subr.bf16.mxu0 %v3191
    %3255 = vmatpush1.bf16.msra.mxu0 %v3190
    %3256 = vmatprep.subr.bf16.mxu0 %v3193
    %3257 = vmatpush1.bf16.msra.mxu0 %v3192
    %3258 = vmatprep.subr.bf16.mxu0 %v3195
    %3259 = vmatpush1.bf16.msra.mxu0 %v3194
    %3260 = vmatprep.subr.bf16.mxu0 %v3197
    %3261 = vmatpush1.bf16.msra.mxu0 %v3196
    %3262 = vmatprep.subr.bf16.mxu0 %v3199
    %3263 = vmatpush1.bf16.msra.mxu0 %v3198
    %3264 = vmatprep.subr.bf16.mxu0 %v3201
    %3265 = vmatpush1.bf16.msra.mxu0 %v3200
    %3266 = vmatprep.subr.bf16.mxu0 %v3203
    %3267 = vmatpush1.bf16.msra.mxu0 %v3202
    %3268 = vmatprep.subr.bf16.mxu0 %v3205
    %3269 = vmatpush1.bf16.msra.mxu0 %v3204
    %3270 = vmatprep.subr.bf16.mxu0 %v3207
    %3271 = vmatpush1.bf16.msra.mxu0 %v3206
    %3272 = vmatprep.subr.bf16.mxu0 %v3209
    %3273 = vmatpush1.bf16.msra.mxu0 %v3208
    %3274 = vmatprep.subr.bf16.mxu0 %v3211
    %3275 = vmatpush1.bf16.msra.mxu0 %v3210
    %3276 = vmatprep.subr.bf16.mxu0 %v3213
    %3277 = vmatpush1.bf16.msra.mxu0 %v3212
    %3278 = vmatprep.subr.bf16.mxu0 %v3215
    %3279 = vmatpush1.bf16.msra.mxu0 %v3214
    %3280 = vmatprep.subr.bf16.mxu0 %v3217
    %3281 = vmatpush1.bf16.msra.mxu0 %v3216
    %3282 = vmatprep.mubr.bf16.mxu0 %v3043
    %3283 = vmatmul.mubr.bf16.gmra.mrb[0].mxu0 %v3042
    %v3284 = vpop.f32.mrb[0].mxu0
    %v3285 = vadd.f32 %v3083, %v3284
    %v3286 = vpop.f32.mrb[0].mxu0
    %v3287 = vadd.f32 %v3087, %v3286
    %v3288 = vpop.f32.mrb[0].mxu0
    %v3289 = vadd.f32 %v3083, %v3288
    %v3290 = vpop.f32.mrb[0].mxu0
    %v3291 = vadd.f32 %v3087, %v3290
    %3292 = vmatprep.mubr.bf16.mxu0 %v3045
    %3293 = vmatmul.mubr.bf16.gmra.mrb[0].mxu0 %v3044
    %v3294 = vpop.f32.mrb[0].mxu0
    %v3295 = vadd.f32 %v3083, %v3294
    %v3296 = vpop.f32.mrb[0].mxu0
    %v3297 = vadd.f32 %v3087, %v3296
    %v3298 = vpop.f32.mrb[0].mxu0
    %v3299 = vpop.f32.mrb[0].mxu0
    %3300 = vdwg.mxu0
    %v3301 = vpack.c.bf16 %v3289, %v3285
    %v3302 = vpack.c.bf16 %v3291, %v3287
    %v3303 = vpack.c.bf16 %v3295, %v3295
    %v3304 = vpack.c.bf16 %v3297, %v3297
    %v3305 = vld [vmem:[%s3046 + $0x8] sm:$0xff]
    %v3306 = vld [vmem:[%s3046 + $0x18] sm:$0xff]
    %v3307 = vld [vmem:[%s3046 + $0x28] sm:$0xff]
    %v3308 = vld [vmem:[%s3046 + $0x38] sm:$0xff]
    %v3309 = vld [vmem:[%s3046 + $0x48] sm:$0xff]
    %v3310 = vld [vmem:[%s3046 + $0x58] sm:$0xff]
    %v3311 = vld [vmem:[%s3046 + $0x68] sm:$0xff]
    %v3312 = vld [vmem:[%s3046 + $0x78] sm:$0xff]
    %v3313 = vld [vmem:[%s3046 + $0x88] sm:$0xff]
    %v3314 = vld [vmem:[%s3046 + $0x98] sm:$0xff]
    %v3315 = vld [vmem:[%s3046 + $0xa8] sm:$0xff]
    %v3316 = vld [vmem:[%s3046 + $0xb8] sm:$0xff]
    %v3317 = vld [vmem:[%s3046 + $0xc8] sm:$0xff]
    %v3318 = vld [vmem:[%s3046 + $0xd8] sm:$0xff]
    %v3319 = vld [vmem:[%s3046 + $0xe8] sm:$0xff]
    %v3320 = vld [vmem:[%s3046 + $0xf8] sm:$0xff]
    %v3321 = vld [vmem:[%s3046 + $0x108] sm:$0xff]
    %v3322 = vld [vmem:[%s3046 + $0x118] sm:$0xff]
    %v3323 = vld [vmem:[%s3046 + $0x128] sm:$0xff]
    %v3324 = vld [vmem:[%s3046 + $0x138] sm:$0xff]
    %v3325 = vld [vmem:[%s3046 + $0x148] sm:$0xff]
    %v3326 = vld [vmem:[%s3046 + $0x158] sm:$0xff]
    %v3327 = vld [vmem:[%s3046 + $0x168] sm:$0xff]
    %v3328 = vld [vmem:[%s3046 + $0x178] sm:$0xff]
    %v3329 = vld [vmem:[%s3046 + $0x188] sm:$0xff]
    %v3330 = vld [vmem:[%s3046 + $0x198] sm:$0xff]
    %v3331 = vld [vmem:[%s3046 + $0x1a8] sm:$0xff]
    %v3332 = vld [vmem:[%s3046 + $0x1b8] sm:$0xff]
    %v3333 = vld [vmem:[%s3046 + $0x1c8] sm:$0xff]
    %v3334 = vld [vmem:[%s3046 + $0x1d8] sm:$0xff]
    %v3335 = vld [vmem:[%s3046 + $0x1e8] sm:$0xff]
    %v3336 = vld [vmem:[%s3046 + $0x1f8] sm:$0xff]
    %v3338 = vlaneseq
    %v3339 = vshrl.u32 %v3338, 7
    %v3340 = vsub.s32 0, %v3339
    %v3341 = vrot.slane %v3029, %v3340
    %v3342 = vlaneseq
    %v3343 = vshrl.u32 %v3342, 7
    %v3344 = vsub.s32 1, %v3343
    %v3345 = vrot.slane %v3029, %v3344
    %v3380 = vunpack.c.l.b16 %v3305
    %v3381 = vunpack.c.h.b16 %v3305
    %v3382 = vunpack.c.l.b16 %v3306
    %v3383 = vunpack.c.h.b16 %v3306
    %v3384 = vunpack.c.l.b16 %v3307
    %v3385 = vunpack.c.h.b16 %v3307
    %v3386 = vunpack.c.l.b16 %v3308
    %v3387 = vunpack.c.h.b16 %v3308
    %v3388 = vunpack.c.l.b16 %v3309
    %v3389 = vunpack.c.h.b16 %v3309
    %v3390 = vunpack.c.l.b16 %v3310
    %v3391 = vunpack.c.h.b16 %v3310
    %v3392 = vunpack.c.l.b16 %v3311
    %v3393 = vunpack.c.h.b16 %v3311
    %v3394 = vunpack.c.l.b16 %v3312
    %v3395 = vunpack.c.h.b16 %v3312
    %v3396 = vunpack.c.l.b16 %v3313
    %v3397 = vunpack.c.h.b16 %v3313
    %v3398 = vunpack.c.l.b16 %v3314
    %v3399 = vunpack.c.h.b16 %v3314
    %v3400 = vunpack.c.l.b16 %v3315
    %v3401 = vunpack.c.h.b16 %v3315
    %v3402 = vunpack.c.l.b16 %v3316
    %v3403 = vunpack.c.h.b16 %v3316
    %v3404 = vunpack.c.l.b16 %v3317
    %v3405 = vunpack.c.h.b16 %v3317
    %v3406 = vunpack.c.l.b16 %v3318
    %v3407 = vunpack.c.h.b16 %v3318
    %v3408 = vunpack.c.l.b16 %v3319
    %v3409 = vunpack.c.h.b16 %v3319
    %v3410 = vunpack.c.l.b16 %v3320
    %v3411 = vunpack.c.h.b16 %v3320
    %v3412 = vunpack.c.l.b16 %v3321
    %v3413 = vunpack.c.h.b16 %v3321
    %v3414 = vunpack.c.l.b16 %v3322
    %v3415 = vunpack.c.h.b16 %v3322
    %v3416 = vunpack.c.l.b16 %v3323
    %v3417 = vunpack.c.h.b16 %v3323
    %v3418 = vunpack.c.l.b16 %v3324
    %v3419 = vunpack.c.h.b16 %v3324
    %v3420 = vunpack.c.l.b16 %v3325
    %v3421 = vunpack.c.h.b16 %v3325
    %v3422 = vunpack.c.l.b16 %v3326
    %v3423 = vunpack.c.h.b16 %v3326
    %v3424 = vunpack.c.l.b16 %v3327
    %v3425 = vunpack.c.h.b16 %v3327
    %v3426 = vunpack.c.l.b16 %v3328
    %v3427 = vunpack.c.h.b16 %v3328
    %v3428 = vunpack.c.l.b16 %v3329
    %v3429 = vunpack.c.h.b16 %v3329
    %v3430 = vunpack.c.l.b16 %v3330
    %v3431 = vunpack.c.h.b16 %v3330
    %v3432 = vunpack.c.l.b16 %v3331
    %v3433 = vunpack.c.h.b16 %v3331
    %v3434 = vunpack.c.l.b16 %v3332
    %v3435 = vunpack.c.h.b16 %v3332
    %v3436 = vunpack.c.l.b16 %v3333
    %v3437 = vunpack.c.h.b16 %v3333
    %v3438 = vunpack.c.l.b16 %v3334
    %v3439 = vunpack.c.h.b16 %v3334
    %v3440 = vunpack.c.l.b16 %v3335
    %v3441 = vunpack.c.h.b16 %v3335
    %v3442 = vunpack.c.l.b16 %v3336
    %v3443 = vunpack.c.h.b16 %v3336
    %v3444 = vpack.c.b16 %v3382, %v3380
    %v3445 = vpack.c.b16 %v3383, %v3381
    %v3446 = vpack.c.b16 %v3386, %v3384
    %v3447 = vpack.c.b16 %v3387, %v3385
    %v3448 = vpack.c.b16 %v3390, %v3388
    %v3449 = vpack.c.b16 %v3391, %v3389
    %v3450 = vpack.c.b16 %v3394, %v3392
    %v3451 = vpack.c.b16 %v3395, %v3393
    %v3452 = vpack.c.b16 %v3398, %v3396
    %v3453 = vpack.c.b16 %v3399, %v3397
    %v3454 = vpack.c.b16 %v3402, %v3400
    %v3455 = vpack.c.b16 %v3403, %v3401
    %v3456 = vpack.c.b16 %v3406, %v3404
    %v3457 = vpack.c.b16 %v3407, %v3405
    %v3458 = vpack.c.b16 %v3410, %v3408
    %v3459 = vpack.c.b16 %v3411, %v3409
    %v3460 = vpack.c.b16 %v3414, %v3412
    %v3461 = vpack.c.b16 %v3415, %v3413
    %v3462 = vpack.c.b16 %v3418, %v3416
    %v3463 = vpack.c.b16 %v3419, %v3417
    %v3464 = vpack.c.b16 %v3422, %v3420
    %v3465 = vpack.c.b16 %v3423, %v3421
    %v3466 = vpack.c.b16 %v3426, %v3424
    %v3467 = vpack.c.b16 %v3427, %v3425
    %v3468 = vpack.c.b16 %v3430, %v3428
    %v3469 = vpack.c.b16 %v3431, %v3429
    %v3470 = vpack.c.b16 %v3434, %v3432
    %v3471 = vpack.c.b16 %v3435, %v3433
    %v3472 = vpack.c.b16 %v3438, %v3436
    %v3473 = vpack.c.b16 %v3439, %v3437
    %v3474 = vpack.c.b16 %v3442, %v3440
    %v3475 = vpack.c.b16 %v3443, %v3441
    %3508 = vmatprep.subr.bf16.mxu0 %v3445
    %3509 = vmatpush1.bf16.msra.mxu0 %v3444
    %3510 = vmatprep.subr.bf16.mxu0 %v3447
    %3511 = vmatpush1.bf16.msra.mxu0 %v3446
    %3512 = vmatprep.subr.bf16.mxu0 %v3449
    %3513 = vmatpush1.bf16.msra.mxu0 %v3448
    %3514 = vmatprep.subr.bf16.mxu0 %v3451
    %3515 = vmatpush1.bf16.msra.mxu0 %v3450
    %3516 = vmatprep.subr.bf16.mxu0 %v3453
    %3517 = vmatpush1.bf16.msra.mxu0 %v3452
    %3518 = vmatprep.subr.bf16.mxu0 %v3455
    %3519 = vmatpush1.bf16.msra.mxu0 %v3454
    %3520 = vmatprep.subr.bf16.mxu0 %v3457
    %3521 = vmatpush1.bf16.msra.mxu0 %v3456
    %3522 = vmatprep.subr.bf16.mxu0 %v3459
    %3523 = vmatpush1.bf16.msra.mxu0 %v3458
    %3524 = vmatprep.subr.bf16.mxu0 %v3461
    %3525 = vmatpush1.bf16.msra.mxu0 %v3460
    %3526 = vmatprep.subr.bf16.mxu0 %v3463
    %3527 = vmatpush1.bf16.msra.mxu0 %v3462
    %3528 = vmatprep.subr.bf16.mxu0 %v3465
    %3529 = vmatpush1.bf16.msra.mxu0 %v3464
    %3530 = vmatprep.subr.bf16.mxu0 %v3467
    %3531 = vmatpush1.bf16.msra.mxu0 %v3466
    %3532 = vmatprep.subr.bf16.mxu0 %v3469
    %3533 = vmatpush1.bf16.msra.mxu0 %v3468
    %3534 = vmatprep.subr.bf16.mxu0 %v3471
    %3535 = vmatpush1.bf16.msra.mxu0 %v3470
    %3536 = vmatprep.subr.bf16.mxu0 %v3473
    %3537 = vmatpush1.bf16.msra.mxu0 %v3472
    %3538 = vmatprep.subr.bf16.mxu0 %v3475
    %3539 = vmatpush1.bf16.msra.mxu0 %v3474
    %3540 = vmatprep.mubr.bf16.mxu0 %v3302
    %3541 = vmatmul.mubr.bf16.gmra.mrb[0].mxu0 %v3301
    %v3542 = vpop.f32.mrb[0].mxu0
    %v3543 = vadd.f32 %v3341, %v3542
    %v3544 = vpop.f32.mrb[0].mxu0
    %v3545 = vadd.f32 %v3345, %v3544
    %v3546 = vpop.f32.mrb[0].mxu0
    %v3547 = vadd.f32 %v3341, %v3546
    %v3548 = vpop.f32.mrb[0].mxu0
    %v3549 = vadd.f32 %v3345, %v3548
    %3550 = vmatprep.mubr.bf16.mxu0 %v3304
    %3551 = vmatmul.mubr.bf16.gmra.mrb[0].mxu0 %v3303
    %v3552 = vpop.f32.mrb[0].mxu0
    %v3553 = vadd.f32 %v3341, %v3552
    %v3554 = vpop.f32.mrb[0].mxu0
    %v3555 = vadd.f32 %v3345, %v3554
    %v3556 = vpop.f32.mrb[0].mxu0
    %v3557 = vpop.f32.mrb[0].mxu0
    %3558 = vdwg.mxu0
    %v3559 = vadd.f32 %v3020, %v3543
    %v3560 = vadd.f32 %v3021, %v3545
    %v3561 = vadd.f32 %v3022, %v3547
    %v3562 = vadd.f32 %v3023, %v3549
    %v3563 = vadd.f32 %v3024, %v3553
    %v3564 = vadd.f32 %v3025, %v3555
    %v3565 = vadd.f32 %v3559, %v3560
    %3566 = vadd.xlane.f32.xlu0 %v3565
    %v3567 = vpop.xlane.xlu0 %3566
    %v3568 = vadd.f32 %v3561, %v3562
    %3569 = vadd.xlane.f32.xlu0 %v3568
    %v3570 = vpop.xlane.xlu0 %3569
    %v3571 = vadd.f32 %v3563, %v3564
    %3572 = vadd.xlane.f32.xlu0 %v3571
    %v3573 = vpop.xlane.xlu0 %3572
    %v3574 = vmul.f32 %v3567, %v818
    %v3575 = vmul.f32 %v3570, %v818
    %v3576 = vmul.f32 %v3573, %v818
    %v3577 = vsub.f32 %v3559, %v3574
    %v3578 = vsub.f32 %v3560, %v3574
    %v3579 = vsub.f32 %v3561, %v3575
    %v3580 = vsub.f32 %v3562, %v3575
    %v3581 = vsub.f32 %v3563, %v3576
    %v3582 = vsub.f32 %v3564, %v3576
    %v3583 = vmul.f32 %v3577, %v3577
    %v3584 = vmul.f32 %v3578, %v3578
    %v3585 = vmul.f32 %v3579, %v3579
    %v3586 = vmul.f32 %v3580, %v3580
    %v3587 = vmul.f32 %v3581, %v3581
    %v3588 = vmul.f32 %v3582, %v3582
    %v3589 = vadd.f32 %v3583, %v3584
    %3590 = vadd.xlane.f32.xlu0 %v3589
    %v3591 = vpop.xlane.xlu0 %3590
    %v3592 = vadd.f32 %v3585, %v3586
    %3593 = vadd.xlane.f32.xlu0 %v3592
    %v3594 = vpop.xlane.xlu0 %3593
    %v3595 = vadd.f32 %v3587, %v3588
    %3596 = vadd.xlane.f32.xlu0 %v3595
    %v3597 = vpop.xlane.xlu0 %3596
    %v3598 = vmul.f32 %v3591, %v818
    %v3599 = vmul.f32 %v3594, %v818
    %v3600 = vmul.f32 %v3597, %v818
    %v3601 = vadd.f32 %v3598, 1e-05
    %v3602 = vadd.f32 %v3599, 1e-05
    %v3603 = vadd.f32 %v3600, 1e-05
    %v3604 = vrsqrt.pop %v3601
    %v3605 = vrsqrt.pop %v3602
    %v3606 = vrsqrt.pop %v3603
    %v3607 = vmul.f32 %v3577, %v3604
    %v3608 = vmul.f32 %v3578, %v3604
    %v3609 = vmul.f32 %v3579, %v3605
    %v3610 = vmul.f32 %v3580, %v3605
    %v3611 = vmul.f32 %v3581, %v3606
    %v3612 = vmul.f32 %v3582, %v3606
    %v3614 = vlaneseq
    %v3615 = vshrl.u32 %v3614, 7
    %v3616 = vsub.s32 0, %v3615
    %v3617 = vrot.slane %v3033, %v3616
    %v3618 = vlaneseq
    %v3619 = vshrl.u32 %v3618, 7
    %v3620 = vsub.s32 1, %v3619
    %v3621 = vrot.slane %v3033, %v3620
    %v3624 = vmul.f32 %v3607, %v3617
    %v3625 = vmul.f32 %v3608, %v3621
    %v3626 = vmul.f32 %v3609, %v3617
    %v3627 = vmul.f32 %v3610, %v3621
    %v3628 = vmul.f32 %v3611, %v3617
    %v3629 = vmul.f32 %v3612, %v3621
    %v3631 = vlaneseq
    %v3632 = vshrl.u32 %v3631, 7
    %v3633 = vsub.s32 0, %v3632
    %v3634 = vrot.slane %v3035, %v3633
    %v3635 = vlaneseq
    %v3636 = vshrl.u32 %v3635, 7
    %v3637 = vsub.s32 1, %v3636
    %v3638 = vrot.slane %v3035, %v3637
    %v3641 = vadd.f32 %v3624, %v3634
    %v3642 = vadd.f32 %v3625, %v3638
    %v3643 = vadd.f32 %v3626, %v3634
    %v3644 = vadd.f32 %v3627, %v3638
    %v3645 = vadd.f32 %v3628, %v3634
    %v3646 = vadd.f32 %v3629, %v3638
    %v3647 = vpack.c.bf16 %v3643, %v3641
    %v3648 = vpack.c.bf16 %v3644, %v3642
    %v3649 = vpack.c.bf16 %v3645, %v3645
    %v3650 = vpack.c.bf16 %v3646, %v3646
    %s3651 = scalar_lea.vmem [#allocation6], 1024
    %v3652 = vld [vmem:[%s3651] sm:$0xff]
    %v3653 = vld [vmem:[%s3651 + $0x8] sm:$0xff]
    %v3654 = vld [vmem:[%s3651 + $0x10] sm:$0xff]
    %v3655 = vld [vmem:[%s3651 + $0x18] sm:$0xff]
    %v3656 = vld [vmem:[%s3651 + $0x20] sm:$0xff]
    %v3657 = vld [vmem:[%s3651 + $0x28] sm:$0xff]
    %v3658 = vld [vmem:[%s3651 + $0x30] sm:$0xff]
    %v3659 = vld [vmem:[%s3651 + $0x38] sm:$0xff]
    %v3660 = vld [vmem:[%s3651 + $0x40] sm:$0xff]
    %v3661 = vld [vmem:[%s3651 + $0x48] sm:$0xff]
    %v3662 = vld [vmem:[%s3651 + $0x50] sm:$0xff]
    %v3663 = vld [vmem:[%s3651 + $0x58] sm:$0xff]
    %v3664 = vld [vmem:[%s3651 + $0x60] sm:$0xff]
    %v3665 = vld [vmem:[%s3651 + $0x68] sm:$0xff]
    %v3666 = vld [vmem:[%s3651 + $0x70] sm:$0xff]
    %v3667 = vld [vmem:[%s3651 + $0x78] sm:$0xff]
    %v3668 = vld [vmem:[%s3651 + $0x80] sm:$0xff]
    %v3669 = vld [vmem:[%s3651 + $0x88] sm:$0xff]
    %v3670 = vld [vmem:[%s3651 + $0x90] sm:$0xff]
    %v3671 = vld [vmem:[%s3651 + $0x98] sm:$0xff]
    %v3672 = vld [vmem:[%s3651 + $0xa0] sm:$0xff]
    %v3673 = vld [vmem:[%s3651 + $0xa8] sm:$0xff]
    %v3674 = vld [vmem:[%s3651 + $0xb0] sm:$0xff]
    %v3675 = vld [vmem:[%s3651 + $0xb8] sm:$0xff]
    %v3676 = vld [vmem:[%s3651 + $0xc0] sm:$0xff]
    %v3677 = vld [vmem:[%s3651 + $0xc8] sm:$0xff]
    %v3678 = vld [vmem:[%s3651 + $0xd0] sm:$0xff]
    %v3679 = vld [vmem:[%s3651 + $0xd8] sm:$0xff]
    %v3680 = vld [vmem:[%s3651 + $0xe0] sm:$0xff]
    %v3681 = vld [vmem:[%s3651 + $0xe8] sm:$0xff]
    %v3682 = vld [vmem:[%s3651 + $0xf0] sm:$0xff]
    %v3683 = vld [vmem:[%s3651 + $0xf8] sm:$0xff]
    %v3684 = vld [vmem:[%s3651 + $0x100] sm:$0xff]
    %v3685 = vld [vmem:[%s3651 + $0x108] sm:$0xff]
    %v3686 = vld [vmem:[%s3651 + $0x110] sm:$0xff]
    %v3687 = vld [vmem:[%s3651 + $0x118] sm:$0xff]
    %v3688 = vld [vmem:[%s3651 + $0x120] sm:$0xff]
    %v3689 = vld [vmem:[%s3651 + $0x128] sm:$0xff]
    %v3690 = vld [vmem:[%s3651 + $0x130] sm:$0xff]
    %v3691 = vld [vmem:[%s3651 + $0x138] sm:$0xff]
    %v3692 = vld [vmem:[%s3651 + $0x140] sm:$0xff]
    %v3693 = vld [vmem:[%s3651 + $0x148] sm:$0xff]
    %v3694 = vld [vmem:[%s3651 + $0x150] sm:$0xff]
    %v3695 = vld [vmem:[%s3651 + $0x158] sm:$0xff]
    %v3696 = vld [vmem:[%s3651 + $0x160] sm:$0xff]
    %v3697 = vld [vmem:[%s3651 + $0x168] sm:$0xff]
    %v3698 = vld [vmem:[%s3651 + $0x170] sm:$0xff]
    %v3699 = vld [vmem:[%s3651 + $0x178] sm:$0xff]
    %v3700 = vld [vmem:[%s3651 + $0x180] sm:$0xff]
    %v3701 = vld [vmem:[%s3651 + $0x188] sm:$0xff]
    %v3702 = vld [vmem:[%s3651 + $0x190] sm:$0xff]
    %v3703 = vld [vmem:[%s3651 + $0x198] sm:$0xff]
    %v3704 = vld [vmem:[%s3651 + $0x1a0] sm:$0xff]
    %v3705 = vld [vmem:[%s3651 + $0x1a8] sm:$0xff]
    %v3706 = vld [vmem:[%s3651 + $0x1b0] sm:$0xff]
    %v3707 = vld [vmem:[%s3651 + $0x1b8] sm:$0xff]
    %v3708 = vld [vmem:[%s3651 + $0x1c0] sm:$0xff]
    %v3709 = vld [vmem:[%s3651 + $0x1c8] sm:$0xff]
    %v3710 = vld [vmem:[%s3651 + $0x1d0] sm:$0xff]
    %v3711 = vld [vmem:[%s3651 + $0x1d8] sm:$0xff]
    %v3712 = vld [vmem:[%s3651 + $0x1e0] sm:$0xff]
    %v3713 = vld [vmem:[%s3651 + $0x1e8] sm:$0xff]
    %v3714 = vld [vmem:[%s3651 + $0x1f0] sm:$0xff]
    %v3715 = vld [vmem:[%s3651 + $0x1f8] sm:$0xff]
    %v3716 = vld [vmem:[%s3651 + $0x200] sm:$0xff]
    %v3717 = vld [vmem:[%s3651 + $0x208] sm:$0xff]
    %v3718 = vld [vmem:[%s3651 + $0x210] sm:$0xff]
    %v3719 = vld [vmem:[%s3651 + $0x218] sm:$0xff]
    %v3720 = vld [vmem:[%s3651 + $0x220] sm:$0xff]
    %v3721 = vld [vmem:[%s3651 + $0x228] sm:$0xff]
    %v3722 = vld [vmem:[%s3651 + $0x230] sm:$0xff]
    %v3723 = vld [vmem:[%s3651 + $0x238] sm:$0xff]
    %v3724 = vld [vmem:[%s3651 + $0x240] sm:$0xff]
    %v3725 = vld [vmem:[%s3651 + $0x248] sm:$0xff]
    %v3726 = vld [vmem:[%s3651 + $0x250] sm:$0xff]
    %v3727 = vld [vmem:[%s3651 + $0x258] sm:$0xff]
    %v3728 = vld [vmem:[%s3651 + $0x260] sm:$0xff]
    %v3729 = vld [vmem:[%s3651 + $0x268] sm:$0xff]
    %v3730 = vld [vmem:[%s3651 + $0x270] sm:$0xff]
    %v3731 = vld [vmem:[%s3651 + $0x278] sm:$0xff]
    %v3732 = vld [vmem:[%s3651 + $0x280] sm:$0xff]
    %v3733 = vld [vmem:[%s3651 + $0x288] sm:$0xff]
    %v3734 = vld [vmem:[%s3651 + $0x290] sm:$0xff]
    %v3735 = vld [vmem:[%s3651 + $0x298] sm:$0xff]
    %v3736 = vld [vmem:[%s3651 + $0x2a0] sm:$0xff]
    %v3737 = vld [vmem:[%s3651 + $0x2a8] sm:$0xff]
    %v3738 = vld [vmem:[%s3651 + $0x2b0] sm:$0xff]
    %v3739 = vld [vmem:[%s3651 + $0x2b8] sm:$0xff]
    %v3740 = vld [vmem:[%s3651 + $0x2c0] sm:$0xff]
    %v3741 = vld [vmem:[%s3651 + $0x2c8] sm:$0xff]
    %v3742 = vld [vmem:[%s3651 + $0x2d0] sm:$0xff]
    %v3743 = vld [vmem:[%s3651 + $0x2d8] sm:$0xff]
    %v3744 = vld [vmem:[%s3651 + $0x2e0] sm:$0xff]
    %v3745 = vld [vmem:[%s3651 + $0x2e8] sm:$0xff]
    %v3746 = vld [vmem:[%s3651 + $0x2f0] sm:$0xff]
    %v3747 = vld [vmem:[%s3651 + $0x2f8] sm:$0xff]
    %v3748 = vld [vmem:[%s3651 + $0x300] sm:$0xff]
    %v3749 = vld [vmem:[%s3651 + $0x308] sm:$0xff]
    %v3750 = vld [vmem:[%s3651 + $0x310] sm:$0xff]
    %v3751 = vld [vmem:[%s3651 + $0x318] sm:$0xff]
    %v3752 = vld [vmem:[%s3651 + $0x320] sm:$0xff]
    %v3753 = vld [vmem:[%s3651 + $0x328] sm:$0xff]
    %v3754 = vld [vmem:[%s3651 + $0x330] sm:$0xff]
    %v3755 = vld [vmem:[%s3651 + $0x338] sm:$0xff]
    %v3756 = vld [vmem:[%s3651 + $0x340] sm:$0xff]
    %v3757 = vld [vmem:[%s3651 + $0x348] sm:$0xff]
    %v3758 = vld [vmem:[%s3651 + $0x350] sm:$0xff]
    %v3759 = vld [vmem:[%s3651 + $0x358] sm:$0xff]
    %v3760 = vld [vmem:[%s3651 + $0x360] sm:$0xff]
    %v3761 = vld [vmem:[%s3651 + $0x368] sm:$0xff]
    %v3762 = vld [vmem:[%s3651 + $0x370] sm:$0xff]
    %v3763 = vld [vmem:[%s3651 + $0x378] sm:$0xff]
    %v3764 = vld [vmem:[%s3651 + $0x380] sm:$0xff]
    %v3765 = vld [vmem:[%s3651 + $0x388] sm:$0xff]
    %v3766 = vld [vmem:[%s3651 + $0x390] sm:$0xff]
    %v3767 = vld [vmem:[%s3651 + $0x398] sm:$0xff]
    %v3768 = vld [vmem:[%s3651 + $0x3a0] sm:$0xff]
    %v3769 = vld [vmem:[%s3651 + $0x3a8] sm:$0xff]
    %v3770 = vld [vmem:[%s3651 + $0x3b0] sm:$0xff]
    %v3771 = vld [vmem:[%s3651 + $0x3b8] sm:$0xff]
    %v3772 = vld [vmem:[%s3651 + $0x3c0] sm:$0xff]
    %v3773 = vld [vmem:[%s3651 + $0x3c8] sm:$0xff]
    %v3774 = vld [vmem:[%s3651 + $0x3d0] sm:$0xff]
    %v3775 = vld [vmem:[%s3651 + $0x3d8] sm:$0xff]
    %v3776 = vld [vmem:[%s3651 + $0x3e0] sm:$0xff]
    %v3777 = vld [vmem:[%s3651 + $0x3e8] sm:$0xff]
    %v3778 = vld [vmem:[%s3651 + $0x3f0] sm:$0xff]
    %v3779 = vld [vmem:[%s3651 + $0x3f8] sm:$0xff]
    %v3781 = vlaneseq
    %v3782 = vshrl.u32 %v3781, 7
    %v3783 = vsub.s32 0, %v3782
    %v3784 = vrot.slane %v3041, %v3783
    %v3785 = vlaneseq
    %v3786 = vshrl.u32 %v3785, 7
    %v3787 = vsub.s32 1, %v3786
    %v3788 = vrot.slane %v3041, %v3787
    %v3789 = vlaneseq
    %v3790 = vshrl.u32 %v3789, 7
    %v3791 = vsub.s32 2, %v3790
    %v3792 = vrot.slane %v3041, %v3791
    %v3793 = vlaneseq
    %v3794 = vshrl.u32 %v3793, 7
    %v3795 = vsub.s32 3, %v3794
    %v3796 = vrot.slane %v3041, %v3795
    %v3797 = vlaneseq
    %v3798 = vshrl.u32 %v3797, 7
    %v3799 = vsub.s32 4, %v3798
    %v3800 = vrot.slane %v3041, %v3799
    %v3801 = vlaneseq
    %v3802 = vshrl.u32 %v3801, 7
    %v3803 = vsub.s32 5, %v3802
    %v3804 = vrot.slane %v3041, %v3803
    %v3805 = vlaneseq
    %v3806 = vshrl.u32 %v3805, 7
    %v3807 = vsub.s32 6, %v3806
    %v3808 = vrot.slane %v3041, %v3807
    %v3809 = vlaneseq
    %v3810 = vshrl.u32 %v3809, 7
    %v3811 = vsub.s32 7, %v3810
    %v3812 = vrot.slane %v3041, %v3811
    %v3949 = vunpack.c.l.b16 %v3652
    %v3950 = vunpack.c.h.b16 %v3652
    %v3951 = vunpack.c.l.b16 %v3653
    %v3952 = vunpack.c.h.b16 %v3653
    %v3953 = vunpack.c.l.b16 %v3654
    %v3954 = vunpack.c.h.b16 %v3654
    %v3955 = vunpack.c.l.b16 %v3655
    %v3956 = vunpack.c.h.b16 %v3655
    %v3957 = vunpack.c.l.b16 %v3656
    %v3958 = vunpack.c.h.b16 %v3656
    %v3959 = vunpack.c.l.b16 %v3657
    %v3960 = vunpack.c.h.b16 %v3657
    %v3961 = vunpack.c.l.b16 %v3658
    %v3962 = vunpack.c.h.b16 %v3658
    %v3963 = vunpack.c.l.b16 %v3659
    %v3964 = vunpack.c.h.b16 %v3659
    %v3965 = vunpack.c.l.b16 %v3660
    %v3966 = vunpack.c.h.b16 %v3660
    %v3967 = vunpack.c.l.b16 %v3661
    %v3968 = vunpack.c.h.b16 %v3661
    %v3969 = vunpack.c.l.b16 %v3662
    %v3970 = vunpack.c.h.b16 %v3662
    %v3971 = vunpack.c.l.b16 %v3663
    %v3972 = vunpack.c.h.b16 %v3663
    %v3973 = vunpack.c.l.b16 %v3664
    %v3974 = vunpack.c.h.b16 %v3664
    %v3975 = vunpack.c.l.b16 %v3665
    %v3976 = vunpack.c.h.b16 %v3665
    %v3977 = vunpack.c.l.b16 %v3666
    %v3978 = vunpack.c.h.b16 %v3666
    %v3979 = vunpack.c.l.b16 %v3667
    %v3980 = vunpack.c.h.b16 %v3667
    %v3981 = vunpack.c.l.b16 %v3668
    %v3982 = vunpack.c.h.b16 %v3668
    %v3983 = vunpack.c.l.b16 %v3669
    %v3984 = vunpack.c.h.b16 %v3669
    %v3985 = vunpack.c.l.b16 %v3670
    %v3986 = vunpack.c.h.b16 %v3670
    %v3987 = vunpack.c.l.b16 %v3671
    %v3988 = vunpack.c.h.b16 %v3671
    %v3989 = vunpack.c.l.b16 %v3672
    %v3990 = vunpack.c.h.b16 %v3672
    %v3991 = vunpack.c.l.b16 %v3673
    %v3992 = vunpack.c.h.b16 %v3673
    %v3993 = vunpack.c.l.b16 %v3674
    %v3994 = vunpack.c.h.b16 %v3674
    %v3995 = vunpack.c.l.b16 %v3675
    %v3996 = vunpack.c.h.b16 %v3675
    %v3997 = vunpack.c.l.b16 %v3676
    %v3998 = vunpack.c.h.b16 %v3676
    %v3999 = vunpack.c.l.b16 %v3677
    %v4000 = vunpack.c.h.b16 %v3677
    %v4001 = vunpack.c.l.b16 %v3678
    %v4002 = vunpack.c.h.b16 %v3678
    %v4003 = vunpack.c.l.b16 %v3679
    %v4004 = vunpack.c.h.b16 %v3679
    %v4005 = vunpack.c.l.b16 %v3680
    %v4006 = vunpack.c.h.b16 %v3680
    %v4007 = vunpack.c.l.b16 %v3681
    %v4008 = vunpack.c.h.b16 %v3681
    %v4009 = vunpack.c.l.b16 %v3682
    %v4010 = vunpack.c.h.b16 %v3682
    %v4011 = vunpack.c.l.b16 %v3683
    %v4012 = vunpack.c.h.b16 %v3683
    %v4013 = vunpack.c.l.b16 %v3684
    %v4014 = vunpack.c.h.b16 %v3684
    %v4015 = vunpack.c.l.b16 %v3685
    %v4016 = vunpack.c.h.b16 %v3685
    %v4017 = vunpack.c.l.b16 %v3686
    %v4018 = vunpack.c.h.b16 %v3686
    %v4019 = vunpack.c.l.b16 %v3687
    %v4020 = vunpack.c.h.b16 %v3687
    %v4021 = vunpack.c.l.b16 %v3688
    %v4022 = vunpack.c.h.b16 %v3688
    %v4023 = vunpack.c.l.b16 %v3689
    %v4024 = vunpack.c.h.b16 %v3689
    %v4025 = vunpack.c.l.b16 %v3690
    %v4026 = vunpack.c.h.b16 %v3690
    %v4027 = vunpack.c.l.b16 %v3691
    %v4028 = vunpack.c.h.b16 %v3691
    %v4029 = vunpack.c.l.b16 %v3692
    %v4030 = vunpack.c.h.b16 %v3692
    %v4031 = vunpack.c.l.b16 %v3693
    %v4032 = vunpack.c.h.b16 %v3693
    %v4033 = vunpack.c.l.b16 %v3694
    %v4034 = vunpack.c.h.b16 %v3694
    %v4035 = vunpack.c.l.b16 %v3695
    %v4036 = vunpack.c.h.b16 %v3695
    %v4037 = vunpack.c.l.b16 %v3696
    %v4038 = vunpack.c.h.b16 %v3696
    %v4039 = vunpack.c.l.b16 %v3697
    %v4040 = vunpack.c.h.b16 %v3697
    %v4041 = vunpack.c.l.b16 %v3698
    %v4042 = vunpack.c.h.b16 %v3698
    %v4043 = vunpack.c.l.b16 %v3699
    %v4044 = vunpack.c.h.b16 %v3699
    %v4045 = vunpack.c.l.b16 %v3700
    %v4046 = vunpack.c.h.b16 %v3700
    %v4047 = vunpack.c.l.b16 %v3701
    %v4048 = vunpack.c.h.b16 %v3701
    %v4049 = vunpack.c.l.b16 %v3702
    %v4050 = vunpack.c.h.b16 %v3702
    %v4051 = vunpack.c.l.b16 %v3703
    %v4052 = vunpack.c.h.b16 %v3703
    %v4053 = vunpack.c.l.b16 %v3704
    %v4054 = vunpack.c.h.b16 %v3704
    %v4055 = vunpack.c.l.b16 %v3705
    %v4056 = vunpack.c.h.b16 %v3705
    %v4057 = vunpack.c.l.b16 %v3706
    %v4058 = vunpack.c.h.b16 %v3706
    %v4059 = vunpack.c.l.b16 %v3707
    %v4060 = vunpack.c.h.b16 %v3707
    %v4061 = vunpack.c.l.b16 %v3708
    %v4062 = vunpack.c.h.b16 %v3708
    %v4063 = vunpack.c.l.b16 %v3709
    %v4064 = vunpack.c.h.b16 %v3709
    %v4065 = vunpack.c.l.b16 %v3710
    %v4066 = vunpack.c.h.b16 %v3710
    %v4067 = vunpack.c.l.b16 %v3711
    %v4068 = vunpack.c.h.b16 %v3711
    %v4069 = vunpack.c.l.b16 %v3712
    %v4070 = vunpack.c.h.b16 %v3712
    %v4071 = vunpack.c.l.b16 %v3713
    %v4072 = vunpack.c.h.b16 %v3713
    %v4073 = vunpack.c.l.b16 %v3714
    %v4074 = vunpack.c.h.b16 %v3714
    %v4075 = vunpack.c.l.b16 %v3715
    %v4076 = vunpack.c.h.b16 %v3715
    %v4077 = vunpack.c.l.b16 %v3716
    %v4078 = vunpack.c.h.b16 %v3716
    %v4079 = vunpack.c.l.b16 %v3717
    %v4080 = vunpack.c.h.b16 %v3717
    %v4081 = vunpack.c.l.b16 %v3718
    %v4082 = vunpack.c.h.b16 %v3718
    %v4083 = vunpack.c.l.b16 %v3719
    %v4084 = vunpack.c.h.b16 %v3719
    %v4085 = vunpack.c.l.b16 %v3720
    %v4086 = vunpack.c.h.b16 %v3720
    %v4087 = vunpack.c.l.b16 %v3721
    %v4088 = vunpack.c.h.b16 %v3721
    %v4089 = vunpack.c.l.b16 %v3722
    %v4090 = vunpack.c.h.b16 %v3722
    %v4091 = vunpack.c.l.b16 %v3723
    %v4092 = vunpack.c.h.b16 %v3723
    %v4093 = vunpack.c.l.b16 %v3724
    %v4094 = vunpack.c.h.b16 %v3724
    %v4095 = vunpack.c.l.b16 %v3725
    %v4096 = vunpack.c.h.b16 %v3725
    %v4097 = vunpack.c.l.b16 %v3726
    %v4098 = vunpack.c.h.b16 %v3726
    %v4099 = vunpack.c.l.b16 %v3727
    %v4100 = vunpack.c.h.b16 %v3727
    %v4101 = vunpack.c.l.b16 %v3728
    %v4102 = vunpack.c.h.b16 %v3728
    %v4103 = vunpack.c.l.b16 %v3729
    %v4104 = vunpack.c.h.b16 %v3729
    %v4105 = vunpack.c.l.b16 %v3730
    %v4106 = vunpack.c.h.b16 %v3730
    %v4107 = vunpack.c.l.b16 %v3731
    %v4108 = vunpack.c.h.b16 %v3731
    %v4109 = vunpack.c.l.b16 %v3732
    %v4110 = vunpack.c.h.b16 %v3732
    %v4111 = vunpack.c.l.b16 %v3733
    %v4112 = vunpack.c.h.b16 %v3733
    %v4113 = vunpack.c.l.b16 %v3734
    %v4114 = vunpack.c.h.b16 %v3734
    %v4115 = vunpack.c.l.b16 %v3735
    %v4116 = vunpack.c.h.b16 %v3735
    %v4117 = vunpack.c.l.b16 %v3736
    %v4118 = vunpack.c.h.b16 %v3736
    %v4119 = vunpack.c.l.b16 %v3737
    %v4120 = vunpack.c.h.b16 %v3737
    %v4121 = vunpack.c.l.b16 %v3738
    %v4122 = vunpack.c.h.b16 %v3738
    %v4123 = vunpack.c.l.b16 %v3739
    %v4124 = vunpack.c.h.b16 %v3739
    %v4125 = vunpack.c.l.b16 %v3740
    %v4126 = vunpack.c.h.b16 %v3740
    %v4127 = vunpack.c.l.b16 %v3741
    %v4128 = vunpack.c.h.b16 %v3741
    %v4129 = vunpack.c.l.b16 %v3742
    %v4130 = vunpack.c.h.b16 %v3742
    %v4131 = vunpack.c.l.b16 %v3743
    %v4132 = vunpack.c.h.b16 %v3743
    %v4133 = vunpack.c.l.b16 %v3744
    %v4134 = vunpack.c.h.b16 %v3744
    %v4135 = vunpack.c.l.b16 %v3745
    %v4136 = vunpack.c.h.b16 %v3745
    %v4137 = vunpack.c.l.b16 %v3746
    %v4138 = vunpack.c.h.b16 %v3746
    %v4139 = vunpack.c.l.b16 %v3747
    %v4140 = vunpack.c.h.b16 %v3747
    %v4141 = vunpack.c.l.b16 %v3748
    %v4142 = vunpack.c.h.b16 %v3748
    %v4143 = vunpack.c.l.b16 %v3749
    %v4144 = vunpack.c.h.b16 %v3749
    %v4145 = vunpack.c.l.b16 %v3750
    %v4146 = vunpack.c.h.b16 %v3750
    %v4147 = vunpack.c.l.b16 %v3751
    %v4148 = vunpack.c.h.b16 %v3751
    %v4149 = vunpack.c.l.b16 %v3752
    %v4150 = vunpack.c.h.b16 %v3752
    %v4151 = vunpack.c.l.b16 %v3753
    %v4152 = vunpack.c.h.b16 %v3753
    %v4153 = vunpack.c.l.b16 %v3754
    %v4154 = vunpack.c.h.b16 %v3754
    %v4155 = vunpack.c.l.b16 %v3755
    %v4156 = vunpack.c.h.b16 %v3755
    %v4157 = vunpack.c.l.b16 %v3756
    %v4158 = vunpack.c.h.b16 %v3756
    %v4159 = vunpack.c.l.b16 %v3757
    %v4160 = vunpack.c.h.b16 %v3757
    %v4161 = vunpack.c.l.b16 %v3758
    %v4162 = vunpack.c.h.b16 %v3758
    %v4163 = vunpack.c.l.b16 %v3759
    %v4164 = vunpack.c.h.b16 %v3759
    %v4165 = vunpack.c.l.b16 %v3760
    %v4166 = vunpack.c.h.b16 %v3760
    %v4167 = vunpack.c.l.b16 %v3761
    %v4168 = vunpack.c.h.b16 %v3761
    %v4169 = vunpack.c.l.b16 %v3762
    %v4170 = vunpack.c.h.b16 %v3762
    %v4171 = vunpack.c.l.b16 %v3763
    %v4172 = vunpack.c.h.b16 %v3763
    %v4173 = vunpack.c.l.b16 %v3764
    %v4174 = vunpack.c.h.b16 %v3764
    %v4175 = vunpack.c.l.b16 %v3765
    %v4176 = vunpack.c.h.b16 %v3765
    %v4177 = vunpack.c.l.b16 %v3766
    %v4178 = vunpack.c.h.b16 %v3766
    %v4179 = vunpack.c.l.b16 %v3767
    %v4180 = vunpack.c.h.b16 %v3767
    %v4181 = vunpack.c.l.b16 %v3768
    %v4182 = vunpack.c.h.b16 %v3768
    %v4183 = vunpack.c.l.b16 %v3769
    %v4184 = vunpack.c.h.b16 %v3769
    %v4185 = vunpack.c.l.b16 %v3770
    %v4186 = vunpack.c.h.b16 %v3770
    %v4187 = vunpack.c.l.b16 %v3771
    %v4188 = vunpack.c.h.b16 %v3771
    %v4189 = vunpack.c.l.b16 %v3772
    %v4190 = vunpack.c.h.b16 %v3772
    %v4191 = vunpack.c.l.b16 %v3773
    %v4192 = vunpack.c.h.b16 %v3773
    %v4193 = vunpack.c.l.b16 %v3774
    %v4194 = vunpack.c.h.b16 %v3774
    %v4195 = vunpack.c.l.b16 %v3775
    %v4196 = vunpack.c.h.b16 %v3775
    %v4197 = vunpack.c.l.b16 %v3776
    %v4198 = vunpack.c.h.b16 %v3776
    %v4199 = vunpack.c.l.b16 %v3777
    %v4200 = vunpack.c.h.b16 %v3777
    %v4201 = vunpack.c.l.b16 %v3778
    %v4202 = vunpack.c.h.b16 %v3778
    %v4203 = vunpack.c.l.b16 %v3779
    %v4204 = vunpack.c.h.b16 %v3779
    %v4205 = vpack.c.b16 %v3957, %v3949
    %v4206 = vpack.c.b16 %v3958, %v3950
    %v4207 = vpack.c.b16 %v3959, %v3951
    %v4208 = vpack.c.b16 %v3960, %v3952
    %v4209 = vpack.c.b16 %v3961, %v3953
    %v4210 = vpack.c.b16 %v3962, %v3954
    %v4211 = vpack.c.b16 %v3963, %v3955
    %v4212 = vpack.c.b16 %v3964, %v3956
    %v4213 = vpack.c.b16 %v3973, %v3965
    %v4214 = vpack.c.b16 %v3974, %v3966
    %v4215 = vpack.c.b16 %v3975, %v3967
    %v4216 = vpack.c.b16 %v3976, %v3968
    %v4217 = vpack.c.b16 %v3977, %v3969
    %v4218 = vpack.c.b16 %v3978, %v3970
    %v4219 = vpack.c.b16 %v3979, %v3971
    %v4220 = vpack.c.b16 %v3980, %v3972
    %v4221 = vpack.c.b16 %v3989, %v3981
    %v4222 = vpack.c.b16 %v3990, %v3982
    %v4223 = vpack.c.b16 %v3991, %v3983
    %v4224 = vpack.c.b16 %v3992, %v3984
    %v4225 = vpack.c.b16 %v3993, %v3985
    %v4226 = vpack.c.b16 %v3994, %v3986
    %v4227 = vpack.c.b16 %v3995, %v3987
    %v4228 = vpack.c.b16 %v3996, %v3988
    %v4229 = vpack.c.b16 %v4005, %v3997
    %v4230 = vpack.c.b16 %v4006, %v3998
    %v4231 = vpack.c.b16 %v4007, %v3999
    %v4232 = vpack.c.b16 %v4008, %v4000
    %v4233 = vpack.c.b16 %v4009, %v4001
    %v4234 = vpack.c.b16 %v4010, %v4002
    %v4235 = vpack.c.b16 %v4011, %v4003
    %v4236 = vpack.c.b16 %v4012, %v4004
    %v4237 = vpack.c.b16 %v4021, %v4013
    %v4238 = vpack.c.b16 %v4022, %v4014
    %v4239 = vpack.c.b16 %v4023, %v4015
    %v4240 = vpack.c.b16 %v4024, %v4016
    %v4241 = vpack.c.b16 %v4025, %v4017
    %v4242 = vpack.c.b16 %v4026, %v4018
    %v4243 = vpack.c.b16 %v4027, %v4019
    %v4244 = vpack.c.b16 %v4028, %v4020
    %v4245 = vpack.c.b16 %v4037, %v4029
    %v4246 = vpack.c.b16 %v4038, %v4030
    %v4247 = vpack.c.b16 %v4039, %v4031
    %v4248 = vpack.c.b16 %v4040, %v4032
    %v4249 = vpack.c.b16 %v4041, %v4033
    %v4250 = vpack.c.b16 %v4042, %v4034
    %v4251 = vpack.c.b16 %v4043, %v4035
    %v4252 = vpack.c.b16 %v4044, %v4036
    %v4253 = vpack.c.b16 %v4053, %v4045
    %v4254 = vpack.c.b16 %v4054, %v4046
    %v4255 = vpack.c.b16 %v4055, %v4047
    %v4256 = vpack.c.b16 %v4056, %v4048
    %v4257 = vpack.c.b16 %v4057, %v4049
    %v4258 = vpack.c.b16 %v4058, %v4050
    %v4259 = vpack.c.b16 %v4059, %v4051
    %v4260 = vpack.c.b16 %v4060, %v4052
    %v4261 = vpack.c.b16 %v4069, %v4061
    %v4262 = vpack.c.b16 %v4070, %v4062
    %v4263 = vpack.c.b16 %v4071, %v4063
    %v4264 = vpack.c.b16 %v4072, %v4064
    %v4265 = vpack.c.b16 %v4073, %v4065
    %v4266 = vpack.c.b16 %v4074, %v4066
    %v4267 = vpack.c.b16 %v4075, %v4067
    %v4268 = vpack.c.b16 %v4076, %v4068
    %v4269 = vpack.c.b16 %v4085, %v4077
    %v4270 = vpack.c.b16 %v4086, %v4078
    %v4271 = vpack.c.b16 %v4087, %v4079
    %v4272 = vpack.c.b16 %v4088, %v4080
    %v4273 = vpack.c.b16 %v4089, %v4081
    %v4274 = vpack.c.b16 %v4090, %v4082
    %v4275 = vpack.c.b16 %v4091, %v4083
    %v4276 = vpack.c.b16 %v4092, %v4084
    %v4277 = vpack.c.b16 %v4101, %v4093
    %v4278 = vpack.c.b16 %v4102, %v4094
    %v4279 = vpack.c.b16 %v4103, %v4095
    %v4280 = vpack.c.b16 %v4104, %v4096
    %v4281 = vpack.c.b16 %v4105, %v4097
    %v4282 = vpack.c.b16 %v4106, %v4098
    %v4283 = vpack.c.b16 %v4107, %v4099
    %v4284 = vpack.c.b16 %v4108, %v4100
    %v4285 = vpack.c.b16 %v4117, %v4109
    %v4286 = vpack.c.b16 %v4118, %v4110
    %v4287 = vpack.c.b16 %v4119, %v4111
    %v4288 = vpack.c.b16 %v4120, %v4112
    %v4289 = vpack.c.b16 %v4121, %v4113
    %v4290 = vpack.c.b16 %v4122, %v4114
    %v4291 = vpack.c.b16 %v4123, %v4115
    %v4292 = vpack.c.b16 %v4124, %v4116
    %v4293 = vpack.c.b16 %v4133, %v4125
    %v4294 = vpack.c.b16 %v4134, %v4126
    %v4295 = vpack.c.b16 %v4135, %v4127
    %v4296 = vpack.c.b16 %v4136, %v4128
    %v4297 = vpack.c.b16 %v4137, %v4129
    %v4298 = vpack.c.b16 %v4138, %v4130
    %v4299 = vpack.c.b16 %v4139, %v4131
    %v4300 = vpack.c.b16 %v4140, %v4132
    %v4301 = vpack.c.b16 %v4149, %v4141
    %v4302 = vpack.c.b16 %v4150, %v4142
    %v4303 = vpack.c.b16 %v4151, %v4143
    %v4304 = vpack.c.b16 %v4152, %v4144
    %v4305 = vpack.c.b16 %v4153, %v4145
    %v4306 = vpack.c.b16 %v4154, %v4146
    %v4307 = vpack.c.b16 %v4155, %v4147
    %v4308 = vpack.c.b16 %v4156, %v4148
    %v4309 = vpack.c.b16 %v4165, %v4157
    %v4310 = vpack.c.b16 %v4166, %v4158
    %v4311 = vpack.c.b16 %v4167, %v4159
    %v4312 = vpack.c.b16 %v4168, %v4160
    %v4313 = vpack.c.b16 %v4169, %v4161
    %v4314 = vpack.c.b16 %v4170, %v4162
    %v4315 = vpack.c.b16 %v4171, %v4163
    %v4316 = vpack.c.b16 %v4172, %v4164
    %v4317 = vpack.c.b16 %v4181, %v4173
    %v4318 = vpack.c.b16 %v4182, %v4174
    %v4319 = vpack.c.b16 %v4183, %v4175
    %v4320 = vpack.c.b16 %v4184, %v4176
    %v4321 = vpack.c.b16 %v4185, %v4177
    %v4322 = vpack.c.b16 %v4186, %v4178
    %v4323 = vpack.c.b16 %v4187, %v4179
    %v4324 = vpack.c.b16 %v4188, %v4180
    %v4325 = vpack.c.b16 %v4197, %v4189
    %v4326 = vpack.c.b16 %v4198, %v4190
    %v4327 = vpack.c.b16 %v4199, %v4191
    %v4328 = vpack.c.b16 %v4200, %v4192
    %v4329 = vpack.c.b16 %v4201, %v4193
    %v4330 = vpack.c.b16 %v4202, %v4194
    %v4331 = vpack.c.b16 %v4203, %v4195
    %v4332 = vpack.c.b16 %v4204, %v4196
    %4461 = vmatprep.subr.bf16.mxu0 %v4206
    %4462 = vmatpush1.bf16.msra.mxu0 %v4205
    %4463 = vmatprep.subr.bf16.mxu0 %v4214
    %4464 = vmatpush1.bf16.msra.mxu0 %v4213
    %4465 = vmatprep.subr.bf16.mxu0 %v4222
    %4466 = vmatpush1.bf16.msra.mxu0 %v4221
    %4467 = vmatprep.subr.bf16.mxu0 %v4230
    %4468 = vmatpush1.bf16.msra.mxu0 %v4229
    %4469 = vmatprep.subr.bf16.mxu0 %v4238
    %4470 = vmatpush1.bf16.msra.mxu0 %v4237
    %4471 = vmatprep.subr.bf16.mxu0 %v4246
    %4472 = vmatpush1.bf16.msra.mxu0 %v4245
    %4473 = vmatprep.subr.bf16.mxu0 %v4254
    %4474 = vmatpush1.bf16.msra.mxu0 %v4253
    %4475 = vmatprep.subr.bf16.mxu0 %v4262
    %4476 = vmatpush1.bf16.msra.mxu0 %v4261
    %4477 = vmatprep.subr.bf16.mxu0 %v4270
    %4478 = vmatpush1.bf16.msra.mxu0 %v4269
    %4479 = vmatprep.subr.bf16.mxu0 %v4278
    %4480 = vmatpush1.bf16.msra.mxu0 %v4277
    %4481 = vmatprep.subr.bf16.mxu0 %v4286
    %4482 = vmatpush1.bf16.msra.mxu0 %v4285
    %4483 = vmatprep.subr.bf16.mxu0 %v4294
    %4484 = vmatpush1.bf16.msra.mxu0 %v4293
    %4485 = vmatprep.subr.bf16.mxu0 %v4302
    %4486 = vmatpush1.bf16.msra.mxu0 %v4301
    %4487 = vmatprep.subr.bf16.mxu0 %v4310
    %4488 = vmatpush1.bf16.msra.mxu0 %v4309
    %4489 = vmatprep.subr.bf16.mxu0 %v4318
    %4490 = vmatpush1.bf16.msra.mxu0 %v4317
    %4491 = vmatprep.subr.bf16.mxu0 %v4326
    %4492 = vmatpush1.bf16.msra.mxu0 %v4325
    %4493 = vmatprep.mubr.bf16.mxu0 %v3648
    %4494 = vmatmul.mubr.bf16.gmra.mrb[0].mxu0 %v3647
    %v4495 = vpop.f32.mrb[0].mxu0
    %v4496 = vadd.f32 %v3784, %v4495
    %v4497 = vpop.f32.mrb[0].mxu0
    %v4498 = vadd.f32 %v3788, %v4497
    %v4499 = vpop.f32.mrb[0].mxu0
    %v4500 = vadd.f32 %v3784, %v4499
    %v4501 = vpop.f32.mrb[0].mxu0
    %v4502 = vadd.f32 %v3788, %v4501
    %4503 = vmatprep.mubr.bf16.mxu0 %v3650
    %4504 = vmatmul.mubr.bf16.gmra.mrb[0].mxu0 %v3649
    %v4505 = vpop.f32.mrb[0].mxu0
    %v4506 = vadd.f32 %v3784, %v4505
    %v4507 = vpop.f32.mrb[0].mxu0
    %v4508 = vadd.f32 %v3788, %v4507
    %v4509 = vpop.f32.mrb[0].mxu0
    %v4510 = vpop.f32.mrb[0].mxu0
    %4511 = vdwg.mxu0
    %4512 = vmatprep.subr.bf16.mxu0 %v4208
    %4513 = vmatpush1.bf16.msra.mxu0 %v4207
    %4514 = vmatprep.subr.bf16.mxu0 %v4216
    %4515 = vmatpush1.bf16.msra.mxu0 %v4215
    %4516 = vmatprep.subr.bf16.mxu0 %v4224
    %4517 = vmatpush1.bf16.msra.mxu0 %v4223
    %4518 = vmatprep.subr.bf16.mxu0 %v4232
    %4519 = vmatpush1.bf16.msra.mxu0 %v4231
    %4520 = vmatprep.subr.bf16.mxu0 %v4240
    %4521 = vmatpush1.bf16.msra.mxu0 %v4239
    %4522 = vmatprep.subr.bf16.mxu0 %v4248
    %4523 = vmatpush1.bf16.msra.mxu0 %v4247
    %4524 = vmatprep.subr.bf16.mxu0 %v4256
    %4525 = vmatpush1.bf16.msra.mxu0 %v4255
    %4526 = vmatprep.subr.bf16.mxu0 %v4264
    %4527 = vmatpush1.bf16.msra.mxu0 %v4263
    %4528 = vmatprep.subr.bf16.mxu0 %v4272
    %4529 = vmatpush1.bf16.msra.mxu0 %v4271
    %4530 = vmatprep.subr.bf16.mxu0 %v4280
    %4531 = vmatpush1.bf16.msra.mxu0 %v4279
    %4532 = vmatprep.subr.bf16.mxu0 %v4288
    %4533 = vmatpush1.bf16.msra.mxu0 %v4287
    %4534 = vmatprep.subr.bf16.mxu0 %v4296
    %4535 = vmatpush1.bf16.msra.mxu0 %v4295
    %4536 = vmatprep.subr.bf16.mxu0 %v4304
    %4537 = vmatpush1.bf16.msra.mxu0 %v4303
    %4538 = vmatprep.subr.bf16.mxu0 %v4312
    %4539 = vmatpush1.bf16.msra.mxu0 %v4311
    %4540 = vmatprep.subr.bf16.mxu0 %v4320
    %4541 = vmatpush1.bf16.msra.mxu0 %v4319
    %4542 = vmatprep.subr.bf16.mxu0 %v4328
    %4543 = vmatpush1.bf16.msra.mxu0 %v4327
    %4544 = vmatprep.mubr.bf16.mxu0 %v3648
    %4545 = vmatmul.mubr.bf16.gmra.mrb[0].mxu0 %v3647
    %v4546 = vpop.f32.mrb[0].mxu0
    %v4547 = vadd.f32 %v3792, %v4546
    %v4548 = vpop.f32.mrb[0].mxu0
    %v4549 = vadd.f32 %v3796, %v4548
    %v4550 = vpop.f32.mrb[0].mxu0
    %v4551 = vadd.f32 %v3792, %v4550
    %v4552 = vpop.f32.mrb[0].mxu0
    %v4553 = vadd.f32 %v3796, %v4552
    %4554 = vmatprep.mubr.bf16.mxu0 %v3650
    %4555 = vmatmul.mubr.bf16.gmra.mrb[0].mxu0 %v3649
    %v4556 = vpop.f32.mrb[0].mxu0
    %v4557 = vadd.f32 %v3792, %v4556
    %v4558 = vpop.f32.mrb[0].mxu0
    %v4559 = vadd.f32 %v3796, %v4558
    %v4560 = vpop.f32.mrb[0].mxu0
    %v4561 = vpop.f32.mrb[0].mxu0
    %4562 = vdwg.mxu0
    %4563 = vmatprep.subr.bf16.mxu0 %v4210
    %4564 = vmatpush1.bf16.msra.mxu0 %v4209
    %4565 = vmatprep.subr.bf16.mxu0 %v4218
    %4566 = vmatpush1.bf16.msra.mxu0 %v4217
    %4567 = vmatprep.subr.bf16.mxu0 %v4226
    %4568 = vmatpush1.bf16.msra.mxu0 %v4225
    %4569 = vmatprep.subr.bf16.mxu0 %v4234
    %4570 = vmatpush1.bf16.msra.mxu0 %v4233
    %4571 = vmatprep.subr.bf16.mxu0 %v4242
    %4572 = vmatpush1.bf16.msra.mxu0 %v4241
    %4573 = vmatprep.subr.bf16.mxu0 %v4250
    %4574 = vmatpush1.bf16.msra.mxu0 %v4249
    %4575 = vmatprep.subr.bf16.mxu0 %v4258
    %4576 = vmatpush1.bf16.msra.mxu0 %v4257
    %4577 = vmatprep.subr.bf16.mxu0 %v4266
    %4578 = vmatpush1.bf16.msra.mxu0 %v4265
    %4579 = vmatprep.subr.bf16.mxu0 %v4274
    %4580 = vmatpush1.bf16.msra.mxu0 %v4273
    %4581 = vmatprep.subr.bf16.mxu0 %v4282
    %4582 = vmatpush1.bf16.msra.mxu0 %v4281
    %4583 = vmatprep.subr.bf16.mxu0 %v4290
    %4584 = vmatpush1.bf16.msra.mxu0 %v4289
    %4585 = vmatprep.subr.bf16.mxu0 %v4298
    %4586 = vmatpush1.bf16.msra.mxu0 %v4297
    %4587 = vmatprep.subr.bf16.mxu0 %v4306
    %4588 = vmatpush1.bf16.msra.mxu0 %v4305
    %4589 = vmatprep.subr.bf16.mxu0 %v4314
    %4590 = vmatpush1.bf16.msra.mxu0 %v4313
    %4591 = vmatprep.subr.bf16.mxu0 %v4322
    %4592 = vmatpush1.bf16.msra.mxu0 %v4321
    %4593 = vmatprep.subr.bf16.mxu0 %v4330
    %4594 = vmatpush1.bf16.msra.mxu0 %v4329
    %4595 = vmatprep.mubr.bf16.mxu0 %v3648
    %4596 = vmatmul.mubr.bf16.gmra.mrb[0].mxu0 %v3647
    %v4597 = vpop.f32.mrb[0].mxu0
    %v4598 = vadd.f32 %v3800, %v4597
    %v4599 = vpop.f32.mrb[0].mxu0
    %v4600 = vadd.f32 %v3804, %v4599
    %v4601 = vpop.f32.mrb[0].mxu0
    %v4602 = vadd.f32 %v3800, %v4601
    %v4603 = vpop.f32.mrb[0].mxu0
    %v4604 = vadd.f32 %v3804, %v4603
    %4605 = vmatprep.mubr.bf16.mxu0 %v3650
    %4606 = vmatmul.mubr.bf16.gmra.mrb[0].mxu0 %v3649
    %v4607 = vpop.f32.mrb[0].mxu0
    %v4608 = vadd.f32 %v3800, %v4607
    %v4609 = vpop.f32.mrb[0].mxu0
    %v4610 = vadd.f32 %v3804, %v4609
    %v4611 = vpop.f32.mrb[0].mxu0
    %v4612 = vpop.f32.mrb[0].mxu0
    %4613 = vdwg.mxu0
    %4614 = vmatprep.subr.bf16.mxu0 %v4212
    %4615 = vmatpush1.bf16.msra.mxu0 %v4211
    %4616 = vmatprep.subr.bf16.mxu0 %v4220
    %4617 = vmatpush1.bf16.msra.mxu0 %v4219
    %4618 = vmatprep.subr.bf16.mxu0 %v4228
    %4619 = vmatpush1.bf16.msra.mxu0 %v4227
    %4620 = vmatprep.subr.bf16.mxu0 %v4236
    %4621 = vmatpush1.bf16.msra.mxu0 %v4235
    %4622 = vmatprep.subr.bf16.mxu0 %v4244
    %4623 = vmatpush1.bf16.msra.mxu0 %v4243
    %4624 = vmatprep.subr.bf16.mxu0 %v4252
    %4625 = vmatpush1.bf16.msra.mxu0 %v4251
    %4626 = vmatprep.subr.bf16.mxu0 %v4260
    %4627 = vmatpush1.bf16.msra.mxu0 %v4259
    %4628 = vmatprep.subr.bf16.mxu0 %v4268
    %4629 = vmatpush1.bf16.msra.mxu0 %v4267
    %4630 = vmatprep.subr.bf16.mxu0 %v4276
    %4631 = vmatpush1.bf16.msra.mxu0 %v4275
    %4632 = vmatprep.subr.bf16.mxu0 %v4284
    %4633 = vmatpush1.bf16.msra.mxu0 %v4283
    %4634 = vmatprep.subr.bf16.mxu0 %v4292
    %4635 = vmatpush1.bf16.msra.mxu0 %v4291
    %4636 = vmatprep.subr.bf16.mxu0 %v4300
    %4637 = vmatpush1.bf16.msra.mxu0 %v4299
    %4638 = vmatprep.subr.bf16.mxu0 %v4308
    %4639 = vmatpush1.bf16.msra.mxu0 %v4307
    %4640 = vmatprep.subr.bf16.mxu0 %v4316
    %4641 = vmatpush1.bf16.msra.mxu0 %v4315
    %4642 = vmatprep.subr.bf16.mxu0 %v4324
    %4643 = vmatpush1.bf16.msra.mxu0 %v4323
    %4644 = vmatprep.subr.bf16.mxu0 %v4332
    %4645 = vmatpush1.bf16.msra.mxu0 %v4331
    %4646 = vmatprep.mubr.bf16.mxu0 %v3648
    %4647 = vmatmul.mubr.bf16.gmra.mrb[0].mxu0 %v3647
    %v4648 = vpop.f32.mrb[0].mxu0
    %v4649 = vadd.f32 %v3808, %v4648
    %v4650 = vpop.f32.mrb[0].mxu0
    %v4651 = vadd.f32 %v3812, %v4650
    %v4652 = vpop.f32.mrb[0].mxu0
    %v4653 = vadd.f32 %v3808, %v4652
    %v4654 = vpop.f32.mrb[0].mxu0
    %v4655 = vadd.f32 %v3812, %v4654
    %4656 = vmatprep.mubr.bf16.mxu0 %v3650
    %4657 = vmatmul.mubr.bf16.gmra.mrb[0].mxu0 %v3649
    %v4658 = vpop.f32.mrb[0].mxu0
    %v4659 = vadd.f32 %v3808, %v4658
    %v4660 = vpop.f32.mrb[0].mxu0
    %v4661 = vadd.f32 %v3812, %v4660
    %v4662 = vpop.f32.mrb[0].mxu0
    %v4663 = vpop.f32.mrb[0].mxu0
    %4664 = vdwg.mxu0
    %v4665 = vmax.f32 %v4496, 0.0
    %v4666 = vmax.f32 %v4498, 0.0
    %v4667 = vmax.f32 %v4547, 0.0
    %v4668 = vmax.f32 %v4549, 0.0
    %v4669 = vmax.f32 %v4598, 0.0
    %v4670 = vmax.f32 %v4600, 0.0
    %v4671 = vmax.f32 %v4649, 0.0
    %v4672 = vmax.f32 %v4651, 0.0
    %v4673 = vmax.f32 %v4500, 0.0
    %v4674 = vmax.f32 %v4502, 0.0
    %v4675 = vmax.f32 %v4551, 0.0
    %v4676 = vmax.f32 %v4553, 0.0
    %v4677 = vmax.f32 %v4602, 0.0
    %v4678 = vmax.f32 %v4604, 0.0
    %v4679 = vmax.f32 %v4653, 0.0
    %v4680 = vmax.f32 %v4655, 0.0
    %v4681 = vmax.f32 %v4506, 0.0
    %v4682 = vmax.f32 %v4508, 0.0
    %v4683 = vmax.f32 %v4557, 0.0
    %v4684 = vmax.f32 %v4559, 0.0
    %v4685 = vmax.f32 %v4608, 0.0
    %v4686 = vmax.f32 %v4610, 0.0
    %v4687 = vmax.f32 %v4659, 0.0
    %v4688 = vmax.f32 %v4661, 0.0
    %v4689 = vpack.c.bf16 %v4673, %v4665
    %v4690 = vpack.c.bf16 %v4674, %v4666
    %v4691 = vpack.c.bf16 %v4675, %v4667
    %v4692 = vpack.c.bf16 %v4676, %v4668
    %v4693 = vpack.c.bf16 %v4677, %v4669
    %v4694 = vpack.c.bf16 %v4678, %v4670
    %v4695 = vpack.c.bf16 %v4679, %v4671
    %v4696 = vpack.c.bf16 %v4680, %v4672
    %v4697 = vpack.c.bf16 %v4681, %v4681
    %v4698 = vpack.c.bf16 %v4682, %v4682
    %v4699 = vpack.c.bf16 %v4683, %v4683
    %v4700 = vpack.c.bf16 %v4684, %v4684
    %v4701 = vpack.c.bf16 %v4685, %v4685
    %v4702 = vpack.c.bf16 %v4686, %v4686
    %v4703 = vpack.c.bf16 %v4687, %v4687
    %v4704 = vpack.c.bf16 %v4688, %v4688
    %s4705 = scalar_lea.vmem [#allocation7], 1024
    %v4706 = vld [vmem:[%s4705] sm:$0xff]
    %v4707 = vld [vmem:[%s4705 + $0x8] sm:$0xff]
    %v4708 = vld [vmem:[%s4705 + $0x10] sm:$0xff]
    %v4709 = vld [vmem:[%s4705 + $0x18] sm:$0xff]
    %v4710 = vld [vmem:[%s4705 + $0x20] sm:$0xff]
    %v4711 = vld [vmem:[%s4705 + $0x28] sm:$0xff]
    %v4712 = vld [vmem:[%s4705 + $0x30] sm:$0xff]
    %v4713 = vld [vmem:[%s4705 + $0x38] sm:$0xff]
    %v4714 = vld [vmem:[%s4705 + $0x40] sm:$0xff]
    %v4715 = vld [vmem:[%s4705 + $0x48] sm:$0xff]
    %v4716 = vld [vmem:[%s4705 + $0x50] sm:$0xff]
    %v4717 = vld [vmem:[%s4705 + $0x58] sm:$0xff]
    %v4718 = vld [vmem:[%s4705 + $0x60] sm:$0xff]
    %v4719 = vld [vmem:[%s4705 + $0x68] sm:$0xff]
    %v4720 = vld [vmem:[%s4705 + $0x70] sm:$0xff]
    %v4721 = vld [vmem:[%s4705 + $0x78] sm:$0xff]
    %v4722 = vld [vmem:[%s4705 + $0x80] sm:$0xff]
    %v4723 = vld [vmem:[%s4705 + $0x88] sm:$0xff]
    %v4724 = vld [vmem:[%s4705 + $0x90] sm:$0xff]
    %v4725 = vld [vmem:[%s4705 + $0x98] sm:$0xff]
    %v4726 = vld [vmem:[%s4705 + $0xa0] sm:$0xff]
    %v4727 = vld [vmem:[%s4705 + $0xa8] sm:$0xff]
    %v4728 = vld [vmem:[%s4705 + $0xb0] sm:$0xff]
    %v4729 = vld [vmem:[%s4705 + $0xb8] sm:$0xff]
    %v4730 = vld [vmem:[%s4705 + $0xc0] sm:$0xff]
    %v4731 = vld [vmem:[%s4705 + $0xc8] sm:$0xff]
    %v4732 = vld [vmem:[%s4705 + $0xd0] sm:$0xff]
    %v4733 = vld [vmem:[%s4705 + $0xd8] sm:$0xff]
    %v4734 = vld [vmem:[%s4705 + $0xe0] sm:$0xff]
    %v4735 = vld [vmem:[%s4705 + $0xe8] sm:$0xff]
    %v4736 = vld [vmem:[%s4705 + $0xf0] sm:$0xff]
    %v4737 = vld [vmem:[%s4705 + $0xf8] sm:$0xff]
    %v4738 = vld [vmem:[%s4705 + $0x100] sm:$0xff]
    %v4739 = vld [vmem:[%s4705 + $0x108] sm:$0xff]
    %v4740 = vld [vmem:[%s4705 + $0x110] sm:$0xff]
    %v4741 = vld [vmem:[%s4705 + $0x118] sm:$0xff]
    %v4742 = vld [vmem:[%s4705 + $0x120] sm:$0xff]
    %v4743 = vld [vmem:[%s4705 + $0x128] sm:$0xff]
    %v4744 = vld [vmem:[%s4705 + $0x130] sm:$0xff]
    %v4745 = vld [vmem:[%s4705 + $0x138] sm:$0xff]
    %v4746 = vld [vmem:[%s4705 + $0x140] sm:$0xff]
    %v4747 = vld [vmem:[%s4705 + $0x148] sm:$0xff]
    %v4748 = vld [vmem:[%s4705 + $0x150] sm:$0xff]
    %v4749 = vld [vmem:[%s4705 + $0x158] sm:$0xff]
    %v4750 = vld [vmem:[%s4705 + $0x160] sm:$0xff]
    %v4751 = vld [vmem:[%s4705 + $0x168] sm:$0xff]
    %v4752 = vld [vmem:[%s4705 + $0x170] sm:$0xff]
    %v4753 = vld [vmem:[%s4705 + $0x178] sm:$0xff]
    %v4754 = vld [vmem:[%s4705 + $0x180] sm:$0xff]
    %v4755 = vld [vmem:[%s4705 + $0x188] sm:$0xff]
    %v4756 = vld [vmem:[%s4705 + $0x190] sm:$0xff]
    %v4757 = vld [vmem:[%s4705 + $0x198] sm:$0xff]
    %v4758 = vld [vmem:[%s4705 + $0x1a0] sm:$0xff]
    %v4759 = vld [vmem:[%s4705 + $0x1a8] sm:$0xff]
    %v4760 = vld [vmem:[%s4705 + $0x1b0] sm:$0xff]
    %v4761 = vld [vmem:[%s4705 + $0x1b8] sm:$0xff]
    %v4762 = vld [vmem:[%s4705 + $0x1c0] sm:$0xff]
    %v4763 = vld [vmem:[%s4705 + $0x1c8] sm:$0xff]
    %v4764 = vld [vmem:[%s4705 + $0x1d0] sm:$0xff]
    %v4765 = vld [vmem:[%s4705 + $0x1d8] sm:$0xff]
    %v4766 = vld [vmem:[%s4705 + $0x1e0] sm:$0xff]
    %v4767 = vld [vmem:[%s4705 + $0x1e8] sm:$0xff]
    %v4768 = vld [vmem:[%s4705 + $0x1f0] sm:$0xff]
    %v4769 = vld [vmem:[%s4705 + $0x1f8] sm:$0xff]
    %v4770 = vld [vmem:[%s4705 + $0x200] sm:$0xff]
    %v4771 = vld [vmem:[%s4705 + $0x208] sm:$0xff]
    %v4772 = vld [vmem:[%s4705 + $0x210] sm:$0xff]
    %v4773 = vld [vmem:[%s4705 + $0x218] sm:$0xff]
    %v4774 = vld [vmem:[%s4705 + $0x220] sm:$0xff]
    %v4775 = vld [vmem:[%s4705 + $0x228] sm:$0xff]
    %v4776 = vld [vmem:[%s4705 + $0x230] sm:$0xff]
    %v4777 = vld [vmem:[%s4705 + $0x238] sm:$0xff]
    %v4778 = vld [vmem:[%s4705 + $0x240] sm:$0xff]
    %v4779 = vld [vmem:[%s4705 + $0x248] sm:$0xff]
    %v4780 = vld [vmem:[%s4705 + $0x250] sm:$0xff]
    %v4781 = vld [vmem:[%s4705 + $0x258] sm:$0xff]
    %v4782 = vld [vmem:[%s4705 + $0x260] sm:$0xff]
    %v4783 = vld [vmem:[%s4705 + $0x268] sm:$0xff]
    %v4784 = vld [vmem:[%s4705 + $0x270] sm:$0xff]
    %v4785 = vld [vmem:[%s4705 + $0x278] sm:$0xff]
    %v4786 = vld [vmem:[%s4705 + $0x280] sm:$0xff]
    %v4787 = vld [vmem:[%s4705 + $0x288] sm:$0xff]
    %v4788 = vld [vmem:[%s4705 + $0x290] sm:$0xff]
    %v4789 = vld [vmem:[%s4705 + $0x298] sm:$0xff]
    %v4790 = vld [vmem:[%s4705 + $0x2a0] sm:$0xff]
    %v4791 = vld [vmem:[%s4705 + $0x2a8] sm:$0xff]
    %v4792 = vld [vmem:[%s4705 + $0x2b0] sm:$0xff]
    %v4793 = vld [vmem:[%s4705 + $0x2b8] sm:$0xff]
    %v4794 = vld [vmem:[%s4705 + $0x2c0] sm:$0xff]
    %v4795 = vld [vmem:[%s4705 + $0x2c8] sm:$0xff]
    %v4796 = vld [vmem:[%s4705 + $0x2d0] sm:$0xff]
    %v4797 = vld [vmem:[%s4705 + $0x2d8] sm:$0xff]
    %v4798 = vld [vmem:[%s4705 + $0x2e0] sm:$0xff]
    %v4799 = vld [vmem:[%s4705 + $0x2e8] sm:$0xff]
    %v4800 = vld [vmem:[%s4705 + $0x2f0] sm:$0xff]
    %v4801 = vld [vmem:[%s4705 + $0x2f8] sm:$0xff]
    %v4802 = vld [vmem:[%s4705 + $0x300] sm:$0xff]
    %v4803 = vld [vmem:[%s4705 + $0x308] sm:$0xff]
    %v4804 = vld [vmem:[%s4705 + $0x310] sm:$0xff]
    %v4805 = vld [vmem:[%s4705 + $0x318] sm:$0xff]
    %v4806 = vld [vmem:[%s4705 + $0x320] sm:$0xff]
    %v4807 = vld [vmem:[%s4705 + $0x328] sm:$0xff]
    %v4808 = vld [vmem:[%s4705 + $0x330] sm:$0xff]
    %v4809 = vld [vmem:[%s4705 + $0x338] sm:$0xff]
    %v4810 = vld [vmem:[%s4705 + $0x340] sm:$0xff]
    %v4811 = vld [vmem:[%s4705 + $0x348] sm:$0xff]
    %v4812 = vld [vmem:[%s4705 + $0x350] sm:$0xff]
    %v4813 = vld [vmem:[%s4705 + $0x358] sm:$0xff]
    %v4814 = vld [vmem:[%s4705 + $0x360] sm:$0xff]
    %v4815 = vld [vmem:[%s4705 + $0x368] sm:$0xff]
    %v4816 = vld [vmem:[%s4705 + $0x370] sm:$0xff]
    %v4817 = vld [vmem:[%s4705 + $0x378] sm:$0xff]
    %v4818 = vld [vmem:[%s4705 + $0x380] sm:$0xff]
    %v4819 = vld [vmem:[%s4705 + $0x388] sm:$0xff]
    %v4820 = vld [vmem:[%s4705 + $0x390] sm:$0xff]
    %v4821 = vld [vmem:[%s4705 + $0x398] sm:$0xff]
    %v4822 = vld [vmem:[%s4705 + $0x3a0] sm:$0xff]
    %v4823 = vld [vmem:[%s4705 + $0x3a8] sm:$0xff]
    %v4824 = vld [vmem:[%s4705 + $0x3b0] sm:$0xff]
    %v4825 = vld [vmem:[%s4705 + $0x3b8] sm:$0xff]
    %v4826 = vld [vmem:[%s4705 + $0x3c0] sm:$0xff]
    %v4827 = vld [vmem:[%s4705 + $0x3c8] sm:$0xff]
    %v4828 = vld [vmem:[%s4705 + $0x3d0] sm:$0xff]
    %v4829 = vld [vmem:[%s4705 + $0x3d8] sm:$0xff]
    %v4830 = vld [vmem:[%s4705 + $0x3e0] sm:$0xff]
    %v4831 = vld [vmem:[%s4705 + $0x3e8] sm:$0xff]
    %v4832 = vld [vmem:[%s4705 + $0x3f0] sm:$0xff]
    %v4833 = vld [vmem:[%s4705 + $0x3f8] sm:$0xff]
    %v4962 = vunpack.c.l.b16 %v4706
    %v4963 = vunpack.c.h.b16 %v4706
    %v4964 = vunpack.c.l.b16 %v4707
    %v4965 = vunpack.c.h.b16 %v4707
    %v4966 = vunpack.c.l.b16 %v4708
    %v4967 = vunpack.c.h.b16 %v4708
    %v4968 = vunpack.c.l.b16 %v4709
    %v4969 = vunpack.c.h.b16 %v4709
    %v4970 = vunpack.c.l.b16 %v4710
    %v4971 = vunpack.c.h.b16 %v4710
    %v4972 = vunpack.c.l.b16 %v4711
    %v4973 = vunpack.c.h.b16 %v4711
    %v4974 = vunpack.c.l.b16 %v4712
    %v4975 = vunpack.c.h.b16 %v4712
    %v4976 = vunpack.c.l.b16 %v4713
    %v4977 = vunpack.c.h.b16 %v4713
    %v4978 = vunpack.c.l.b16 %v4714
    %v4979 = vunpack.c.h.b16 %v4714
    %v4980 = vunpack.c.l.b16 %v4715
    %v4981 = vunpack.c.h.b16 %v4715
    %v4982 = vunpack.c.l.b16 %v4716
    %v4983 = vunpack.c.h.b16 %v4716
    %v4984 = vunpack.c.l.b16 %v4717
    %v4985 = vunpack.c.h.b16 %v4717
    %v4986 = vunpack.c.l.b16 %v4718
    %v4987 = vunpack.c.h.b16 %v4718
    %v4988 = vunpack.c.l.b16 %v4719
    %v4989 = vunpack.c.h.b16 %v4719
    %v4990 = vunpack.c.l.b16 %v4720
    %v4991 = vunpack.c.h.b16 %v4720
    %v4992 = vunpack.c.l.b16 %v4721
    %v4993 = vunpack.c.h.b16 %v4721
    %v4994 = vunpack.c.l.b16 %v4722
    %v4995 = vunpack.c.h.b16 %v4722
    %v4996 = vunpack.c.l.b16 %v4723
    %v4997 = vunpack.c.h.b16 %v4723
    %v4998 = vunpack.c.l.b16 %v4724
    %v4999 = vunpack.c.h.b16 %v4724
    %v5000 = vunpack.c.l.b16 %v4725
    %v5001 = vunpack.c.h.b16 %v4725
    %v5002 = vunpack.c.l.b16 %v4726
    %v5003 = vunpack.c.h.b16 %v4726
    %v5004 = vunpack.c.l.b16 %v4727
    %v5005 = vunpack.c.h.b16 %v4727
    %v5006 = vunpack.c.l.b16 %v4728
    %v5007 = vunpack.c.h.b16 %v4728
    %v5008 = vunpack.c.l.b16 %v4729
    %v5009 = vunpack.c.h.b16 %v4729
    %v5010 = vunpack.c.l.b16 %v4730
    %v5011 = vunpack.c.h.b16 %v4730
    %v5012 = vunpack.c.l.b16 %v4731
    %v5013 = vunpack.c.h.b16 %v4731
    %v5014 = vunpack.c.l.b16 %v4732
    %v5015 = vunpack.c.h.b16 %v4732
    %v5016 = vunpack.c.l.b16 %v4733
    %v5017 = vunpack.c.h.b16 %v4733
    %v5018 = vunpack.c.l.b16 %v4734
    %v5019 = vunpack.c.h.b16 %v4734
    %v5020 = vunpack.c.l.b16 %v4735
    %v5021 = vunpack.c.h.b16 %v4735
    %v5022 = vunpack.c.l.b16 %v4736
    %v5023 = vunpack.c.h.b16 %v4736
    %v5024 = vunpack.c.l.b16 %v4737
    %v5025 = vunpack.c.h.b16 %v4737
    %v5026 = vunpack.c.l.b16 %v4738
    %v5027 = vunpack.c.h.b16 %v4738
    %v5028 = vunpack.c.l.b16 %v4739
    %v5029 = vunpack.c.h.b16 %v4739
    %v5030 = vunpack.c.l.b16 %v4740
    %v5031 = vunpack.c.h.b16 %v4740
    %v5032 = vunpack.c.l.b16 %v4741
    %v5033 = vunpack.c.h.b16 %v4741
    %v5034 = vunpack.c.l.b16 %v4742
    %v5035 = vunpack.c.h.b16 %v4742
    %v5036 = vunpack.c.l.b16 %v4743
    %v5037 = vunpack.c.h.b16 %v4743
    %v5038 = vunpack.c.l.b16 %v4744
    %v5039 = vunpack.c.h.b16 %v4744
    %v5040 = vunpack.c.l.b16 %v4745
    %v5041 = vunpack.c.h.b16 %v4745
    %v5042 = vunpack.c.l.b16 %v4746
    %v5043 = vunpack.c.h.b16 %v4746
    %v5044 = vunpack.c.l.b16 %v4747
    %v5045 = vunpack.c.h.b16 %v4747
    %v5046 = vunpack.c.l.b16 %v4748
    %v5047 = vunpack.c.h.b16 %v4748
    %v5048 = vunpack.c.l.b16 %v4749
    %v5049 = vunpack.c.h.b16 %v4749
    %v5050 = vunpack.c.l.b16 %v4750
    %v5051 = vunpack.c.h.b16 %v4750
    %v5052 = vunpack.c.l.b16 %v4751
    %v5053 = vunpack.c.h.b16 %v4751
    %v5054 = vunpack.c.l.b16 %v4752
    %v5055 = vunpack.c.h.b16 %v4752
    %v5056 = vunpack.c.l.b16 %v4753
    %v5057 = vunpack.c.h.b16 %v4753
    %v5058 = vunpack.c.l.b16 %v4754
    %v5059 = vunpack.c.h.b16 %v4754
    %v5060 = vunpack.c.l.b16 %v4755
    %v5061 = vunpack.c.h.b16 %v4755
    %v5062 = vunpack.c.l.b16 %v4756
    %v5063 = vunpack.c.h.b16 %v4756
    %v5064 = vunpack.c.l.b16 %v4757
    %v5065 = vunpack.c.h.b16 %v4757
    %v5066 = vunpack.c.l.b16 %v4758
    %v5067 = vunpack.c.h.b16 %v4758
    %v5068 = vunpack.c.l.b16 %v4759
    %v5069 = vunpack.c.h.b16 %v4759
    %v5070 = vunpack.c.l.b16 %v4760
    %v5071 = vunpack.c.h.b16 %v4760
    %v5072 = vunpack.c.l.b16 %v4761
    %v5073 = vunpack.c.h.b16 %v4761
    %v5074 = vunpack.c.l.b16 %v4762
    %v5075 = vunpack.c.h.b16 %v4762
    %v5076 = vunpack.c.l.b16 %v4763
    %v5077 = vunpack.c.h.b16 %v4763
    %v5078 = vunpack.c.l.b16 %v4764
    %v5079 = vunpack.c.h.b16 %v4764
    %v5080 = vunpack.c.l.b16 %v4765
    %v5081 = vunpack.c.h.b16 %v4765
    %v5082 = vunpack.c.l.b16 %v4766
    %v5083 = vunpack.c.h.b16 %v4766
    %v5084 = vunpack.c.l.b16 %v4767
    %v5085 = vunpack.c.h.b16 %v4767
    %v5086 = vunpack.c.l.b16 %v4768
    %v5087 = vunpack.c.h.b16 %v4768
    %v5088 = vunpack.c.l.b16 %v4769
    %v5089 = vunpack.c.h.b16 %v4769
    %v5090 = vunpack.c.l.b16 %v4770
    %v5091 = vunpack.c.h.b16 %v4770
    %v5092 = vunpack.c.l.b16 %v4771
    %v5093 = vunpack.c.h.b16 %v4771
    %v5094 = vunpack.c.l.b16 %v4772
    %v5095 = vunpack.c.h.b16 %v4772
    %v5096 = vunpack.c.l.b16 %v4773
    %v5097 = vunpack.c.h.b16 %v4773
    %v5098 = vunpack.c.l.b16 %v4774
    %v5099 = vunpack.c.h.b16 %v4774
    %v5100 = vunpack.c.l.b16 %v4775
    %v5101 = vunpack.c.h.b16 %v4775
    %v5102 = vunpack.c.l.b16 %v4776
    %v5103 = vunpack.c.h.b16 %v4776
    %v5104 = vunpack.c.l.b16 %v4777
    %v5105 = vunpack.c.h.b16 %v4777
    %v5106 = vunpack.c.l.b16 %v4778
    %v5107 = vunpack.c.h.b16 %v4778
    %v5108 = vunpack.c.l.b16 %v4779
    %v5109 = vunpack.c.h.b16 %v4779
    %v5110 = vunpack.c.l.b16 %v4780
    %v5111 = vunpack.c.h.b16 %v4780
    %v5112 = vunpack.c.l.b16 %v4781
    %v5113 = vunpack.c.h.b16 %v4781
    %v5114 = vunpack.c.l.b16 %v4782
    %v5115 = vunpack.c.h.b16 %v4782
    %v5116 = vunpack.c.l.b16 %v4783
    %v5117 = vunpack.c.h.b16 %v4783
    %v5118 = vunpack.c.l.b16 %v4784
    %v5119 = vunpack.c.h.b16 %v4784
    %v5120 = vunpack.c.l.b16 %v4785
    %v5121 = vunpack.c.h.b16 %v4785
    %v5122 = vunpack.c.l.b16 %v4786
    %v5123 = vunpack.c.h.b16 %v4786
    %v5124 = vunpack.c.l.b16 %v4787
    %v5125 = vunpack.c.h.b16 %v4787
    %v5126 = vunpack.c.l.b16 %v4788
    %v5127 = vunpack.c.h.b16 %v4788
    %v5128 = vunpack.c.l.b16 %v4789
    %v5129 = vunpack.c.h.b16 %v4789
    %v5130 = vunpack.c.l.b16 %v4790
    %v5131 = vunpack.c.h.b16 %v4790
    %v5132 = vunpack.c.l.b16 %v4791
    %v5133 = vunpack.c.h.b16 %v4791
    %v5134 = vunpack.c.l.b16 %v4792
    %v5135 = vunpack.c.h.b16 %v4792
    %v5136 = vunpack.c.l.b16 %v4793
    %v5137 = vunpack.c.h.b16 %v4793
    %v5138 = vunpack.c.l.b16 %v4794
    %v5139 = vunpack.c.h.b16 %v4794
    %v5140 = vunpack.c.l.b16 %v4795
    %v5141 = vunpack.c.h.b16 %v4795
    %v5142 = vunpack.c.l.b16 %v4796
    %v5143 = vunpack.c.h.b16 %v4796
    %v5144 = vunpack.c.l.b16 %v4797
    %v5145 = vunpack.c.h.b16 %v4797
    %v5146 = vunpack.c.l.b16 %v4798
    %v5147 = vunpack.c.h.b16 %v4798
    %v5148 = vunpack.c.l.b16 %v4799
    %v5149 = vunpack.c.h.b16 %v4799
    %v5150 = vunpack.c.l.b16 %v4800
    %v5151 = vunpack.c.h.b16 %v4800
    %v5152 = vunpack.c.l.b16 %v4801
    %v5153 = vunpack.c.h.b16 %v4801
    %v5154 = vunpack.c.l.b16 %v4802
    %v5155 = vunpack.c.h.b16 %v4802
    %v5156 = vunpack.c.l.b16 %v4803
    %v5157 = vunpack.c.h.b16 %v4803
    %v5158 = vunpack.c.l.b16 %v4804
    %v5159 = vunpack.c.h.b16 %v4804
    %v5160 = vunpack.c.l.b16 %v4805
    %v5161 = vunpack.c.h.b16 %v4805
    %v5162 = vunpack.c.l.b16 %v4806
    %v5163 = vunpack.c.h.b16 %v4806
    %v5164 = vunpack.c.l.b16 %v4807
    %v5165 = vunpack.c.h.b16 %v4807
    %v5166 = vunpack.c.l.b16 %v4808
    %v5167 = vunpack.c.h.b16 %v4808
    %v5168 = vunpack.c.l.b16 %v4809
    %v5169 = vunpack.c.h.b16 %v4809
    %v5170 = vunpack.c.l.b16 %v4810
    %v5171 = vunpack.c.h.b16 %v4810
    %v5172 = vunpack.c.l.b16 %v4811
    %v5173 = vunpack.c.h.b16 %v4811
    %v5174 = vunpack.c.l.b16 %v4812
    %v5175 = vunpack.c.h.b16 %v4812
    %v5176 = vunpack.c.l.b16 %v4813
    %v5177 = vunpack.c.h.b16 %v4813
    %v5178 = vunpack.c.l.b16 %v4814
    %v5179 = vunpack.c.h.b16 %v4814
    %v5180 = vunpack.c.l.b16 %v4815
    %v5181 = vunpack.c.h.b16 %v4815
    %v5182 = vunpack.c.l.b16 %v4816
    %v5183 = vunpack.c.h.b16 %v4816
    %v5184 = vunpack.c.l.b16 %v4817
    %v5185 = vunpack.c.h.b16 %v4817
    %v5186 = vunpack.c.l.b16 %v4818
    %v5187 = vunpack.c.h.b16 %v4818
    %v5188 = vunpack.c.l.b16 %v4819
    %v5189 = vunpack.c.h.b16 %v4819
    %v5190 = vunpack.c.l.b16 %v4820
    %v5191 = vunpack.c.h.b16 %v4820
    %v5192 = vunpack.c.l.b16 %v4821
    %v5193 = vunpack.c.h.b16 %v4821
    %v5194 = vunpack.c.l.b16 %v4822
    %v5195 = vunpack.c.h.b16 %v4822
    %v5196 = vunpack.c.l.b16 %v4823
    %v5197 = vunpack.c.h.b16 %v4823
    %v5198 = vunpack.c.l.b16 %v4824
    %v5199 = vunpack.c.h.b16 %v4824
    %v5200 = vunpack.c.l.b16 %v4825
    %v5201 = vunpack.c.h.b16 %v4825
    %v5202 = vunpack.c.l.b16 %v4826
    %v5203 = vunpack.c.h.b16 %v4826
    %v5204 = vunpack.c.l.b16 %v4827
    %v5205 = vunpack.c.h.b16 %v4827
    %v5206 = vunpack.c.l.b16 %v4828
    %v5207 = vunpack.c.h.b16 %v4828
    %v5208 = vunpack.c.l.b16 %v4829
    %v5209 = vunpack.c.h.b16 %v4829
    %v5210 = vunpack.c.l.b16 %v4830
    %v5211 = vunpack.c.h.b16 %v4830
    %v5212 = vunpack.c.l.b16 %v4831
    %v5213 = vunpack.c.h.b16 %v4831
    %v5214 = vunpack.c.l.b16 %v4832
    %v5215 = vunpack.c.h.b16 %v4832
    %v5216 = vunpack.c.l.b16 %v4833
    %v5217 = vunpack.c.h.b16 %v4833
    %v5218 = vpack.c.b16 %v4964, %v4962
    %v5219 = vpack.c.b16 %v4965, %v4963
    %v5220 = vpack.c.b16 %v4968, %v4966
    %v5221 = vpack.c.b16 %v4969, %v4967
    %v5222 = vpack.c.b16 %v4972, %v4970
    %v5223 = vpack.c.b16 %v4973, %v4971
    %v5224 = vpack.c.b16 %v4976, %v4974
    %v5225 = vpack.c.b16 %v4977, %v4975
    %v5226 = vpack.c.b16 %v4980, %v4978
    %v5227 = vpack.c.b16 %v4981, %v4979
    %v5228 = vpack.c.b16 %v4984, %v4982
    %v5229 = vpack.c.b16 %v4985, %v4983
    %v5230 = vpack.c.b16 %v4988, %v4986
    %v5231 = vpack.c.b16 %v4989, %v4987
    %v5232 = vpack.c.b16 %v4992, %v4990
    %v5233 = vpack.c.b16 %v4993, %v4991
    %v5234 = vpack.c.b16 %v4996, %v4994
    %v5235 = vpack.c.b16 %v4997, %v4995
    %v5236 = vpack.c.b16 %v5000, %v4998
    %v5237 = vpack.c.b16 %v5001, %v4999
    %v5238 = vpack.c.b16 %v5004, %v5002
    %v5239 = vpack.c.b16 %v5005, %v5003
    %v5240 = vpack.c.b16 %v5008, %v5006
    %v5241 = vpack.c.b16 %v5009, %v5007
    %v5242 = vpack.c.b16 %v5012, %v5010
    %v5243 = vpack.c.b16 %v5013, %v5011
    %v5244 = vpack.c.b16 %v5016, %v5014
    %v5245 = vpack.c.b16 %v5017, %v5015
    %v5246 = vpack.c.b16 %v5020, %v5018
    %v5247 = vpack.c.b16 %v5021, %v5019
    %v5248 = vpack.c.b16 %v5024, %v5022
    %v5249 = vpack.c.b16 %v5025, %v5023
    %v5250 = vpack.c.b16 %v5028, %v5026
    %v5251 = vpack.c.b16 %v5029, %v5027
    %v5252 = vpack.c.b16 %v5032, %v5030
    %v5253 = vpack.c.b16 %v5033, %v5031
    %v5254 = vpack.c.b16 %v5036, %v5034
    %v5255 = vpack.c.b16 %v5037, %v5035
    %v5256 = vpack.c.b16 %v5040, %v5038
    %v5257 = vpack.c.b16 %v5041, %v5039
    %v5258 = vpack.c.b16 %v5044, %v5042
    %v5259 = vpack.c.b16 %v5045, %v5043
    %v5260 = vpack.c.b16 %v5048, %v5046
    %v5261 = vpack.c.b16 %v5049, %v5047
    %v5262 = vpack.c.b16 %v5052, %v5050
    %v5263 = vpack.c.b16 %v5053, %v5051
    %v5264 = vpack.c.b16 %v5056, %v5054
    %v5265 = vpack.c.b16 %v5057, %v5055
    %v5266 = vpack.c.b16 %v5060, %v5058
    %v5267 = vpack.c.b16 %v5061, %v5059
    %v5268 = vpack.c.b16 %v5064, %v5062
    %v5269 = vpack.c.b16 %v5065, %v5063
    %v5270 = vpack.c.b16 %v5068, %v5066
    %v5271 = vpack.c.b16 %v5069, %v5067
    %v5272 = vpack.c.b16 %v5072, %v5070
    %v5273 = vpack.c.b16 %v5073, %v5071
    %v5274 = vpack.c.b16 %v5076, %v5074
    %v5275 = vpack.c.b16 %v5077, %v5075
    %v5276 = vpack.c.b16 %v5080, %v5078
    %v5277 = vpack.c.b16 %v5081, %v5079
    %v5278 = vpack.c.b16 %v5084, %v5082
    %v5279 = vpack.c.b16 %v5085, %v5083
    %v5280 = vpack.c.b16 %v5088, %v5086
    %v5281 = vpack.c.b16 %v5089, %v5087
    %v5282 = vpack.c.b16 %v5092, %v5090
    %v5283 = vpack.c.b16 %v5093, %v5091
    %v5284 = vpack.c.b16 %v5096, %v5094
    %v5285 = vpack.c.b16 %v5097, %v5095
    %v5286 = vpack.c.b16 %v5100, %v5098
    %v5287 = vpack.c.b16 %v5101, %v5099
    %v5288 = vpack.c.b16 %v5104, %v5102
    %v5289 = vpack.c.b16 %v5105, %v5103
    %v5290 = vpack.c.b16 %v5108, %v5106
    %v5291 = vpack.c.b16 %v5109, %v5107
    %v5292 = vpack.c.b16 %v5112, %v5110
    %v5293 = vpack.c.b16 %v5113, %v5111
    %v5294 = vpack.c.b16 %v5116, %v5114
    %v5295 = vpack.c.b16 %v5117, %v5115
    %v5296 = vpack.c.b16 %v5120, %v5118
    %v5297 = vpack.c.b16 %v5121, %v5119
    %v5298 = vpack.c.b16 %v5124, %v5122
    %v5299 = vpack.c.b16 %v5125, %v5123
    %v5300 = vpack.c.b16 %v5128, %v5126
    %v5301 = vpack.c.b16 %v5129, %v5127
    %v5302 = vpack.c.b16 %v5132, %v5130
    %v5303 = vpack.c.b16 %v5133, %v5131
    %v5304 = vpack.c.b16 %v5136, %v5134
    %v5305 = vpack.c.b16 %v5137, %v5135
    %v5306 = vpack.c.b16 %v5140, %v5138
    %v5307 = vpack.c.b16 %v5141, %v5139
    %v5308 = vpack.c.b16 %v5144, %v5142
    %v5309 = vpack.c.b16 %v5145, %v5143
    %v5310 = vpack.c.b16 %v5148, %v5146
    %v5311 = vpack.c.b16 %v5149, %v5147
    %v5312 = vpack.c.b16 %v5152, %v5150
    %v5313 = vpack.c.b16 %v5153, %v5151
    %v5314 = vpack.c.b16 %v5156, %v5154
    %v5315 = vpack.c.b16 %v5157, %v5155
    %v5316 = vpack.c.b16 %v5160, %v5158
    %v5317 = vpack.c.b16 %v5161, %v5159
    %v5318 = vpack.c.b16 %v5164, %v5162
    %v5319 = vpack.c.b16 %v5165, %v5163
    %v5320 = vpack.c.b16 %v5168, %v5166
    %v5321 = vpack.c.b16 %v5169, %v5167
    %v5322 = vpack.c.b16 %v5172, %v5170
    %v5323 = vpack.c.b16 %v5173, %v5171
    %v5324 = vpack.c.b16 %v5176, %v5174
    %v5325 = vpack.c.b16 %v5177, %v5175
    %v5326 = vpack.c.b16 %v5180, %v5178
    %v5327 = vpack.c.b16 %v5181, %v5179
    %v5328 = vpack.c.b16 %v5184, %v5182
    %v5329 = vpack.c.b16 %v5185, %v5183
    %v5330 = vpack.c.b16 %v5188, %v5186
    %v5331 = vpack.c.b16 %v5189, %v5187
    %v5332 = vpack.c.b16 %v5192, %v5190
    %v5333 = vpack.c.b16 %v5193, %v5191
    %v5334 = vpack.c.b16 %v5196, %v5194
    %v5335 = vpack.c.b16 %v5197, %v5195
    %v5336 = vpack.c.b16 %v5200, %v5198
    %v5337 = vpack.c.b16 %v5201, %v5199
    %v5338 = vpack.c.b16 %v5204, %v5202
    %v5339 = vpack.c.b16 %v5205, %v5203
    %v5340 = vpack.c.b16 %v5208, %v5206
    %v5341 = vpack.c.b16 %v5209, %v5207
    %v5342 = vpack.c.b16 %v5212, %v5210
    %v5343 = vpack.c.b16 %v5213, %v5211
    %v5344 = vpack.c.b16 %v5216, %v5214
    %v5345 = vpack.c.b16 %v5217, %v5215
    %5474 = vmatprep.subr.bf16.mxu0 %v5219
    %5475 = vmatpush1.bf16.msra.mxu0 %v5218
    %5476 = vmatprep.subr.bf16.mxu0 %v5221
    %5477 = vmatpush1.bf16.msra.mxu0 %v5220
    %5478 = vmatprep.subr.bf16.mxu0 %v5223
    %5479 = vmatpush1.bf16.msra.mxu0 %v5222
    %5480 = vmatprep.subr.bf16.mxu0 %v5225
    %5481 = vmatpush1.bf16.msra.mxu0 %v5224
    %5482 = vmatprep.subr.bf16.mxu0 %v5227
    %5483 = vmatpush1.bf16.msra.mxu0 %v5226
    %5484 = vmatprep.subr.bf16.mxu0 %v5229
    %5485 = vmatpush1.bf16.msra.mxu0 %v5228
    %5486 = vmatprep.subr.bf16.mxu0 %v5231
    %5487 = vmatpush1.bf16.msra.mxu0 %v5230
    %5488 = vmatprep.subr.bf16.mxu0 %v5233
    %5489 = vmatpush1.bf16.msra.mxu0 %v5232
    %5490 = vmatprep.subr.bf16.mxu0 %v5235
    %5491 = vmatpush1.bf16.msra.mxu0 %v5234
    %5492 = vmatprep.subr.bf16.mxu0 %v5237
    %5493 = vmatpush1.bf16.msra.mxu0 %v5236
    %5494 = vmatprep.subr.bf16.mxu0 %v5239
    %5495 = vmatpush1.bf16.msra.mxu0 %v5238
    %5496 = vmatprep.subr.bf16.mxu0 %v5241
    %5497 = vmatpush1.bf16.msra.mxu0 %v5240
    %5498 = vmatprep.subr.bf16.mxu0 %v5243
    %5499 = vmatpush1.bf16.msra.mxu0 %v5242
    %5500 = vmatprep.subr.bf16.mxu0 %v5245
    %5501 = vmatpush1.bf16.msra.mxu0 %v5244
    %5502 = vmatprep.subr.bf16.mxu0 %v5247
    %5503 = vmatpush1.bf16.msra.mxu0 %v5246
    %5504 = vmatprep.subr.bf16.mxu0 %v5249
    %5505 = vmatpush1.bf16.msra.mxu0 %v5248
    %5506 = vmatprep.mubr.bf16.mxu0 %v4690
    %5507 = vmatmul.mubr.bf16.gmra.mrb[0].mxu0 %v4689
    %v5508 = vpop.f32.mrb[0].mxu0
    %v5509 = vadd.f32 0.0, %v5508
    %v5510 = vpop.f32.mrb[0].mxu0
    %v5511 = vadd.f32 0.0, %v5510
    %v5512 = vpop.f32.mrb[0].mxu0
    %v5513 = vadd.f32 0.0, %v5512
    %v5514 = vpop.f32.mrb[0].mxu0
    %v5515 = vadd.f32 0.0, %v5514
    %5516 = vmatprep.mubr.bf16.mxu0 %v4698
    %5517 = vmatmul.mubr.bf16.gmra.mrb[0].mxu0 %v4697
    %v5518 = vpop.f32.mrb[0].mxu0
    %v5519 = vadd.f32 0.0, %v5518
    %v5520 = vpop.f32.mrb[0].mxu0
    %v5521 = vadd.f32 0.0, %v5520
    %v5522 = vpop.f32.mrb[0].mxu0
    %v5523 = vpop.f32.mrb[0].mxu0
    %5524 = vdwg.mxu0
    %5525 = vmatprep.subr.bf16.mxu0 %v5251
    %5526 = vmatpush1.bf16.msra.mxu0 %v5250
    %5527 = vmatprep.subr.bf16.mxu0 %v5253
    %5528 = vmatpush1.bf16.msra.mxu0 %v5252
    %5529 = vmatprep.subr.bf16.mxu0 %v5255
    %5530 = vmatpush1.bf16.msra.mxu0 %v5254
    %5531 = vmatprep.subr.bf16.mxu0 %v5257
    %5532 = vmatpush1.bf16.msra.mxu0 %v5256
    %5533 = vmatprep.subr.bf16.mxu0 %v5259
    %5534 = vmatpush1.bf16.msra.mxu0 %v5258
    %5535 = vmatprep.subr.bf16.mxu0 %v5261
    %5536 = vmatpush1.bf16.msra.mxu0 %v5260
    %5537 = vmatprep.subr.bf16.mxu0 %v5263
    %5538 = vmatpush1.bf16.msra.mxu0 %v5262
    %5539 = vmatprep.subr.bf16.mxu0 %v5265
    %5540 = vmatpush1.bf16.msra.mxu0 %v5264
    %5541 = vmatprep.subr.bf16.mxu0 %v5267
    %5542 = vmatpush1.bf16.msra.mxu0 %v5266
    %5543 = vmatprep.subr.bf16.mxu0 %v5269
    %5544 = vmatpush1.bf16.msra.mxu0 %v5268
    %5545 = vmatprep.subr.bf16.mxu0 %v5271
    %5546 = vmatpush1.bf16.msra.mxu0 %v5270
    %5547 = vmatprep.subr.bf16.mxu0 %v5273
    %5548 = vmatpush1.bf16.msra.mxu0 %v5272
    %5549 = vmatprep.subr.bf16.mxu0 %v5275
    %5550 = vmatpush1.bf16.msra.mxu0 %v5274
    %5551 = vmatprep.subr.bf16.mxu0 %v5277
    %5552 = vmatpush1.bf16.msra.mxu0 %v5276
    %5553 = vmatprep.subr.bf16.mxu0 %v5279
    %5554 = vmatpush1.bf16.msra.mxu0 %v5278
    %5555 = vmatprep.subr.bf16.mxu0 %v5281
    %5556 = vmatpush1.bf16.msra.mxu0 %v5280
    %5557 = vmatprep.mubr.bf16.mxu0 %v4692
    %5558 = vmatmul.mubr.bf16.gmra.mrb[0].mxu0 %v4691
    %v5559 = vpop.f32.mrb[0].mxu0
    %v5560 = vadd.f32 %v5509, %v5559
    %v5561 = vpop.f32.mrb[0].mxu0
    %v5562 = vadd.f32 %v5511, %v5561
    %v5563 = vpop.f32.mrb[0].mxu0
    %v5564 = vadd.f32 %v5513, %v5563
    %v5565 = vpop.f32.mrb[0].mxu0
    %v5566 = vadd.f32 %v5515, %v5565
    %5567 = vmatprep.mubr.bf16.mxu0 %v4700
    %5568 = vmatmul.mubr.bf16.gmra.mrb[0].mxu0 %v4699
    %v5569 = vpop.f32.mrb[0].mxu0
    %v5570 = vadd.f32 %v5519, %v5569
    %v5571 = vpop.f32.mrb[0].mxu0
    %v5572 = vadd.f32 %v5521, %v5571
    %v5573 = vpop.f32.mrb[0].mxu0
    %v5574 = vpop.f32.mrb[0].mxu0
    %5575 = vdwg.mxu0
    %5576 = vmatprep.subr.bf16.mxu0 %v5283
    %5577 = vmatpush1.bf16.msra.mxu0 %v5282
    %5578 = vmatprep.subr.bf16.mxu0 %v5285
    %5579 = vmatpush1.bf16.msra.mxu0 %v5284
    %5580 = vmatprep.subr.bf16.mxu0 %v5287
    %5581 = vmatpush1.bf16.msra.mxu0 %v5286
    %5582 = vmatprep.subr.bf16.mxu0 %v5289
    %5583 = vmatpush1.bf16.msra.mxu0 %v5288
    %5584 = vmatprep.subr.bf16.mxu0 %v5291
    %5585 = vmatpush1.bf16.msra.mxu0 %v5290
    %5586 = vmatprep.subr.bf16.mxu0 %v5293
    %5587 = vmatpush1.bf16.msra.mxu0 %v5292
    %5588 = vmatprep.subr.bf16.mxu0 %v5295
    %5589 = vmatpush1.bf16.msra.mxu0 %v5294
    %5590 = vmatprep.subr.bf16.mxu0 %v5297
    %5591 = vmatpush1.bf16.msra.mxu0 %v5296
    %5592 = vmatprep.subr.bf16.mxu0 %v5299
    %5593 = vmatpush1.bf16.msra.mxu0 %v5298
    %5594 = vmatprep.subr.bf16.mxu0 %v5301
    %5595 = vmatpush1.bf16.msra.mxu0 %v5300
    %5596 = vmatprep.subr.bf16.mxu0 %v5303
    %5597 = vmatpush1.bf16.msra.mxu0 %v5302
    %5598 = vmatprep.subr.bf16.mxu0 %v5305
    %5599 = vmatpush1.bf16.msra.mxu0 %v5304
    %5600 = vmatprep.subr.bf16.mxu0 %v5307
    %5601 = vmatpush1.bf16.msra.mxu0 %v5306
    %5602 = vmatprep.subr.bf16.mxu0 %v5309
    %5603 = vmatpush1.bf16.msra.mxu0 %v5308
    %5604 = vmatprep.subr.bf16.mxu0 %v5311
    %5605 = vmatpush1.bf16.msra.mxu0 %v5310
    %5606 = vmatprep.subr.bf16.mxu0 %v5313
    %5607 = vmatpush1.bf16.msra.mxu0 %v5312
    %5608 = vmatprep.mubr.bf16.mxu0 %v4694
    %5609 = vmatmul.mubr.bf16.gmra.mrb[0].mxu0 %v4693
    %v5610 = vpop.f32.mrb[0].mxu0
    %v5611 = vadd.f32 %v5560, %v5610
    %v5612 = vpop.f32.mrb[0].mxu0
    %v5613 = vadd.f32 %v5562, %v5612
    %v5614 = vpop.f32.mrb[0].mxu0
    %v5615 = vadd.f32 %v5564, %v5614
    %v5616 = vpop.f32.mrb[0].mxu0
    %v5617 = vadd.f32 %v5566, %v5616
    %5618 = vmatprep.mubr.bf16.mxu0 %v4702
    %5619 = vmatmul.mubr.bf16.gmra.mrb[0].mxu0 %v4701
    %v5620 = vpop.f32.mrb[0].mxu0
    %v5621 = vadd.f32 %v5570, %v5620
    %v5622 = vpop.f32.mrb[0].mxu0
    %v5623 = vadd.f32 %v5572, %v5622
    %v5624 = vpop.f32.mrb[0].mxu0
    %v5625 = vpop.f32.mrb[0].mxu0
    %5626 = vdwg.mxu0
    %5627 = vmatprep.subr.bf16.mxu0 %v5315
    %5628 = vmatpush1.bf16.msra.mxu0 %v5314
    %5629 = vmatprep.subr.bf16.mxu0 %v5317
    %5630 = vmatpush1.bf16.msra.mxu0 %v5316
    %5631 = vmatprep.subr.bf16.mxu0 %v5319
    %5632 = vmatpush1.bf16.msra.mxu0 %v5318
    %5633 = vmatprep.subr.bf16.mxu0 %v5321
    %5634 = vmatpush1.bf16.msra.mxu0 %v5320
    %5635 = vmatprep.subr.bf16.mxu0 %v5323
    %5636 = vmatpush1.bf16.msra.mxu0 %v5322
    %5637 = vmatprep.subr.bf16.mxu0 %v5325
    %5638 = vmatpush1.bf16.msra.mxu0 %v5324
    %5639 = vmatprep.subr.bf16.mxu0 %v5327
    %5640 = vmatpush1.bf16.msra.mxu0 %v5326
    %5641 = vmatprep.subr.bf16.mxu0 %v5329
    %5642 = vmatpush1.bf16.msra.mxu0 %v5328
    %5643 = vmatprep.subr.bf16.mxu0 %v5331
    %5644 = vmatpush1.bf16.msra.mxu0 %v5330
    %5645 = vmatprep.subr.bf16.mxu0 %v5333
    %5646 = vmatpush1.bf16.msra.mxu0 %v5332
    %5647 = vmatprep.subr.bf16.mxu0 %v5335
    %5648 = vmatpush1.bf16.msra.mxu0 %v5334
    %5649 = vmatprep.subr.bf16.mxu0 %v5337
    %5650 = vmatpush1.bf16.msra.mxu0 %v5336
    %5651 = vmatprep.subr.bf16.mxu0 %v5339
    %5652 = vmatpush1.bf16.msra.mxu0 %v5338
    %5653 = vmatprep.subr.bf16.mxu0 %v5341
    %5654 = vmatpush1.bf16.msra.mxu0 %v5340
    %5655 = vmatprep.subr.bf16.mxu0 %v5343
    %5656 = vmatpush1.bf16.msra.mxu0 %v5342
    %5657 = vmatprep.subr.bf16.mxu0 %v5345
    %5658 = vmatpush1.bf16.msra.mxu0 %v5344
    %5659 = vmatprep.mubr.bf16.mxu0 %v4696
    %5660 = vmatmul.mubr.bf16.gmra.mrb[0].mxu0 %v4695
    %v5661 = vpop.f32.mrb[0].mxu0
    %v5662 = vadd.f32 %v5611, %v5661
    %v5663 = vpop.f32.mrb[0].mxu0
    %v5664 = vadd.f32 %v5613, %v5663
    %v5665 = vpop.f32.mrb[0].mxu0
    %v5666 = vadd.f32 %v5615, %v5665
    %v5667 = vpop.f32.mrb[0].mxu0
    %v5668 = vadd.f32 %v5617, %v5667
    %5669 = vmatprep.mubr.bf16.mxu0 %v4704
    %5670 = vmatmul.mubr.bf16.gmra.mrb[0].mxu0 %v4703
    %v5671 = vpop.f32.mrb[0].mxu0
    %v5672 = vadd.f32 %v5621, %v5671
    %v5673 = vpop.f32.mrb[0].mxu0
    %v5674 = vadd.f32 %v5623, %v5673
    %v5675 = vpop.f32.mrb[0].mxu0
    %v5676 = vpop.f32.mrb[0].mxu0
    %5677 = vdwg.mxu0
    %v5678 = vadd.f32 %v3641, %v5662
    %v5679 = vadd.f32 %v3642, %v5664
    %v5680 = vadd.f32 %v3643, %v5666
    %v5681 = vadd.f32 %v3644, %v5668
    %v5682 = vadd.f32 %v3645, %v5672
    %v5683 = vadd.f32 %v3646, %v5674
    %v5685 = vlaneseq
    %v5686 = vshrl.u32 %v5685, 7
    %v5687 = vsub.s32 0, %v5686
    %v5688 = vrot.slane %v3031, %v5687
    %v5689 = vlaneseq
    %v5690 = vshrl.u32 %v5689, 7
    %v5691 = vsub.s32 1, %v5690
    %v5692 = vrot.slane %v3031, %v5691
    %v5695 = vadd.f32 %v5678, %v5688
    %v5696 = vadd.f32 %v5679, %v5692
    %v5697 = vadd.f32 %v5680, %v5688
    %v5698 = vadd.f32 %v5681, %v5692
    %v5699 = vadd.f32 %v5682, %v5688
    %v5700 = vadd.f32 %v5683, %v5692
    %v5701 = vadd.f32 %v5695, %v5696
    %5702 = vadd.xlane.f32.xlu0 %v5701
    %v5703 = vpop.xlane.xlu0 %5702
    %v5704 = vadd.f32 %v5697, %v5698
    %5705 = vadd.xlane.f32.xlu0 %v5704
    %v5706 = vpop.xlane.xlu0 %5705
    %v5707 = vadd.f32 %v5699, %v5700
    %5708 = vadd.xlane.f32.xlu0 %v5707
    %v5709 = vpop.xlane.xlu0 %5708
    %v5710 = vmul.f32 %v5703, %v818
    %v5711 = vmul.f32 %v5706, %v818
    %v5712 = vmul.f32 %v5709, %v818
    %v5713 = vsub.f32 %v5695, %v5710
    %v5714 = vsub.f32 %v5696, %v5710
    %v5715 = vsub.f32 %v5697, %v5711
    %v5716 = vsub.f32 %v5698, %v5711
    %v5717 = vsub.f32 %v5699, %v5712
    %v5718 = vsub.f32 %v5700, %v5712
    %v5719 = vmul.f32 %v5713, %v5713
    %v5720 = vmul.f32 %v5714, %v5714
    %v5721 = vmul.f32 %v5715, %v5715
    %v5722 = vmul.f32 %v5716, %v5716
    %v5723 = vmul.f32 %v5717, %v5717
    %v5724 = vmul.f32 %v5718, %v5718
    %v5725 = vadd.f32 %v5719, %v5720
    %5726 = vadd.xlane.f32.xlu0 %v5725
    %v5727 = vpop.xlane.xlu0 %5726
    %v5728 = vadd.f32 %v5721, %v5722
    %5729 = vadd.xlane.f32.xlu0 %v5728
    %v5730 = vpop.xlane.xlu0 %5729
    %v5731 = vadd.f32 %v5723, %v5724
    %5732 = vadd.xlane.f32.xlu0 %v5731
    %v5733 = vpop.xlane.xlu0 %5732
    %v5734 = vmul.f32 %v5727, %v818
    %v5735 = vmul.f32 %v5730, %v818
    %v5736 = vmul.f32 %v5733, %v818
    %v5737 = vadd.f32 %v5734, 1e-05
    %v5738 = vadd.f32 %v5735, 1e-05
    %v5739 = vadd.f32 %v5736, 1e-05
    %v5740 = vrsqrt.pop %v5737
    %v5741 = vrsqrt.pop %v5738
    %v5742 = vrsqrt.pop %v5739
    %v5743 = vmul.f32 %v5713, %v5740
    %v5744 = vmul.f32 %v5714, %v5740
    %v5745 = vmul.f32 %v5715, %v5741
    %v5746 = vmul.f32 %v5716, %v5741
    %v5747 = vmul.f32 %v5717, %v5742
    %v5748 = vmul.f32 %v5718, %v5742
    %v5750 = vlaneseq
    %v5751 = vshrl.u32 %v5750, 7
    %v5752 = vsub.s32 0, %v5751
    %v5753 = vrot.slane %v3037, %v5752
    %v5754 = vlaneseq
    %v5755 = vshrl.u32 %v5754, 7
    %v5756 = vsub.s32 1, %v5755
    %v5757 = vrot.slane %v3037, %v5756
    %v5760 = vmul.f32 %v5743, %v5753
    %v5761 = vmul.f32 %v5744, %v5757
    %v5762 = vmul.f32 %v5745, %v5753
    %v5763 = vmul.f32 %v5746, %v5757
    %v5764 = vmul.f32 %v5747, %v5753
    %v5765 = vmul.f32 %v5748, %v5757
    %v5767 = vlaneseq
    %v5768 = vshrl.u32 %v5767, 7
    %v5769 = vsub.s32 0, %v5768
    %v5770 = vrot.slane %v3039, %v5769
    %v5771 = vlaneseq
    %v5772 = vshrl.u32 %v5771, 7
    %v5773 = vsub.s32 1, %v5772
    %v5774 = vrot.slane %v3039, %v5773
    %v5777 = vadd.f32 %v5760, %v5770
    %v5778 = vadd.f32 %v5761, %v5774
    %v5779 = vadd.f32 %v5762, %v5770
    %v5780 = vadd.f32 %v5763, %v5774
    %v5781 = vadd.f32 %v5764, %v5770
    %v5782 = vadd.f32 %v5765, %v5774
    %v5783 = vpack.c.bf16 %v5779, %v5777
    %v5784 = vpack.c.bf16 %v5780, %v5778
    %v5785 = vpack.c.bf16 %v5781, %v5781
    %v5786 = vpack.c.bf16 %v5782, %v5782
    %v5787 = vld [vmem:[#allocation9] sm:$0xf]
    %v5788 = vld [vmem:[#allocation9 + $0x4] sm:$0xf]
    %v5789 = vld [vmem:[#allocation9 + $0x8] sm:$0xf]
    %v5790 = vld [vmem:[#allocation9 + $0xc] sm:$0xf]
    %v5791 = vld [vmem:[#allocation9 + $0x10] sm:$0xf]
    %v5792 = vld [vmem:[#allocation9 + $0x14] sm:$0xf]
    %v5793 = vld [vmem:[#allocation9 + $0x18] sm:$0xf]
    %v5794 = vld [vmem:[#allocation9 + $0x1c] sm:$0xf]
    %v5795 = vld [vmem:[#allocation9 + $0x20] sm:$0xf]
    %v5796 = vld [vmem:[#allocation9 + $0x24] sm:$0xf]
    %v5797 = vld [vmem:[#allocation9 + $0x28] sm:$0xf]
    %v5798 = vld [vmem:[#allocation9 + $0x2c] sm:$0xf]
    %v5799 = vld [vmem:[#allocation9 + $0x30] sm:$0xf]
    %v5800 = vld [vmem:[#allocation9 + $0x34] sm:$0xf]
    %v5801 = vld [vmem:[#allocation9 + $0x38] sm:$0xf]
    %v5802 = vld [vmem:[#allocation9 + $0x3c] sm:$0xf]
    %v5803 = vld [vmem:[#allocation9 + $0x40] sm:$0xf]
    %v5804 = vld [vmem:[#allocation9 + $0x44] sm:$0xf]
    %v5805 = vld [vmem:[#allocation9 + $0x48] sm:$0xf]
    %v5806 = vld [vmem:[#allocation9 + $0x4c] sm:$0xf]
    %v5807 = vld [vmem:[#allocation9 + $0x50] sm:$0xf]
    %v5808 = vld [vmem:[#allocation9 + $0x54] sm:$0xf]
    %v5809 = vld [vmem:[#allocation9 + $0x58] sm:$0xf]
    %v5810 = vld [vmem:[#allocation9 + $0x5c] sm:$0xf]
    %v5811 = vld [vmem:[#allocation9 + $0x60] sm:$0xf]
    %v5812 = vld [vmem:[#allocation9 + $0x64] sm:$0xf]
    %v5813 = vld [vmem:[#allocation9 + $0x68] sm:$0xf]
    %v5814 = vld [vmem:[#allocation9 + $0x6c] sm:$0xf]
    %v5815 = vld [vmem:[#allocation9 + $0x70] sm:$0xf]
    %v5816 = vld [vmem:[#allocation9 + $0x74] sm:$0xf]
    %v5817 = vld [vmem:[#allocation9 + $0x78] sm:$0xf]
    %v5818 = vld [vmem:[#allocation9 + $0x7c] sm:$0xf]
    %v5819 = vld [vmem:[#allocation10] sm:$0x1]
    %v5820 = vlaneseq
    %v5821 = vshrl.u32 %v5820, 7
    %v5822 = vsub.s32 0, %v5821
    %v5823 = vrot.slane %v5819, %v5822
    %v5856 = vunpack.c.l.b16 %v5787
    %v5857 = vunpack.c.l.b16 %v5788
    %v5858 = vunpack.c.l.b16 %v5789
    %v5859 = vunpack.c.l.b16 %v5790
    %v5860 = vunpack.c.l.b16 %v5791
    %v5861 = vunpack.c.l.b16 %v5792
    %v5862 = vunpack.c.l.b16 %v5793
    %v5863 = vunpack.c.l.b16 %v5794
    %v5864 = vunpack.c.l.b16 %v5795
    %v5865 = vunpack.c.l.b16 %v5796
    %v5866 = vunpack.c.l.b16 %v5797
    %v5867 = vunpack.c.l.b16 %v5798
    %v5868 = vunpack.c.l.b16 %v5799
    %v5869 = vunpack.c.l.b16 %v5800
    %v5870 = vunpack.c.l.b16 %v5801
    %v5871 = vunpack.c.l.b16 %v5802
    %v5872 = vunpack.c.l.b16 %v5803
    %v5873 = vunpack.c.l.b16 %v5804
    %v5874 = vunpack.c.l.b16 %v5805
    %v5875 = vunpack.c.l.b16 %v5806
    %v5876 = vunpack.c.l.b16 %v5807
    %v5877 = vunpack.c.l.b16 %v5808
    %v5878 = vunpack.c.l.b16 %v5809
    %v5879 = vunpack.c.l.b16 %v5810
    %v5880 = vunpack.c.l.b16 %v5811
    %v5881 = vunpack.c.l.b16 %v5812
    %v5882 = vunpack.c.l.b16 %v5813
    %v5883 = vunpack.c.l.b16 %v5814
    %v5884 = vunpack.c.l.b16 %v5815
    %v5885 = vunpack.c.l.b16 %v5816
    %v5886 = vunpack.c.l.b16 %v5817
    %v5887 = vunpack.c.l.b16 %v5818
    %v5888 = vpack.c.b16 %v5857, %v5856
    %v5889 = vpack.c.b16 %v5859, %v5858
    %v5890 = vpack.c.b16 %v5861, %v5860
    %v5891 = vpack.c.b16 %v5863, %v5862
    %v5892 = vpack.c.b16 %v5865, %v5864
    %v5893 = vpack.c.b16 %v5867, %v5866
    %v5894 = vpack.c.b16 %v5869, %v5868
    %v5895 = vpack.c.b16 %v5871, %v5870
    %v5896 = vpack.c.b16 %v5873, %v5872
    %v5897 = vpack.c.b16 %v5875, %v5874
    %v5898 = vpack.c.b16 %v5877, %v5876
    %v5899 = vpack.c.b16 %v5879, %v5878
    %v5900 = vpack.c.b16 %v5881, %v5880
    %v5901 = vpack.c.b16 %v5883, %v5882
    %v5902 = vpack.c.b16 %v5885, %v5884
    %v5903 = vpack.c.b16 %v5887, %v5886
    %5920 = vmatprep.subr.bf16.mxu0 0
    %5921 = vmatpush1.bf16.msra.mxu0 %v5888
    %5922 = vmatprep.subr.bf16.mxu0 0
    %5923 = vmatpush1.bf16.msra.mxu0 %v5889
    %5924 = vmatprep.subr.bf16.mxu0 0
    %5925 = vmatpush1.bf16.msra.mxu0 %v5890
    %5926 = vmatprep.subr.bf16.mxu0 0
    %5927 = vmatpush1.bf16.msra.mxu0 %v5891
    %5928 = vmatprep.subr.bf16.mxu0 0
    %5929 = vmatpush1.bf16.msra.mxu0 %v5892
    %5930 = vmatprep.subr.bf16.mxu0 0
    %5931 = vmatpush1.bf16.msra.mxu0 %v5893
    %5932 = vmatprep.subr.bf16.mxu0 0
    %5933 = vmatpush1.bf16.msra.mxu0 %v5894
    %5934 = vmatprep.subr.bf16.mxu0 0
    %5935 = vmatpush1.bf16.msra.mxu0 %v5895
    %5936 = vmatprep.subr.bf16.mxu0 0
    %5937 = vmatpush1.bf16.msra.mxu0 %v5896
    %5938 = vmatprep.subr.bf16.mxu0 0
    %5939 = vmatpush1.bf16.msra.mxu0 %v5897
    %5940 = vmatprep.subr.bf16.mxu0 0
    %5941 = vmatpush1.bf16.msra.mxu0 %v5898
    %5942 = vmatprep.subr.bf16.mxu0 0
    %5943 = vmatpush1.bf16.msra.mxu0 %v5899
    %5944 = vmatprep.subr.bf16.mxu0 0
    %5945 = vmatpush1.bf16.msra.mxu0 %v5900
    %5946 = vmatprep.subr.bf16.mxu0 0
    %5947 = vmatpush1.bf16.msra.mxu0 %v5901
    %5948 = vmatprep.subr.bf16.mxu0 0
    %5949 = vmatpush1.bf16.msra.mxu0 %v5902
    %5950 = vmatprep.subr.bf16.mxu0 0
    %5951 = vmatpush1.bf16.msra.mxu0 %v5903
    %5952 = vmatprep.mubr.bf16.mxu0 %v5784
    %5953 = vmatmul.mubr.bf16.gmra.mrb[0].mxu0 %v5783
    %v5954 = vpop.f32.mrb[0].mxu0
    %v5955 = vadd.f32 %v5823, %v5954
    %v5956 = vpop.f32.mrb[0].mxu0
    %v5957 = vpop.f32.mrb[0].mxu0
    %v5958 = vadd.f32 %v5823, %v5957
    %v5959 = vpop.f32.mrb[0].mxu0
    %5960 = vmatprep.mubr.bf16.mxu0 %v5786
    %5961 = vmatmul.mubr.bf16.gmra.mrb[0].mxu0 %v5785
    %v5962 = vpop.f32.mrb[0].mxu0
    %v5963 = vadd.f32 %v5823, %v5962
    %v5964 = vpop.f32.mrb[0].mxu0
    %v5965 = vpop.f32.mrb[0].mxu0
    %v5966 = vpop.f32.mrb[0].mxu0
    %5967 = vdwg.mxu0
    %v5968 = vld [vmem:[#allocation10 + $0x1] sm:$0x1]
    %v5969 = vld [vmem:[#allocation10 + $0x2] sm:$0x1]
    %5970 = vadd.xlane.f32.xlu0 %v5955
    %v5971 = vpop.xlane.xlu0 %5970
    %5972 = vadd.xlane.f32.xlu0 %v5958
    %v5973 = vpop.xlane.xlu0 %5972
    %5974 = vadd.xlane.f32.xlu0 %v5963
    %v5975 = vpop.xlane.xlu0 %5974
    %v5976 = vrcp.pop 128.0
    %v5977 = vmul.f32 %v5971, %v5976
    %v5978 = vmul.f32 %v5973, %v5976
    %v5979 = vmul.f32 %v5975, %v5976
    %v5980 = vsub.f32 %v5955, %v5977
    %v5981 = vsub.f32 %v5958, %v5978
    %v5982 = vsub.f32 %v5963, %v5979
    %v5983 = vmul.f32 %v5980, %v5980
    %v5984 = vmul.f32 %v5981, %v5981
    %v5985 = vmul.f32 %v5982, %v5982
    %5986 = vadd.xlane.f32.xlu0 %v5983
    %v5987 = vpop.xlane.xlu0 %5986
    %5988 = vadd.xlane.f32.xlu0 %v5984
    %v5989 = vpop.xlane.xlu0 %5988
    %5990 = vadd.xlane.f32.xlu0 %v5985
    %v5991 = vpop.xlane.xlu0 %5990
    %v5992 = vmul.f32 %v5987, %v5976
    %v5993 = vmul.f32 %v5989, %v5976
    %v5994 = vmul.f32 %v5991, %v5976
    %v5995 = vadd.f32 %v5992, 1e-05
    %v5996 = vadd.f32 %v5993, 1e-05
    %v5997 = vadd.f32 %v5994, 1e-05
    %v5998 = vrsqrt.pop %v5995
    %v5999 = vrsqrt.pop %v5996
    %v6000 = vrsqrt.pop %v5997
    %v6001 = vmul.f32 %v5980, %v5998
    %v6002 = vmul.f32 %v5981, %v5999
    %v6003 = vmul.f32 %v5982, %v6000
    %v6004 = vlaneseq
    %v6005 = vshrl.u32 %v6004, 7
    %v6006 = vsub.s32 0, %v6005
    %v6007 = vrot.slane %v5968, %v6006
    %v6008 = vmul.f32 %v6001, %v6007
    %v6009 = vmul.f32 %v6002, %v6007
    %v6010 = vmul.f32 %v6003, %v6007
    %v6011 = vlaneseq
    %v6012 = vshrl.u32 %v6011, 7
    %v6013 = vsub.s32 0, %v6012
    %v6014 = vrot.slane %v5969, %v6013
    %v6015 = vadd.f32 %v6008, %v6014
    %v6016 = vadd.f32 %v6009, %v6014
    %v6017 = vadd.f32 %v6010, %v6014
    %v6018 = vmul.f32 %v6015, %v6015
    %v6019 = vmul.f32 %v6016, %v6016
    %v6020 = vmul.f32 %v6017, %v6017
    %6021 = vadd.xlane.f32.xlu0 %v6018
    %v6022 = vpop.xlane.xlu0 %6021
    %6023 = vadd.xlane.f32.xlu0 %v6019
    %v6024 = vpop.xlane.xlu0 %6023
    %6025 = vadd.xlane.f32.xlu0 %v6020
    %v6026 = vpop.xlane.xlu0 %6025
    %v6027 = vmax.f32 %v6022, 1e-24
    %v6028 = vmax.f32 %v6024, 1e-24
    %v6029 = vmax.f32 %v6026, 1e-24
    %v6030 = vrsqrt.pop %v6027
    %v6031 = vrsqrt.pop %v6028
    %v6032 = vrsqrt.pop %v6029
    %v6033 = vmul.f32 %v6015, %v6030
    %v6034 = vmul.f32 %v6016, %v6031
    %v6035 = vmul.f32 %v6017, %v6032
    %6036 = vst [vmem:[%s9] sm:$0xff] %v6033
    %6037 = vst [vmem:[%s9 + $0x8] sm:$0xff] %v6034
    %6038 = vst [vmem:[%s9 + $0x10] sm:$0xff] %v6035
    // Predicated region
    $region62: #{siamese_forward.1} parent=1 // pred_check
      _
    $region63: #{siamese_forward.1} parent=1 // pred_check_branch
      %6040 = sbr.rel (0) target = $region65
    $region64: #{siamese_forward.1} parent=1 // pred_region
      _
    $region65: #{siamese_forward.1} parent=1 // pred_fallthru
      _
    // Predicated region
    $region66: #{siamese_forward.1} parent=1 // pred_check
      _
    $region67: #{siamese_forward.1} parent=1 // pred_check_branch
      %6042 = sbr.rel (0) target = $region69
    $region68: #{siamese_forward.1} parent=1 // pred_region
      _
    $region69: #{siamese_forward.1} parent=1 // pred_fallthru
      _
    %6043 = vsyncpa [#allocation3], 1
    %6044 = vsyncpa [#allocation5], 1
    %6045 = vsyncpa [#allocation8], 1
    %6046 = vsyncpa [#allocation11], 1

</llo_original>
